<compile_context>
chip_gen: v7x
topology: tpu7x:2x2x1
jax: 0.10.0
libtpu: 0.0.40
codegen_flags: <defaults>
</compile_context>

<pallas_src>
import functools

import jax
import jax.numpy as jnp
from jax.experimental import pallas as pl
from jax.experimental.pallas import tpu as pltpu

LANE = 128


def _round_up(x, m):
    return (x + m - 1) // m * m


def _pick_tb(batch, tb_req):
    """Batch tile: multiple of 8, <= padded batch, prefer >= 2 grid steps."""
    b8 = _round_up(batch, 8)
    tb = min(_round_up(tb_req, 8), b8)
    # v7x megacore: a single grid step would idle one TensorCore; split when
    # the batch is big enough.  On v5e/v6e this is harmless (one TC anyway).
    if b8 // tb < 2 and b8 >= 16:
        tb = _round_up(pl.cdiv(b8, 2), 8)
    return tb


def _vmem_budget_bytes(tb, state_dim, hidden, out_pad):
    # Streamed x/out tiles are double-buffered; resident bf16 weights / f32
    # biases counted x2 conservatively.  Generous margin, clamped to a range
    # that is legal on v5e (128 MiB phys), v6e (128 MiB) and v7x (64 MiB).
    stream = 2 * (tb * state_dim * 4 + tb * out_pad * 2)
    weights = 2 * 2 * (state_dim * hidden + hidden * hidden + hidden * out_pad)
    biases = 2 * 4 * (hidden + hidden + out_pad)
    total = stream + weights + biases
    return int(min(max(4 * total, 16 << 20), 32 << 20))


def qnetwork_kernel(x_ref, w1_ref, b1_ref, w2_ref, b2_ref, w3_ref, b3_ref, out_ref):
    # One (TB, state_dim) batch tile per grid step.  Weights/biases use a
    # constant index_map -> VMEM-resident across the whole grid.
    x = x_ref[...].astype(jnp.bfloat16)                       # bf16 MXU inputs

    h1 = jnp.dot(x, w1_ref[...], preferred_element_type=jnp.float32) + b1_ref[...]
    h1 = jnp.maximum(h1, 0.0).astype(jnp.bfloat16)            # ReLU in f32, recast

    h2 = jnp.dot(h1, w2_ref[...], preferred_element_type=jnp.float32) + b2_ref[...]
    h2 = jnp.maximum(h2, 0.0).astype(jnp.bfloat16)

    out = jnp.dot(h2, w3_ref[...], preferred_element_type=jnp.float32) + b3_ref[...]
    out_ref[...] = out.astype(out_ref.dtype)                  # bf16 lane-dense store


def qnetwork_forward_padded(state, params, *, tb=512):
    """Runs the fused MLP; returns the (b_pad, out_pad) bf16 padded buffer."""
    w1, b1 = params["w1"], params["b1"]
    w2, b2 = params["w2"], params["b2"]
    w3, b3 = params["w3"], params["b3"]

    B, state_dim = state.shape
    hidden = w1.shape[1]
    action_dim = w3.shape[1]

    # Lane-dense output: zero-pad the final projection to a multiple of 128.
    out_pad = _round_up(action_dim, LANE)
    w3p = jnp.zeros((hidden, out_pad), jnp.float32).at[:, :action_dim].set(w3)
    b3p = jnp.zeros((1, out_pad), jnp.float32).at[:, :action_dim].set(b3)

    # bf16 weights for the MXU (halves weight DMA); biases stay f32.
    w1b = w1.astype(jnp.bfloat16)
    w2b = w2.astype(jnp.bfloat16)
    w3b = w3p.astype(jnp.bfloat16)
    b1f = b1.astype(jnp.float32)
    b2f = b2.astype(jnp.float32)
    b3f = b3p.astype(jnp.float32)

    tb = _pick_tb(B, tb)
    b_pad = _round_up(B, tb)
    x = state.astype(jnp.float32)
    if b_pad != B:
        x = jnp.pad(x, ((0, b_pad - B), (0, 0)))

    grid = (b_pad // tb,)
    resident = lambda shape: pl.BlockSpec(shape, lambda i: (0, 0))  # never re-DMA'd

    flops = 2 * b_pad * (state_dim * hidden + hidden * hidden + hidden * out_pad)
    bytes_accessed = (
        b_pad * state_dim * 4                                   # x read (f32)
        + 2 * (w1b.size + w2b.size + w3b.size)                  # bf16 weights
        + 4 * (b1f.size + b2f.size + b3f.size)                  # f32 biases
        + 2 * b_pad * out_pad                                   # bf16 output
    )

    out = pl.pallas_call(
        qnetwork_kernel,
        out_shape=jax.ShapeDtypeStruct((b_pad, out_pad), jnp.bfloat16),
        grid=grid,
        in_specs=[
            pl.BlockSpec((tb, state_dim), lambda i: (i, 0)),    # streamed x tile
            resident(w1b.shape), resident(b1f.shape),
            resident(w2b.shape), resident(b2f.shape),
            resident(w3b.shape), resident(b3f.shape),
        ],
        out_specs=pl.BlockSpec((tb, out_pad), lambda i: (i, 0)),
        compiler_params=pltpu.CompilerParams(
            dimension_semantics=("parallel",),                  # both TCs on v7x
            vmem_limit_bytes=_vmem_budget_bytes(tb, state_dim, hidden, out_pad)),
        cost_estimate=pl.CostEstimate(
            flops=flops, transcendentals=0, bytes_accessed=bytes_accessed),
    )(x, w1b, b1f, w2b, b2f, w3b, b3f)

    return out  # (b_pad, out_pad) bf16 — let consumers index lazily / fuse


@functools.partial(jax.jit, static_argnames=("tb",))
def qnetwork_forward(state, params, *, tb=512):
    """state: (B, state_dim) f32 -> (B, action_dim) f32 Q-values."""
    B = state.shape[0]
    action_dim = params["w3"].shape[1]
    out = qnetwork_forward_padded(state, params, tb=tb)
    # Under jit the slice + cast fuse into one tiny op (no padded f32 pass).
    return out[:B, :action_dim].astype(jnp.float32)


def init_params(key, state_dim, action_dim, hidden_size):
    """Mimics torch.nn.Linear default init (uniform +-1/sqrt(fan_in)).

    Weights stored transposed: (in_features, out_features); biases as (1, out).
    """
    def linear(key, fan_in, fan_out):
        kw, kb = jax.random.split(key)
        bound = 1.0 / jnp.sqrt(jnp.float32(fan_in))
        w = jax.random.uniform(kw, (fan_in, fan_out), jnp.float32, -bound, bound)
        b = jax.random.uniform(kb, (1, fan_out), jnp.float32, -bound, bound)
        return w, b

    k1, k2, k3 = jax.random.split(key, 3)
    w1, b1 = linear(k1, state_dim, hidden_size)
    w2, b2 = linear(k2, hidden_size, hidden_size)
    w3, b3 = linear(k3, hidden_size, action_dim)
    return {"w1": w1, "b1": b1, "w2": w2, "b2": b2, "w3": w3, "b3": b3}


if __name__ == "__main__":
    BATCH = 1024       # two batch tiles of TB=512 -> even grid (v7x megacore)
    STATE_DIM = 16
    ACTION_DIM = 4
    HIDDEN = 512       # matches the PyTorch module's HIDDEN_SIZE

    key = jax.random.PRNGKey(0)
    k_params, k_state = jax.random.split(key)

    params = init_params(k_params, STATE_DIM, ACTION_DIM, HIDDEN)
    state = jax.random.normal(k_state, (BATCH, STATE_DIM), jnp.float32)

    q_values = qnetwork_forward(state, params, tb=512)
    jax.block_until_ready(q_values)

    # Pure-JAX reference mirroring the kernel's bf16-matmul / f32-accumulate path.
    # TODO(synk): for exact f32 torch parity keep the final layer in f32 weights.
    def ref(x, p):
        w1 = p["w1"].astype(jnp.bfloat16)
        w2 = p["w2"].astype(jnp.bfloat16)
        w3 = p["w3"].astype(jnp.bfloat16)
        h1 = jnp.maximum(
            jnp.dot(x.astype(jnp.bfloat16), w1, preferred_element_type=jnp.float32)
            + p["b1"], 0.0)
        h2 = jnp.maximum(
            jnp.dot(h1.astype(jnp.bfloat16), w2, preferred_element_type=jnp.float32)
            + p["b2"], 0.0)
        return (jnp.dot(h2.astype(jnp.bfloat16), w3, preferred_element_type=jnp.float32)
                + p["b3"])

    expected = ref(state, params)
    assert q_values.shape == (BATCH, ACTION_DIM)
    max_err = float(jnp.max(jnp.abs(q_values - expected)))
    assert jnp.allclose(q_values, expected, atol=2e-2, rtol=2e-2), max_err

    print("KERNEL_OK")
</pallas_src>

<mosaic_0001>
module attributes {stable_mosaic.version = 11 : i64} {
  func.func @qnetwork_kernel(%arg0: i32, %arg1: memref<512x16xf32, #tpu.memory_space<vmem>>, %arg2: memref<16x512xbf16, #tpu.memory_space<vmem>>, %arg3: memref<1x512xf32, #tpu.memory_space<vmem>>, %arg4: memref<512x512xbf16, #tpu.memory_space<vmem>>, %arg5: memref<1x512xf32, #tpu.memory_space<vmem>>, %arg6: memref<512x128xbf16, #tpu.memory_space<vmem>>, %arg7: memref<1x128xf32, #tpu.memory_space<vmem>>, %arg8: memref<512x128xbf16, #tpu.memory_space<vmem>>) attributes {dimension_semantics = [#tpu.dimension_semantics<parallel>], iteration_bounds = array<i64: 2>, scalar_prefetch = 0 : i64, scratch_operands = 0 : i64, tpu.core_type = #tpu.core_type<tc>, window_params = [{transform_indices = @transform_0, window_bounds = array<i64: 512, 16>}, {pipeline_mode = #tpu.pipeline_mode<synchronous>, transform_indices = @transform_1, window_bounds = array<i64: 16, 512>}, {pipeline_mode = #tpu.pipeline_mode<synchronous>, transform_indices = @transform_2, window_bounds = array<i64: 1, 512>}, {pipeline_mode = #tpu.pipeline_mode<synchronous>, transform_indices = @transform_3, window_bounds = array<i64: 512, 512>}, {pipeline_mode = #tpu.pipeline_mode<synchronous>, transform_indices = @transform_4, window_bounds = array<i64: 1, 512>}, {pipeline_mode = #tpu.pipeline_mode<synchronous>, transform_indices = @transform_5, window_bounds = array<i64: 512, 128>}, {pipeline_mode = #tpu.pipeline_mode<synchronous>, transform_indices = @transform_6, window_bounds = array<i64: 1, 128>}, {transform_indices = @transform_7, window_bounds = array<i64: 512, 128>}]} {
    %c0 = arith.constant 0 : index
    %c0_0 = arith.constant 0 : index
    %0 = vector.load %arg1[%c0, %c0_0] : memref<512x16xf32, #tpu.memory_space<vmem>>, vector<512x16xf32>
    %1 = arith.truncf %0 : vector<512x16xf32> to vector<512x16xbf16>
    %c0_1 = arith.constant 0 : index
    %c0_2 = arith.constant 0 : index
    %2 = vector.load %arg2[%c0_1, %c0_2] : memref<16x512xbf16, #tpu.memory_space<vmem>>, vector<16x512xbf16>
    %cst = arith.constant dense<0.000000e+00> : vector<512x512xf32>
    %3 = tpu.matmul %1, %2, %cst {dimension_numbers = #tpu.dot_dimension_numbers<[1], [0], [0], [1], [0, 0, 1, 1], [], []>} : vector<512x16xbf16>, vector<16x512xbf16>, vector<512x512xf32> -> vector<512x512xf32>
    %c0_3 = arith.constant 0 : index
    %c0_4 = arith.constant 0 : index
    %4 = vector.load %arg3[%c0_3, %c0_4] : memref<1x512xf32, #tpu.memory_space<vmem>>, vector<1x512xf32>
    %5 = vector.broadcast %4 : vector<1x512xf32> to vector<512x512xf32>
    %6 = arith.addf %3, %5 : vector<512x512xf32>
    %cst_5 = arith.constant 0.000000e+00 : f32
    %7 = vector.broadcast %cst_5 : f32 to vector<512x512xf32>
    %8 = arith.maximumf %6, %7 : vector<512x512xf32>
    %9 = arith.truncf %8 : vector<512x512xf32> to vector<512x512xbf16>
    %c0_6 = arith.constant 0 : index
    %c0_7 = arith.constant 0 : index
    %10 = vector.load %arg4[%c0_6, %c0_7] : memref<512x512xbf16, #tpu.memory_space<vmem>>, vector<512x512xbf16>
    %cst_8 = arith.constant dense<0.000000e+00> : vector<512x512xf32>
    %11 = tpu.matmul %9, %10, %cst_8 {dimension_numbers = #tpu.dot_dimension_numbers<[1], [0], [0], [1], [0, 0, 1, 1], [], []>} : vector<512x512xbf16>, vector<512x512xbf16>, vector<512x512xf32> -> vector<512x512xf32>
    %c0_9 = arith.constant 0 : index
    %c0_10 = arith.constant 0 : index
    %12 = vector.load %arg5[%c0_9, %c0_10] : memref<1x512xf32, #tpu.memory_space<vmem>>, vector<1x512xf32>
    %13 = vector.broadcast %12 : vector<1x512xf32> to vector<512x512xf32>
    %14 = arith.addf %11, %13 : vector<512x512xf32>
    %cst_11 = arith.constant 0.000000e+00 : f32
    %15 = vector.broadcast %cst_11 : f32 to vector<512x512xf32>
    %16 = arith.maximumf %14, %15 : vector<512x512xf32>
    %17 = arith.truncf %16 : vector<512x512xf32> to vector<512x512xbf16>
    %c0_12 = arith.constant 0 : index
    %c0_13 = arith.constant 0 : index
    %18 = vector.load %arg6[%c0_12, %c0_13] : memref<512x128xbf16, #tpu.memory_space<vmem>>, vector<512x128xbf16>
    %cst_14 = arith.constant dense<0.000000e+00> : vector<512x128xf32>
    %19 = tpu.matmul %17, %18, %cst_14 {dimension_numbers = #tpu.dot_dimension_numbers<[1], [0], [0], [1], [0, 0, 1, 1], [], []>} : vector<512x512xbf16>, vector<512x128xbf16>, vector<512x128xf32> -> vector<512x128xf32>
    %c0_15 = arith.constant 0 : index
    %c0_16 = arith.constant 0 : index
    %20 = vector.load %arg7[%c0_15, %c0_16] : memref<1x128xf32, #tpu.memory_space<vmem>>, vector<1x128xf32>
    %21 = vector.broadcast %20 : vector<1x128xf32> to vector<512x128xf32>
    %22 = arith.addf %19, %21 : vector<512x128xf32>
    %23 = arith.truncf %22 : vector<512x128xf32> to vector<512x128xbf16>
    %c0_17 = arith.constant 0 : index
    %c0_18 = arith.constant 0 : index
    %24 = vector.load %arg8[%c0_17, %c0_18] : memref<512x128xbf16, #tpu.memory_space<vmem>>, vector<512x128xbf16>
    tpu.vector_store %arg8[%c0_17, %c0_18], %23 {strides = array<i32>} : memref<512x128xbf16, #tpu.memory_space<vmem>>, vector<512x128xbf16>,
    return
  }
  func.func @transform_0(%arg0: i32) -> (i32, i32) {
    %c0_i32 = arith.constant 0 : i32
    %c0_i32_0 = arith.constant 0 : i32
    return %arg0, %c0_i32 : i32, i32
  }
  func.func @transform_1(%arg0: i32) -> (i32, i32) {
    %c0_i32 = arith.constant 0 : i32
    %c0_i32_0 = arith.constant 0 : i32
    %c0_i32_1 = arith.constant 0 : i32
    return %c0_i32, %c0_i32_0 : i32, i32
  }
  func.func @transform_2(%arg0: i32) -> (i32, i32) {
    %c0_i32 = arith.constant 0 : i32
    %c0_i32_0 = arith.constant 0 : i32
    %c0_i32_1 = arith.constant 0 : i32
    return %c0_i32, %c0_i32_0 : i32, i32
  }
  func.func @transform_3(%arg0: i32) -> (i32, i32) {
    %c0_i32 = arith.constant 0 : i32
    %c0_i32_0 = arith.constant 0 : i32
    %c0_i32_1 = arith.constant 0 : i32
    return %c0_i32, %c0_i32_0 : i32, i32
  }
  func.func @transform_4(%arg0: i32) -> (i32, i32) {
    %c0_i32 = arith.constant 0 : i32
    %c0_i32_0 = arith.constant 0 : i32
    %c0_i32_1 = arith.constant 0 : i32
    return %c0_i32, %c0_i32_0 : i32, i32
  }
  func.func @transform_5(%arg0: i32) -> (i32, i32) {
    %c0_i32 = arith.constant 0 : i32
    %c0_i32_0 = arith.constant 0 : i32
    %c0_i32_1 = arith.constant 0 : i32
    return %c0_i32, %c0_i32_0 : i32, i32
  }
  func.func @transform_6(%arg0: i32) -> (i32, i32) {
    %c0_i32 = arith.constant 0 : i32
    %c0_i32_0 = arith.constant 0 : i32
    %c0_i32_1 = arith.constant 0 : i32
    return %c0_i32, %c0_i32_0 : i32, i32
  }
  func.func @transform_7(%arg0: i32) -> (i32, i32) {
    %c0_i32 = arith.constant 0 : i32
    %c0_i32_0 = arith.constant 0 : i32
    return %arg0, %c0_i32 : i32, i32
  }
}

</mosaic_0001>

<llo_original>
// kernel: qnetwork_forward.1
$region0: #{qnetwork_forward.1}
  #allocation0 [shape = 'u32[]', space=smem, size = 0x4, offset = 0x4, fixed_abs, tag = 'smem constant byte address 0x4 - core index']
  #allocation1 [shape = 'u32[144,128]{1,0:T(1,128)}', space=vmem, size = 0x12000, scoped, tag = 'internal scratch']
  %s0 = inlined_call_operand.vmem [shape: f32[1024,16], index: 0, kind: input, shape index: {}]
  %s1 = inlined_call_operand.vmem [shape: bf16[16,512], index: 1, kind: input, shape index: {}]
  %s2 = inlined_call_operand.vmem [shape: f32[1,512], index: 2, kind: input, shape index: {}]
  %s3 = inlined_call_operand.vmem [shape: bf16[512,512], index: 3, kind: input, shape index: {}]
  %s4 = inlined_call_operand.vmem [shape: f32[1,512], index: 4, kind: input, shape index: {}]
  %s5 = inlined_call_operand.vmem [shape: bf16[512,128], index: 5, kind: input, shape index: {}]
  %s6 = inlined_call_operand.vmem [shape: f32[1,128], index: 6, kind: input, shape index: {}]
  %s7 = inlined_call_operand.vmem [shape: bf16[1024,128], index: 7, kind: output, shape index: {}]
  %s8 = sld [smem:[#allocation0]]
  $region61: #{qnetwork_forward.1} parent=0
    _
  %s10 = ssub.s32 1, %s8
  %s11 = scalar_select 0, %s10, %s8
  loop: start=0, step=1, limit=4
  $region2: #{qnetwork_forward.1} parent=0 // loop_pre_header
    _
  $region3: #{qnetwork_forward.1} parent=0 // loop_header
    %s13 = sphi 0, %s17
    %p14 = scmp.ge.s32.totalorder %s13, 4
    %s23 = sphi 0, %s25
    %s26 = sphi 0, %s23
    %s27 = sphi 0, %s26
    %s43 = sphi 0, %s27
    %s47 = sphi 0, %s47
    %s49 = sphi 0, %s47
    %s50 = sphi 0, %s49
    %s64 = sphi 0, %s50
    %s68 = sphi 0, %s68
    %s70 = sphi 0, %s68
    %s71 = sphi 0, %s70
    %s85 = sphi 0, %s71
    %s89 = sphi 0, %s89
    %s91 = sphi 0, %s89
    %s92 = sphi 0, %s91
    %s106 = sphi 0, %s92
    %s110 = sphi 0, %s110
    %s112 = sphi 0, %s110
    %s113 = sphi 0, %s112
    %s127 = sphi 0, %s113
    %s131 = sphi 0, %s131
    %s133 = sphi 0, %s131
    %s134 = sphi 0, %s133
    %s148 = sphi 0, %s134
    %s152 = sphi 0, %s152
    %s154 = sphi 0, %s152
    %s155 = sphi 0, %s154
    %s169 = sphi 0, %s155
    %s175 = sphi 0, %s177
    %s178 = sphi 0, %s175
    %s179 = sphi 0, %s178
    %s195 = sphi 0, %s179
  $region4: #{qnetwork_forward.1} parent=0 // loop_header_branch
    %16 = sbr.rel (%p14) target = $region8
  $region5: #{qnetwork_forward.1} parent=0 // loop_body
    %s18 = ssub.s32 %s13, 1
    %s19 = ssub.s32 %s13, 2
    %s20 = sadd.s32 %s13, 1
    %s21 = ssub.s32 %s13, %s20
    %p22 = scmp.eq.s32.totalorder %s21, 0
    %s24 = sadd.s32 %s23, 1
    %s25 = scalar_select %p22, %s23, %s24
    %p28 = pneg %p22
    %p29 = scmp.eq.s32.totalorder %s13, 1
    %p30 = por %p28, %p29
    %p31 = scmp.ne.s32.totalorder %s23, %s26
    %p32 = scmp.eq.s32.totalorder %s13, 0
    %p33 = por %p31, %p32
    %p34 = scmp.ne.s32.totalorder %s23, %s26
    %p35 = scmp.eq.s32.totalorder %s18, 1
    %p36 = por %p34, %p35
    %p37 = scmp.ne.s32.totalorder %s26, %s27
    %p38 = scmp.eq.s32.totalorder %s18, 0
    %p39 = por %p37, %p38
    %p40 = scmp.ne.s32.totalorder %s26, %s27
    %p41 = scmp.eq.s32.totalorder %s19, 1
    %p42 = por %p40, %p41
    %p44 = scmp.ne.s32.totalorder %s27, %s43
    %p45 = scmp.eq.s32.totalorder %s19, 0
    %p46 = por %p44, %p45
    %s48 = sadd.s32 %s47, 1
    %p51 = scmp.eq.s32.totalorder %s13, 1
    %p52 = scmp.ne.s32.totalorder %s47, %s49
    %p53 = scmp.eq.s32.totalorder %s13, 0
    %p54 = por %p52, %p53
    %p55 = scmp.ne.s32.totalorder %s47, %s49
    %p56 = scmp.eq.s32.totalorder %s18, 1
    %p57 = por %p55, %p56
    %p58 = scmp.ne.s32.totalorder %s49, %s50
    %p59 = scmp.eq.s32.totalorder %s18, 0
    %p60 = por %p58, %p59
    %p61 = scmp.ne.s32.totalorder %s49, %s50
    %p62 = scmp.eq.s32.totalorder %s19, 1
    %p63 = por %p61, %p62
    %p65 = scmp.ne.s32.totalorder %s50, %s64
    %p66 = scmp.eq.s32.totalorder %s19, 0
    %p67 = por %p65, %p66
    %s69 = sadd.s32 %s68, 1
    %p72 = scmp.eq.s32.totalorder %s13, 1
    %p73 = scmp.ne.s32.totalorder %s68, %s70
    %p74 = scmp.eq.s32.totalorder %s13, 0
    %p75 = por %p73, %p74
    %p76 = scmp.ne.s32.totalorder %s68, %s70
    %p77 = scmp.eq.s32.totalorder %s18, 1
    %p78 = por %p76, %p77
    %p79 = scmp.ne.s32.totalorder %s70, %s71
    %p80 = scmp.eq.s32.totalorder %s18, 0
    %p81 = por %p79, %p80
    %p82 = scmp.ne.s32.totalorder %s70, %s71
    %p83 = scmp.eq.s32.totalorder %s19, 1
    %p84 = por %p82, %p83
    %p86 = scmp.ne.s32.totalorder %s71, %s85
    %p87 = scmp.eq.s32.totalorder %s19, 0
    %p88 = por %p86, %p87
    %s90 = sadd.s32 %s89, 1
    %p93 = scmp.eq.s32.totalorder %s13, 1
    %p94 = scmp.ne.s32.totalorder %s89, %s91
    %p95 = scmp.eq.s32.totalorder %s13, 0
    %p96 = por %p94, %p95
    %p97 = scmp.ne.s32.totalorder %s89, %s91
    %p98 = scmp.eq.s32.totalorder %s18, 1
    %p99 = por %p97, %p98
    %p100 = scmp.ne.s32.totalorder %s91, %s92
    %p101 = scmp.eq.s32.totalorder %s18, 0
    %p102 = por %p100, %p101
    %p103 = scmp.ne.s32.totalorder %s91, %s92
    %p104 = scmp.eq.s32.totalorder %s19, 1
    %p105 = por %p103, %p104
    %p107 = scmp.ne.s32.totalorder %s92, %s106
    %p108 = scmp.eq.s32.totalorder %s19, 0
    %p109 = por %p107, %p108
    %s111 = sadd.s32 %s110, 1
    %p114 = scmp.eq.s32.totalorder %s13, 1
    %p115 = scmp.ne.s32.totalorder %s110, %s112
    %p116 = scmp.eq.s32.totalorder %s13, 0
    %p117 = por %p115, %p116
    %p118 = scmp.ne.s32.totalorder %s110, %s112
    %p119 = scmp.eq.s32.totalorder %s18, 1
    %p120 = por %p118, %p119
    %p121 = scmp.ne.s32.totalorder %s112, %s113
    %p122 = scmp.eq.s32.totalorder %s18, 0
    %p123 = por %p121, %p122
    %p124 = scmp.ne.s32.totalorder %s112, %s113
    %p125 = scmp.eq.s32.totalorder %s19, 1
    %p126 = por %p124, %p125
    %p128 = scmp.ne.s32.totalorder %s113, %s127
    %p129 = scmp.eq.s32.totalorder %s19, 0
    %p130 = por %p128, %p129
    %s132 = sadd.s32 %s131, 1
    %p135 = scmp.eq.s32.totalorder %s13, 1
    %p136 = scmp.ne.s32.totalorder %s131, %s133
    %p137 = scmp.eq.s32.totalorder %s13, 0
    %p138 = por %p136, %p137
    %p139 = scmp.ne.s32.totalorder %s131, %s133
    %p140 = scmp.eq.s32.totalorder %s18, 1
    %p141 = por %p139, %p140
    %p142 = scmp.ne.s32.totalorder %s133, %s134
    %p143 = scmp.eq.s32.totalorder %s18, 0
    %p144 = por %p142, %p143
    %p145 = scmp.ne.s32.totalorder %s133, %s134
    %p146 = scmp.eq.s32.totalorder %s19, 1
    %p147 = por %p145, %p146
    %p149 = scmp.ne.s32.totalorder %s134, %s148
    %p150 = scmp.eq.s32.totalorder %s19, 0
    %p151 = por %p149, %p150
    %s153 = sadd.s32 %s152, 1
    %p156 = scmp.eq.s32.totalorder %s13, 1
    %p157 = scmp.ne.s32.totalorder %s152, %s154
    %p158 = scmp.eq.s32.totalorder %s13, 0
    %p159 = por %p157, %p158
    %p160 = scmp.ne.s32.totalorder %s152, %s154
    %p161 = scmp.eq.s32.totalorder %s18, 1
    %p162 = por %p160, %p161
    %p163 = scmp.ne.s32.totalorder %s154, %s155
    %p164 = scmp.eq.s32.totalorder %s18, 0
    %p165 = por %p163, %p164
    %p166 = scmp.ne.s32.totalorder %s154, %s155
    %p167 = scmp.eq.s32.totalorder %s19, 1
    %p168 = por %p166, %p167
    %p170 = scmp.ne.s32.totalorder %s155, %s169
    %p171 = scmp.eq.s32.totalorder %s19, 0
    %p172 = por %p170, %p171
    %s173 = ssub.s32 %s13, %s20
    %p174 = scmp.eq.s32.totalorder %s173, 0
    %s176 = sadd.s32 %s175, 1
    %s177 = scalar_select %p174, %s175, %s176
    %p180 = pneg %p174
    %p181 = scmp.eq.s32.totalorder %s13, 1
    %p182 = por %p180, %p181
    %p183 = scmp.ne.s32.totalorder %s175, %s178
    %p184 = scmp.eq.s32.totalorder %s13, 0
    %p185 = por %p183, %p184
    %p186 = scmp.ne.s32.totalorder %s175, %s178
    %p187 = scmp.eq.s32.totalorder %s18, 1
    %p188 = por %p186, %p187
    %p189 = scmp.ne.s32.totalorder %s178, %s179
    %p190 = scmp.eq.s32.totalorder %s18, 0
    %p191 = por %p189, %p190
    %p192 = scmp.ne.s32.totalorder %s178, %s179
    %p193 = scmp.eq.s32.totalorder %s19, 1
    %p194 = por %p192, %p193
    %p196 = scmp.ne.s32.totalorder %s179, %s195
    %p197 = scmp.eq.s32.totalorder %s19, 0
    %p198 = por %p196, %p197
    %p199 = scmp.le.s32.totalorder 1, %s13
    %p200 = scmp.lt.s32.totalorder %s13, 3
    %p201 = pnand %p199, %p200
    %p202 = pneg %p201
    // Predicated region
    $region9: #{qnetwork_forward.1} parent=5 // pred_check
      _
    $region10: #{qnetwork_forward.1} parent=5 // pred_check_branch
      %204 = sbr.rel (%p201) target = $region12
    $region11: #{qnetwork_forward.1} parent=5 // pred_region
      %s205 = ssub.s32 %s13, 1
      // Predicated region
      $region13: #{qnetwork_forward.1} parent=11 // pred_check
        %p206 = pneg %p60
      $region14: #{qnetwork_forward.1} parent=11 // pred_check_branch
        %208 = sbr.rel (%p206) target = $region16
      $region15: #{qnetwork_forward.1} parent=11 // pred_region
        _
      $region16: #{qnetwork_forward.1} parent=11 // pred_fallthru
        _
      // Predicated region
      $region17: #{qnetwork_forward.1} parent=11 // pred_check
        %p209 = pneg %p81
      $region18: #{qnetwork_forward.1} parent=11 // pred_check_branch
        %211 = sbr.rel (%p209) target = $region20
      $region19: #{qnetwork_forward.1} parent=11 // pred_region
        _
      $region20: #{qnetwork_forward.1} parent=11 // pred_fallthru
        _
      // Predicated region
      $region21: #{qnetwork_forward.1} parent=11 // pred_check
        %p212 = pneg %p102
      $region22: #{qnetwork_forward.1} parent=11 // pred_check_branch
        %214 = sbr.rel (%p212) target = $region24
      $region23: #{qnetwork_forward.1} parent=11 // pred_region
        _
      $region24: #{qnetwork_forward.1} parent=11 // pred_fallthru
        _
      // Predicated region
      $region25: #{qnetwork_forward.1} parent=11 // pred_check
        %p215 = pneg %p123
      $region26: #{qnetwork_forward.1} parent=11 // pred_check_branch
        %217 = sbr.rel (%p215) target = $region28
      $region27: #{qnetwork_forward.1} parent=11 // pred_region
        _
      $region28: #{qnetwork_forward.1} parent=11 // pred_fallthru
        _
      // Predicated region
      $region29: #{qnetwork_forward.1} parent=11 // pred_check
        %p218 = pneg %p144
      $region30: #{qnetwork_forward.1} parent=11 // pred_check_branch
        %220 = sbr.rel (%p218) target = $region32
      $region31: #{qnetwork_forward.1} parent=11 // pred_region
        _
      $region32: #{qnetwork_forward.1} parent=11 // pred_fallthru
        _
      // Predicated region
      $region33: #{qnetwork_forward.1} parent=11 // pred_check
        %p221 = pneg %p165
      $region34: #{qnetwork_forward.1} parent=11 // pred_check_branch
        %223 = sbr.rel (%p221) target = $region36
      $region35: #{qnetwork_forward.1} parent=11 // pred_region
        _
      $region36: #{qnetwork_forward.1} parent=11 // pred_fallthru
        _
    $region12: #{qnetwork_forward.1} parent=5 // pred_fallthru
      _
    %p224 = scmp.lt.s32.totalorder %s13, 2
    // Predicated region
    $region37: #{qnetwork_forward.1} parent=5 // pred_check
      %p225 = pneg %p224
    $region38: #{qnetwork_forward.1} parent=5 // pred_check_branch
      %227 = sbr.rel (%p225) target = $region40
    $region39: #{qnetwork_forward.1} parent=5 // pred_region
      // Predicated region
      $region41: #{qnetwork_forward.1} parent=39 // pred_check
        %p228 = pneg %p33
      $region42: #{qnetwork_forward.1} parent=39 // pred_check_branch
        %230 = sbr.rel (%p228) target = $region44
      $region43: #{qnetwork_forward.1} parent=39 // pred_region
        %s231 = smul.u32 64, %s13
        %p232 = scmp.lt.s32.totalorder %s231, 127
        %s233 = scalar_select %p232, %s231, 127
        %s234 = smul.addr %s233, 8
        %s235 = scalar_lea.vmem %s0, %s234
        %s236 = smul.u32 64, %s13
      $region44: #{qnetwork_forward.1} parent=39 // pred_fallthru
        _
    $region40: #{qnetwork_forward.1} parent=5 // pred_fallthru
      _
    %p237 = scmp.le.s32.totalorder 1, %s13
    %p238 = scmp.lt.s32.totalorder %s13, 3
    %p239 = pnand %p237, %p238
    %p240 = pneg %p239
    // Predicated region
    $region45: #{qnetwork_forward.1} parent=5 // pred_check
      _
    $region46: #{qnetwork_forward.1} parent=5 // pred_check_branch
      %242 = sbr.rel (%p239) target = $region48
    $region47: #{qnetwork_forward.1} parent=5 // pred_region
      %s243 = ssub.s32 %s13, 1
      %s244 = smul.u32 64, %s18
      %p245 = scmp.lt.s32.totalorder %s244, 127
      %s246 = scalar_select %p245, %s244, 127
      %s247 = smul.addr %s246, 8
      %s248 = scalar_lea.vmem %s0, %s247
      %p249 = pneg %p39
      %p250 = pneg %p36
      %p251 = pneg %p60
      %p252 = pneg %p57
      %p253 = pneg %p81
      %p254 = pneg %p78
      %p255 = pneg %p102
      %p256 = pneg %p99
      %p257 = pneg %p123
      %p258 = pneg %p120
      %p259 = pneg %p144
      %p260 = pneg %p141
      %p261 = pneg %p165
      %p262 = pneg %p162
      %p263 = pneg %p191
      %p264 = pneg %p188
      %s265 = smul.u32 64, %s18
      %p266 = scmp.lt.s32.totalorder %s265, 127
      %s267 = scalar_select %p266, %s265, 127
      %s268 = smul.addr %s267, 4
      %s269 = scalar_lea.vmem %s7, %s268
      %s270 = smul.u32 64, %s18
      %p271 = scmp.lt.s32.totalorder %s270, 127
      %s272 = scalar_select %p271, %s270, 127
      %s273 = smul.addr %s272, 8
      %s274 = scalar_lea.vmem %s0, %s273
      %s275 = smul.u32 64, %s18
      %s276 = smul.u32 64, %s18
      %p277 = scmp.lt.s32.totalorder %s276, 127
      %s278 = scalar_select %p277, %s276, 127
      %s279 = smul.addr %s278, 4
      %s280 = scalar_lea.vmem %s7, %s279
      %s281 = smul.u32 64, %s18
      %v283 = vld [vmem:[%s274] sm:$0xff]
      %v284 = vld [vmem:[%s274 + $0x8] sm:$0xff]
      %v285 = vld [vmem:[%s274 + $0x10] sm:$0xff]
      %v286 = vld [vmem:[%s274 + $0x18] sm:$0xff]
      %v287 = vld [vmem:[%s274 + $0x20] sm:$0xff]
      %v288 = vld [vmem:[%s274 + $0x28] sm:$0xff]
      %v289 = vld [vmem:[%s274 + $0x30] sm:$0xff]
      %v290 = vld [vmem:[%s274 + $0x38] sm:$0xff]
      %v291 = vld [vmem:[%s274 + $0x40] sm:$0xff]
      %v292 = vld [vmem:[%s274 + $0x48] sm:$0xff]
      %v293 = vld [vmem:[%s274 + $0x50] sm:$0xff]
      %v294 = vld [vmem:[%s274 + $0x58] sm:$0xff]
      %v295 = vld [vmem:[%s274 + $0x60] sm:$0xff]
      %v296 = vld [vmem:[%s274 + $0x68] sm:$0xff]
      %v297 = vld [vmem:[%s274 + $0x70] sm:$0xff]
      %v298 = vld [vmem:[%s274 + $0x78] sm:$0xff]
      %v299 = vld [vmem:[%s274 + $0x80] sm:$0xff]
      %v300 = vld [vmem:[%s274 + $0x88] sm:$0xff]
      %v301 = vld [vmem:[%s274 + $0x90] sm:$0xff]
      %v302 = vld [vmem:[%s274 + $0x98] sm:$0xff]
      %v303 = vld [vmem:[%s274 + $0xa0] sm:$0xff]
      %v304 = vld [vmem:[%s274 + $0xa8] sm:$0xff]
      %v305 = vld [vmem:[%s274 + $0xb0] sm:$0xff]
      %v306 = vld [vmem:[%s274 + $0xb8] sm:$0xff]
      %v307 = vld [vmem:[%s274 + $0xc0] sm:$0xff]
      %v308 = vld [vmem:[%s274 + $0xc8] sm:$0xff]
      %v309 = vld [vmem:[%s274 + $0xd0] sm:$0xff]
      %v310 = vld [vmem:[%s274 + $0xd8] sm:$0xff]
      %v311 = vld [vmem:[%s274 + $0xe0] sm:$0xff]
      %v312 = vld [vmem:[%s274 + $0xe8] sm:$0xff]
      %v313 = vld [vmem:[%s274 + $0xf0] sm:$0xff]
      %v314 = vld [vmem:[%s274 + $0xf8] sm:$0xff]
      %v315 = vld [vmem:[%s274 + $0x100] sm:$0xff]
      %v316 = vld [vmem:[%s274 + $0x108] sm:$0xff]
      %v317 = vld [vmem:[%s274 + $0x110] sm:$0xff]
      %v318 = vld [vmem:[%s274 + $0x118] sm:$0xff]
      %v319 = vld [vmem:[%s274 + $0x120] sm:$0xff]
      %v320 = vld [vmem:[%s274 + $0x128] sm:$0xff]
      %v321 = vld [vmem:[%s274 + $0x130] sm:$0xff]
      %v322 = vld [vmem:[%s274 + $0x138] sm:$0xff]
      %v323 = vld [vmem:[%s274 + $0x140] sm:$0xff]
      %v324 = vld [vmem:[%s274 + $0x148] sm:$0xff]
      %v325 = vld [vmem:[%s274 + $0x150] sm:$0xff]
      %v326 = vld [vmem:[%s274 + $0x158] sm:$0xff]
      %v327 = vld [vmem:[%s274 + $0x160] sm:$0xff]
      %v328 = vld [vmem:[%s274 + $0x168] sm:$0xff]
      %v329 = vld [vmem:[%s274 + $0x170] sm:$0xff]
      %v330 = vld [vmem:[%s274 + $0x178] sm:$0xff]
      %v331 = vld [vmem:[%s274 + $0x180] sm:$0xff]
      %v332 = vld [vmem:[%s274 + $0x188] sm:$0xff]
      %v333 = vld [vmem:[%s274 + $0x190] sm:$0xff]
      %v334 = vld [vmem:[%s274 + $0x198] sm:$0xff]
      %v335 = vld [vmem:[%s274 + $0x1a0] sm:$0xff]
      %v336 = vld [vmem:[%s274 + $0x1a8] sm:$0xff]
      %v337 = vld [vmem:[%s274 + $0x1b0] sm:$0xff]
      %v338 = vld [vmem:[%s274 + $0x1b8] sm:$0xff]
      %v339 = vld [vmem:[%s274 + $0x1c0] sm:$0xff]
      %v340 = vld [vmem:[%s274 + $0x1c8] sm:$0xff]
      %v341 = vld [vmem:[%s274 + $0x1d0] sm:$0xff]
      %v342 = vld [vmem:[%s274 + $0x1d8] sm:$0xff]
      %v343 = vld [vmem:[%s274 + $0x1e0] sm:$0xff]
      %v344 = vld [vmem:[%s274 + $0x1e8] sm:$0xff]
      %v345 = vld [vmem:[%s274 + $0x1f0] sm:$0xff]
      %v346 = vld [vmem:[%s274 + $0x1f8] sm:$0xff]
      %v347 = vpack.c.bf16 %v284, %v283
      %v348 = vpack.c.bf16 %v286, %v285
      %v349 = vpack.c.bf16 %v288, %v287
      %v350 = vpack.c.bf16 %v290, %v289
      %v351 = vpack.c.bf16 %v292, %v291
      %v352 = vpack.c.bf16 %v294, %v293
      %v353 = vpack.c.bf16 %v296, %v295
      %v354 = vpack.c.bf16 %v298, %v297
      %v355 = vpack.c.bf16 %v300, %v299
      %v356 = vpack.c.bf16 %v302, %v301
      %v357 = vpack.c.bf16 %v304, %v303
      %v358 = vpack.c.bf16 %v306, %v305
      %v359 = vpack.c.bf16 %v308, %v307
      %v360 = vpack.c.bf16 %v310, %v309
      %v361 = vpack.c.bf16 %v312, %v311
      %v362 = vpack.c.bf16 %v314, %v313
      %v363 = vpack.c.bf16 %v316, %v315
      %v364 = vpack.c.bf16 %v318, %v317
      %v365 = vpack.c.bf16 %v320, %v319
      %v366 = vpack.c.bf16 %v322, %v321
      %v367 = vpack.c.bf16 %v324, %v323
      %v368 = vpack.c.bf16 %v326, %v325
      %v369 = vpack.c.bf16 %v328, %v327
      %v370 = vpack.c.bf16 %v330, %v329
      %v371 = vpack.c.bf16 %v332, %v331
      %v372 = vpack.c.bf16 %v334, %v333
      %v373 = vpack.c.bf16 %v336, %v335
      %v374 = vpack.c.bf16 %v338, %v337
      %v375 = vpack.c.bf16 %v340, %v339
      %v376 = vpack.c.bf16 %v342, %v341
      %v377 = vpack.c.bf16 %v344, %v343
      %v378 = vpack.c.bf16 %v346, %v345
      %v379 = vld [vmem:[%s1] sm:$0xff]
      %v380 = vld [vmem:[%s1 + $0x8] sm:$0xff]
      %v381 = vld [vmem:[%s1 + $0x10] sm:$0xff]
      %v382 = vld [vmem:[%s1 + $0x18] sm:$0xff]
      %v383 = vld [vmem:[%s2] sm:$0xf]
      %v385 = vlaneseq
      %v386 = vshrl.u32 %v385, 7
      %v387 = vsub.s32 0, %v386
      %v388 = vrot.slane %v383, %v387
      %v389 = vlaneseq
      %v390 = vshrl.u32 %v389, 7
      %v391 = vsub.s32 1, %v390
      %v392 = vrot.slane %v383, %v391
      %v393 = vlaneseq
      %v394 = vshrl.u32 %v393, 7
      %v395 = vsub.s32 2, %v394
      %v396 = vrot.slane %v383, %v395
      %v397 = vlaneseq
      %v398 = vshrl.u32 %v397, 7
      %v399 = vsub.s32 3, %v398
      %v400 = vrot.slane %v383, %v399
      %v409 = vunpack.c.l.b16 %v379
      %v410 = vunpack.c.h.b16 %v379
      %v411 = vunpack.c.l.b16 %v380
      %v412 = vunpack.c.h.b16 %v380
      %v413 = vunpack.c.l.b16 %v381
      %v414 = vunpack.c.h.b16 %v381
      %v415 = vunpack.c.l.b16 %v382
      %v416 = vunpack.c.h.b16 %v382
      %v417 = vpack.c.b16 %v413, %v409
      %v418 = vpack.c.b16 %v414, %v410
      %v419 = vpack.c.b16 %v415, %v411
      %v420 = vpack.c.b16 %v416, %v412
      %vm425 = vcmask 130048
      %v427 = vsel %vm425, %v347, 0
      %v430 = vsel %vm425, %v348, 0
      %v433 = vsel %vm425, %v349, 0
      %v436 = vsel %vm425, %v350, 0
      %v439 = vsel %vm425, %v351, 0
      %v442 = vsel %vm425, %v352, 0
      %v445 = vsel %vm425, %v353, 0
      %v448 = vsel %vm425, %v354, 0
      %v451 = vsel %vm425, %v355, 0
      %v454 = vsel %vm425, %v356, 0
      %v457 = vsel %vm425, %v357, 0
      %v460 = vsel %vm425, %v358, 0
      %v463 = vsel %vm425, %v359, 0
      %v466 = vsel %vm425, %v360, 0
      %v469 = vsel %vm425, %v361, 0
      %v472 = vsel %vm425, %v362, 0
      %v475 = vsel %vm425, %v363, 0
      %v478 = vsel %vm425, %v364, 0
      %v481 = vsel %vm425, %v365, 0
      %v484 = vsel %vm425, %v366, 0
      %v487 = vsel %vm425, %v367, 0
      %v490 = vsel %vm425, %v368, 0
      %v493 = vsel %vm425, %v369, 0
      %v496 = vsel %vm425, %v370, 0
      %v499 = vsel %vm425, %v371, 0
      %v502 = vsel %vm425, %v372, 0
      %v505 = vsel %vm425, %v373, 0
      %v508 = vsel %vm425, %v374, 0
      %v511 = vsel %vm425, %v375, 0
      %v514 = vsel %vm425, %v376, 0
      %v517 = vsel %vm425, %v377, 0
      %v520 = vsel %vm425, %v378, 0
      %522 = vmatprep.subr.bf16.mxu0 %v418
      %523 = vmatpush1.bf16.msra.mxu0 %v417
      %524 = vmatprep.subr.bf16.mxu0 0
      %525 = vmatpush1.bf16.msra.mxu0 0
      %526 = vmatprep.subr.bf16.mxu0 0
      %527 = vmatpush1.bf16.msra.mxu0 0
      %528 = vmatprep.subr.bf16.mxu0 0
      %529 = vmatpush1.bf16.msra.mxu0 0
      %530 = vmatprep.subr.bf16.mxu0 0
      %531 = vmatpush1.bf16.msra.mxu0 0
      %532 = vmatprep.subr.bf16.mxu0 0
      %533 = vmatpush1.bf16.msra.mxu0 0
      %534 = vmatprep.subr.bf16.mxu0 0
      %535 = vmatpush1.bf16.msra.mxu0 0
      %536 = vmatprep.subr.bf16.mxu0 0
      %537 = vmatpush1.bf16.msra.mxu0 0
      %538 = vmatprep.subr.bf16.mxu0 0
      %539 = vmatpush1.bf16.msra.mxu0 0
      %540 = vmatprep.subr.bf16.mxu0 0
      %541 = vmatpush1.bf16.msra.mxu0 0
      %542 = vmatprep.subr.bf16.mxu0 0
      %543 = vmatpush1.bf16.msra.mxu0 0
      %544 = vmatprep.subr.bf16.mxu0 0
      %545 = vmatpush1.bf16.msra.mxu0 0
      %546 = vmatprep.subr.bf16.mxu0 0
      %547 = vmatpush1.bf16.msra.mxu0 0
      %548 = vmatprep.subr.bf16.mxu0 0
      %549 = vmatpush1.bf16.msra.mxu0 0
      %550 = vmatprep.subr.bf16.mxu0 0
      %551 = vmatpush1.bf16.msra.mxu0 0
      %552 = vmatprep.subr.bf16.mxu0 0
      %553 = vmatpush1.bf16.msra.mxu0 0
      %554 = vmatprep.mubr.bf16.mxu0 0
      %555 = vmatmul.mubr.bf16.gmra.mrb[0].mxu0 %v427
      %v556 = vpop.f32.mrb[0].mxu0
      %v557 = vadd.f32 %v388, %v556
      %v558 = vpop.f32.mrb[0].mxu0
      %v559 = vadd.f32 %v392, %v558
      %v560 = vpop.f32.mrb[0].mxu0
      %v561 = vadd.f32 %v388, %v560
      %v562 = vpop.f32.mrb[0].mxu0
      %v563 = vadd.f32 %v392, %v562
      %564 = vmatprep.mubr.bf16.mxu0 0
      %565 = vmatmul.mubr.bf16.gmra.mrb[0].mxu0 %v430
      %v566 = vpop.f32.mrb[0].mxu0
      %v567 = vadd.f32 %v388, %v566
      %v568 = vpop.f32.mrb[0].mxu0
      %v569 = vadd.f32 %v392, %v568
      %v570 = vpop.f32.mrb[0].mxu0
      %v571 = vadd.f32 %v388, %v570
      %v572 = vpop.f32.mrb[0].mxu0
      %v573 = vadd.f32 %v392, %v572
      %574 = vmatprep.mubr.bf16.mxu0 0
      %575 = vmatmul.mubr.bf16.gmra.mrb[0].mxu0 %v433
      %v576 = vpop.f32.mrb[0].mxu0
      %v577 = vadd.f32 %v388, %v576
      %v578 = vpop.f32.mrb[0].mxu0
      %v579 = vadd.f32 %v392, %v578
      %v580 = vpop.f32.mrb[0].mxu0
      %v581 = vadd.f32 %v388, %v580
      %v582 = vpop.f32.mrb[0].mxu0
      %v583 = vadd.f32 %v392, %v582
      %584 = vmatprep.mubr.bf16.mxu0 0
      %585 = vmatmul.mubr.bf16.gmra.mrb[0].mxu0 %v436
      %v586 = vpop.f32.mrb[0].mxu0
      %v587 = vadd.f32 %v388, %v586
      %v588 = vpop.f32.mrb[0].mxu0
      %v589 = vadd.f32 %v392, %v588
      %v590 = vpop.f32.mrb[0].mxu0
      %v591 = vadd.f32 %v388, %v590
      %v592 = vpop.f32.mrb[0].mxu0
      %v593 = vadd.f32 %v392, %v592
      %594 = vmatprep.mubr.bf16.mxu0 0
      %595 = vmatmul.mubr.bf16.gmra.mrb[0].mxu0 %v439
      %v596 = vpop.f32.mrb[0].mxu0
      %v597 = vadd.f32 %v388, %v596
      %v598 = vpop.f32.mrb[0].mxu0
      %v599 = vadd.f32 %v392, %v598
      %v600 = vpop.f32.mrb[0].mxu0
      %v601 = vadd.f32 %v388, %v600
      %v602 = vpop.f32.mrb[0].mxu0
      %v603 = vadd.f32 %v392, %v602
      %604 = vmatprep.mubr.bf16.mxu0 0
      %605 = vmatmul.mubr.bf16.gmra.mrb[0].mxu0 %v442
      %v606 = vpop.f32.mrb[0].mxu0
      %v607 = vadd.f32 %v388, %v606
      %v608 = vpop.f32.mrb[0].mxu0
      %v609 = vadd.f32 %v392, %v608
      %v610 = vpop.f32.mrb[0].mxu0
      %v611 = vadd.f32 %v388, %v610
      %v612 = vpop.f32.mrb[0].mxu0
      %v613 = vadd.f32 %v392, %v612
      %614 = vmatprep.mubr.bf16.mxu0 0
      %615 = vmatmul.mubr.bf16.gmra.mrb[0].mxu0 %v445
      %v616 = vpop.f32.mrb[0].mxu0
      %v617 = vadd.f32 %v388, %v616
      %v618 = vpop.f32.mrb[0].mxu0
      %v619 = vadd.f32 %v392, %v618
      %v620 = vpop.f32.mrb[0].mxu0
      %v621 = vadd.f32 %v388, %v620
      %v622 = vpop.f32.mrb[0].mxu0
      %v623 = vadd.f32 %v392, %v622
      %624 = vmatprep.mubr.bf16.mxu0 0
      %625 = vmatmul.mubr.bf16.gmra.mrb[0].mxu0 %v448
      %v626 = vpop.f32.mrb[0].mxu0
      %v627 = vadd.f32 %v388, %v626
      %v628 = vpop.f32.mrb[0].mxu0
      %v629 = vadd.f32 %v392, %v628
      %v630 = vpop.f32.mrb[0].mxu0
      %v631 = vadd.f32 %v388, %v630
      %v632 = vpop.f32.mrb[0].mxu0
      %v633 = vadd.f32 %v392, %v632
      %634 = vmatprep.mubr.bf16.mxu0 0
      %635 = vmatmul.mubr.bf16.gmra.mrb[0].mxu0 %v451
      %v636 = vpop.f32.mrb[0].mxu0
      %v637 = vadd.f32 %v388, %v636
      %v638 = vpop.f32.mrb[0].mxu0
      %v639 = vadd.f32 %v392, %v638
      %v640 = vpop.f32.mrb[0].mxu0
      %v641 = vadd.f32 %v388, %v640
      %v642 = vpop.f32.mrb[0].mxu0
      %v643 = vadd.f32 %v392, %v642
      %644 = vmatprep.mubr.bf16.mxu0 0
      %645 = vmatmul.mubr.bf16.gmra.mrb[0].mxu0 %v454
      %v646 = vpop.f32.mrb[0].mxu0
      %v647 = vadd.f32 %v388, %v646
      %v648 = vpop.f32.mrb[0].mxu0
      %v649 = vadd.f32 %v392, %v648
      %v650 = vpop.f32.mrb[0].mxu0
      %v651 = vadd.f32 %v388, %v650
      %v652 = vpop.f32.mrb[0].mxu0
      %v653 = vadd.f32 %v392, %v652
      %654 = vmatprep.mubr.bf16.mxu0 0
      %655 = vmatmul.mubr.bf16.gmra.mrb[0].mxu0 %v457
      %v656 = vpop.f32.mrb[0].mxu0
      %v657 = vadd.f32 %v388, %v656
      %v658 = vpop.f32.mrb[0].mxu0
      %v659 = vadd.f32 %v392, %v658
      %v660 = vpop.f32.mrb[0].mxu0
      %v661 = vadd.f32 %v388, %v660
      %v662 = vpop.f32.mrb[0].mxu0
      %v663 = vadd.f32 %v392, %v662
      %664 = vmatprep.mubr.bf16.mxu0 0
      %665 = vmatmul.mubr.bf16.gmra.mrb[0].mxu0 %v460
      %v666 = vpop.f32.mrb[0].mxu0
      %v667 = vadd.f32 %v388, %v666
      %v668 = vpop.f32.mrb[0].mxu0
      %v669 = vadd.f32 %v392, %v668
      %v670 = vpop.f32.mrb[0].mxu0
      %v671 = vadd.f32 %v388, %v670
      %v672 = vpop.f32.mrb[0].mxu0
      %v673 = vadd.f32 %v392, %v672
      %674 = vmatprep.mubr.bf16.mxu0 0
      %675 = vmatmul.mubr.bf16.gmra.mrb[0].mxu0 %v463
      %v676 = vpop.f32.mrb[0].mxu0
      %v677 = vadd.f32 %v388, %v676
      %v678 = vpop.f32.mrb[0].mxu0
      %v679 = vadd.f32 %v392, %v678
      %v680 = vpop.f32.mrb[0].mxu0
      %v681 = vadd.f32 %v388, %v680
      %v682 = vpop.f32.mrb[0].mxu0
      %v683 = vadd.f32 %v392, %v682
      %684 = vmatprep.mubr.bf16.mxu0 0
      %685 = vmatmul.mubr.bf16.gmra.mrb[0].mxu0 %v466
      %v686 = vpop.f32.mrb[0].mxu0
      %v687 = vadd.f32 %v388, %v686
      %v688 = vpop.f32.mrb[0].mxu0
      %v689 = vadd.f32 %v392, %v688
      %v690 = vpop.f32.mrb[0].mxu0
      %v691 = vadd.f32 %v388, %v690
      %v692 = vpop.f32.mrb[0].mxu0
      %v693 = vadd.f32 %v392, %v692
      %694 = vmatprep.mubr.bf16.mxu0 0
      %695 = vmatmul.mubr.bf16.gmra.mrb[0].mxu0 %v469
      %v696 = vpop.f32.mrb[0].mxu0
      %v697 = vadd.f32 %v388, %v696
      %v698 = vpop.f32.mrb[0].mxu0
      %v699 = vadd.f32 %v392, %v698
      %v700 = vpop.f32.mrb[0].mxu0
      %v701 = vadd.f32 %v388, %v700
      %v702 = vpop.f32.mrb[0].mxu0
      %v703 = vadd.f32 %v392, %v702
      %704 = vmatprep.mubr.bf16.mxu0 0
      %705 = vmatmul.mubr.bf16.gmra.mrb[0].mxu0 %v472
      %v706 = vpop.f32.mrb[0].mxu0
      %v707 = vadd.f32 %v388, %v706
      %v708 = vpop.f32.mrb[0].mxu0
      %v709 = vadd.f32 %v392, %v708
      %v710 = vpop.f32.mrb[0].mxu0
      %v711 = vadd.f32 %v388, %v710
      %v712 = vpop.f32.mrb[0].mxu0
      %v713 = vadd.f32 %v392, %v712
      %714 = vmatprep.mubr.bf16.mxu0 0
      %715 = vmatmul.mubr.bf16.gmra.mrb[0].mxu0 %v475
      %v716 = vpop.f32.mrb[0].mxu0
      %v717 = vadd.f32 %v388, %v716
      %v718 = vpop.f32.mrb[0].mxu0
      %v719 = vadd.f32 %v392, %v718
      %v720 = vpop.f32.mrb[0].mxu0
      %v721 = vadd.f32 %v388, %v720
      %v722 = vpop.f32.mrb[0].mxu0
      %v723 = vadd.f32 %v392, %v722
      %724 = vmatprep.mubr.bf16.mxu0 0
      %725 = vmatmul.mubr.bf16.gmra.mrb[0].mxu0 %v478
      %v726 = vpop.f32.mrb[0].mxu0
      %v727 = vadd.f32 %v388, %v726
      %v728 = vpop.f32.mrb[0].mxu0
      %v729 = vadd.f32 %v392, %v728
      %v730 = vpop.f32.mrb[0].mxu0
      %v731 = vadd.f32 %v388, %v730
      %v732 = vpop.f32.mrb[0].mxu0
      %v733 = vadd.f32 %v392, %v732
      %734 = vmatprep.mubr.bf16.mxu0 0
      %735 = vmatmul.mubr.bf16.gmra.mrb[0].mxu0 %v481
      %v736 = vpop.f32.mrb[0].mxu0
      %v737 = vadd.f32 %v388, %v736
      %v738 = vpop.f32.mrb[0].mxu0
      %v739 = vadd.f32 %v392, %v738
      %v740 = vpop.f32.mrb[0].mxu0
      %v741 = vadd.f32 %v388, %v740
      %v742 = vpop.f32.mrb[0].mxu0
      %v743 = vadd.f32 %v392, %v742
      %744 = vmatprep.mubr.bf16.mxu0 0
      %745 = vmatmul.mubr.bf16.gmra.mrb[0].mxu0 %v484
      %v746 = vpop.f32.mrb[0].mxu0
      %v747 = vadd.f32 %v388, %v746
      %v748 = vpop.f32.mrb[0].mxu0
      %v749 = vadd.f32 %v392, %v748
      %v750 = vpop.f32.mrb[0].mxu0
      %v751 = vadd.f32 %v388, %v750
      %v752 = vpop.f32.mrb[0].mxu0
      %v753 = vadd.f32 %v392, %v752
      %754 = vmatprep.mubr.bf16.mxu0 0
      %755 = vmatmul.mubr.bf16.gmra.mrb[0].mxu0 %v487
      %v756 = vpop.f32.mrb[0].mxu0
      %v757 = vadd.f32 %v388, %v756
      %v758 = vpop.f32.mrb[0].mxu0
      %v759 = vadd.f32 %v392, %v758
      %v760 = vpop.f32.mrb[0].mxu0
      %v761 = vadd.f32 %v388, %v760
      %v762 = vpop.f32.mrb[0].mxu0
      %v763 = vadd.f32 %v392, %v762
      %764 = vmatprep.mubr.bf16.mxu0 0
      %765 = vmatmul.mubr.bf16.gmra.mrb[0].mxu0 %v490
      %v766 = vpop.f32.mrb[0].mxu0
      %v767 = vadd.f32 %v388, %v766
      %v768 = vpop.f32.mrb[0].mxu0
      %v769 = vadd.f32 %v392, %v768
      %v770 = vpop.f32.mrb[0].mxu0
      %v771 = vadd.f32 %v388, %v770
      %v772 = vpop.f32.mrb[0].mxu0
      %v773 = vadd.f32 %v392, %v772
      %774 = vmatprep.mubr.bf16.mxu0 0
      %775 = vmatmul.mubr.bf16.gmra.mrb[0].mxu0 %v493
      %v776 = vpop.f32.mrb[0].mxu0
      %v777 = vadd.f32 %v388, %v776
      %v778 = vpop.f32.mrb[0].mxu0
      %v779 = vadd.f32 %v392, %v778
      %v780 = vpop.f32.mrb[0].mxu0
      %v781 = vadd.f32 %v388, %v780
      %v782 = vpop.f32.mrb[0].mxu0
      %v783 = vadd.f32 %v392, %v782
      %784 = vmatprep.mubr.bf16.mxu0 0
      %785 = vmatmul.mubr.bf16.gmra.mrb[0].mxu0 %v496
      %v786 = vpop.f32.mrb[0].mxu0
      %v787 = vadd.f32 %v388, %v786
      %v788 = vpop.f32.mrb[0].mxu0
      %v789 = vadd.f32 %v392, %v788
      %v790 = vpop.f32.mrb[0].mxu0
      %v791 = vadd.f32 %v388, %v790
      %v792 = vpop.f32.mrb[0].mxu0
      %v793 = vadd.f32 %v392, %v792
      %794 = vmatprep.mubr.bf16.mxu0 0
      %795 = vmatmul.mubr.bf16.gmra.mrb[0].mxu0 %v499
      %v796 = vpop.f32.mrb[0].mxu0
      %v797 = vadd.f32 %v388, %v796
      %v798 = vpop.f32.mrb[0].mxu0
      %v799 = vadd.f32 %v392, %v798
      %v800 = vpop.f32.mrb[0].mxu0
      %v801 = vadd.f32 %v388, %v800
      %v802 = vpop.f32.mrb[0].mxu0
      %v803 = vadd.f32 %v392, %v802
      %804 = vmatprep.mubr.bf16.mxu0 0
      %805 = vmatmul.mubr.bf16.gmra.mrb[0].mxu0 %v502
      %v806 = vpop.f32.mrb[0].mxu0
      %v807 = vadd.f32 %v388, %v806
      %v808 = vpop.f32.mrb[0].mxu0
      %v809 = vadd.f32 %v392, %v808
      %v810 = vpop.f32.mrb[0].mxu0
      %v811 = vadd.f32 %v388, %v810
      %v812 = vpop.f32.mrb[0].mxu0
      %v813 = vadd.f32 %v392, %v812
      %814 = vmatprep.mubr.bf16.mxu0 0
      %815 = vmatmul.mubr.bf16.gmra.mrb[0].mxu0 %v505
      %v816 = vpop.f32.mrb[0].mxu0
      %v817 = vadd.f32 %v388, %v816
      %v818 = vpop.f32.mrb[0].mxu0
      %v819 = vadd.f32 %v392, %v818
      %v820 = vpop.f32.mrb[0].mxu0
      %v821 = vadd.f32 %v388, %v820
      %v822 = vpop.f32.mrb[0].mxu0
      %v823 = vadd.f32 %v392, %v822
      %824 = vmatprep.mubr.bf16.mxu0 0
      %825 = vmatmul.mubr.bf16.gmra.mrb[0].mxu0 %v508
      %v826 = vpop.f32.mrb[0].mxu0
      %v827 = vadd.f32 %v388, %v826
      %v828 = vpop.f32.mrb[0].mxu0
      %v829 = vadd.f32 %v392, %v828
      %v830 = vpop.f32.mrb[0].mxu0
      %v831 = vadd.f32 %v388, %v830
      %v832 = vpop.f32.mrb[0].mxu0
      %v833 = vadd.f32 %v392, %v832
      %834 = vmatprep.mubr.bf16.mxu0 0
      %835 = vmatmul.mubr.bf16.gmra.mrb[0].mxu0 %v511
      %v836 = vpop.f32.mrb[0].mxu0
      %v837 = vadd.f32 %v388, %v836
      %v838 = vpop.f32.mrb[0].mxu0
      %v839 = vadd.f32 %v392, %v838
      %v840 = vpop.f32.mrb[0].mxu0
      %v841 = vadd.f32 %v388, %v840
      %v842 = vpop.f32.mrb[0].mxu0
      %v843 = vadd.f32 %v392, %v842
      %844 = vmatprep.mubr.bf16.mxu0 0
      %845 = vmatmul.mubr.bf16.gmra.mrb[0].mxu0 %v514
      %v846 = vpop.f32.mrb[0].mxu0
      %v847 = vadd.f32 %v388, %v846
      %v848 = vpop.f32.mrb[0].mxu0
      %v849 = vadd.f32 %v392, %v848
      %v850 = vpop.f32.mrb[0].mxu0
      %v851 = vadd.f32 %v388, %v850
      %v852 = vpop.f32.mrb[0].mxu0
      %v853 = vadd.f32 %v392, %v852
      %854 = vmatprep.mubr.bf16.mxu0 0
      %855 = vmatmul.mubr.bf16.gmra.mrb[0].mxu0 %v517
      %v856 = vpop.f32.mrb[0].mxu0
      %v857 = vadd.f32 %v388, %v856
      %v858 = vpop.f32.mrb[0].mxu0
      %v859 = vadd.f32 %v392, %v858
      %v860 = vpop.f32.mrb[0].mxu0
      %v861 = vadd.f32 %v388, %v860
      %v862 = vpop.f32.mrb[0].mxu0
      %v863 = vadd.f32 %v392, %v862
      %864 = vmatprep.mubr.bf16.mxu0 0
      %865 = vmatmul.mubr.bf16.gmra.mrb[0].mxu0 %v520
      %v866 = vpop.f32.mrb[0].mxu0
      %v867 = vadd.f32 %v388, %v866
      %v868 = vpop.f32.mrb[0].mxu0
      %v869 = vadd.f32 %v392, %v868
      %v870 = vpop.f32.mrb[0].mxu0
      %v871 = vadd.f32 %v388, %v870
      %v872 = vpop.f32.mrb[0].mxu0
      %v873 = vadd.f32 %v392, %v872
      %874 = vdwg.mxu0
      %875 = vmatprep.subr.bf16.mxu0 %v420
      %876 = vmatpush1.bf16.msra.mxu0 %v419
      %877 = vmatprep.subr.bf16.mxu0 0
      %878 = vmatpush1.bf16.msra.mxu0 0
      %879 = vmatprep.subr.bf16.mxu0 0
      %880 = vmatpush1.bf16.msra.mxu0 0
      %881 = vmatprep.subr.bf16.mxu0 0
      %882 = vmatpush1.bf16.msra.mxu0 0
      %883 = vmatprep.subr.bf16.mxu0 0
      %884 = vmatpush1.bf16.msra.mxu0 0
      %885 = vmatprep.subr.bf16.mxu0 0
      %886 = vmatpush1.bf16.msra.mxu0 0
      %887 = vmatprep.subr.bf16.mxu0 0
      %888 = vmatpush1.bf16.msra.mxu0 0
      %889 = vmatprep.subr.bf16.mxu0 0
      %890 = vmatpush1.bf16.msra.mxu0 0
      %891 = vmatprep.subr.bf16.mxu0 0
      %892 = vmatpush1.bf16.msra.mxu0 0
      %893 = vmatprep.subr.bf16.mxu0 0
      %894 = vmatpush1.bf16.msra.mxu0 0
      %895 = vmatprep.subr.bf16.mxu0 0
      %896 = vmatpush1.bf16.msra.mxu0 0
      %897 = vmatprep.subr.bf16.mxu0 0
      %898 = vmatpush1.bf16.msra.mxu0 0
      %899 = vmatprep.subr.bf16.mxu0 0
      %900 = vmatpush1.bf16.msra.mxu0 0
      %901 = vmatprep.subr.bf16.mxu0 0
      %902 = vmatpush1.bf16.msra.mxu0 0
      %903 = vmatprep.subr.bf16.mxu0 0
      %904 = vmatpush1.bf16.msra.mxu0 0
      %905 = vmatprep.subr.bf16.mxu0 0
      %906 = vmatpush1.bf16.msra.mxu0 0
      %907 = vmatprep.mubr.bf16.mxu0 0
      %908 = vmatmul.mubr.bf16.gmra.mrb[0].mxu0 %v427
      %v909 = vpop.f32.mrb[0].mxu0
      %v910 = vadd.f32 %v396, %v909
      %v911 = vpop.f32.mrb[0].mxu0
      %v912 = vadd.f32 %v400, %v911
      %v913 = vpop.f32.mrb[0].mxu0
      %v914 = vadd.f32 %v396, %v913
      %v915 = vpop.f32.mrb[0].mxu0
      %v916 = vadd.f32 %v400, %v915
      %917 = vmatprep.mubr.bf16.mxu0 0
      %918 = vmatmul.mubr.bf16.gmra.mrb[0].mxu0 %v430
      %v919 = vpop.f32.mrb[0].mxu0
      %v920 = vadd.f32 %v396, %v919
      %v921 = vpop.f32.mrb[0].mxu0
      %v922 = vadd.f32 %v400, %v921
      %v923 = vpop.f32.mrb[0].mxu0
      %v924 = vadd.f32 %v396, %v923
      %v925 = vpop.f32.mrb[0].mxu0
      %v926 = vadd.f32 %v400, %v925
      %927 = vmatprep.mubr.bf16.mxu0 0
      %928 = vmatmul.mubr.bf16.gmra.mrb[0].mxu0 %v433
      %v929 = vpop.f32.mrb[0].mxu0
      %v930 = vadd.f32 %v396, %v929
      %v931 = vpop.f32.mrb[0].mxu0
      %v932 = vadd.f32 %v400, %v931
      %v933 = vpop.f32.mrb[0].mxu0
      %v934 = vadd.f32 %v396, %v933
      %v935 = vpop.f32.mrb[0].mxu0
      %v936 = vadd.f32 %v400, %v935
      %937 = vmatprep.mubr.bf16.mxu0 0
      %938 = vmatmul.mubr.bf16.gmra.mrb[0].mxu0 %v436
      %v939 = vpop.f32.mrb[0].mxu0
      %v940 = vadd.f32 %v396, %v939
      %v941 = vpop.f32.mrb[0].mxu0
      %v942 = vadd.f32 %v400, %v941
      %v943 = vpop.f32.mrb[0].mxu0
      %v944 = vadd.f32 %v396, %v943
      %v945 = vpop.f32.mrb[0].mxu0
      %v946 = vadd.f32 %v400, %v945
      %947 = vmatprep.mubr.bf16.mxu0 0
      %948 = vmatmul.mubr.bf16.gmra.mrb[0].mxu0 %v439
      %v949 = vpop.f32.mrb[0].mxu0
      %v950 = vadd.f32 %v396, %v949
      %v951 = vpop.f32.mrb[0].mxu0
      %v952 = vadd.f32 %v400, %v951
      %v953 = vpop.f32.mrb[0].mxu0
      %v954 = vadd.f32 %v396, %v953
      %v955 = vpop.f32.mrb[0].mxu0
      %v956 = vadd.f32 %v400, %v955
      %957 = vmatprep.mubr.bf16.mxu0 0
      %958 = vmatmul.mubr.bf16.gmra.mrb[0].mxu0 %v442
      %v959 = vpop.f32.mrb[0].mxu0
      %v960 = vadd.f32 %v396, %v959
      %v961 = vpop.f32.mrb[0].mxu0
      %v962 = vadd.f32 %v400, %v961
      %v963 = vpop.f32.mrb[0].mxu0
      %v964 = vadd.f32 %v396, %v963
      %v965 = vpop.f32.mrb[0].mxu0
      %v966 = vadd.f32 %v400, %v965
      %967 = vmatprep.mubr.bf16.mxu0 0
      %968 = vmatmul.mubr.bf16.gmra.mrb[0].mxu0 %v445
      %v969 = vpop.f32.mrb[0].mxu0
      %v970 = vadd.f32 %v396, %v969
      %v971 = vpop.f32.mrb[0].mxu0
      %v972 = vadd.f32 %v400, %v971
      %v973 = vpop.f32.mrb[0].mxu0
      %v974 = vadd.f32 %v396, %v973
      %v975 = vpop.f32.mrb[0].mxu0
      %v976 = vadd.f32 %v400, %v975
      %977 = vmatprep.mubr.bf16.mxu0 0
      %978 = vmatmul.mubr.bf16.gmra.mrb[0].mxu0 %v448
      %v979 = vpop.f32.mrb[0].mxu0
      %v980 = vadd.f32 %v396, %v979
      %v981 = vpop.f32.mrb[0].mxu0
      %v982 = vadd.f32 %v400, %v981
      %v983 = vpop.f32.mrb[0].mxu0
      %v984 = vadd.f32 %v396, %v983
      %v985 = vpop.f32.mrb[0].mxu0
      %v986 = vadd.f32 %v400, %v985
      %987 = vmatprep.mubr.bf16.mxu0 0
      %988 = vmatmul.mubr.bf16.gmra.mrb[0].mxu0 %v451
      %v989 = vpop.f32.mrb[0].mxu0
      %v990 = vadd.f32 %v396, %v989
      %v991 = vpop.f32.mrb[0].mxu0
      %v992 = vadd.f32 %v400, %v991
      %v993 = vpop.f32.mrb[0].mxu0
      %v994 = vadd.f32 %v396, %v993
      %v995 = vpop.f32.mrb[0].mxu0
      %v996 = vadd.f32 %v400, %v995
      %997 = vmatprep.mubr.bf16.mxu0 0
      %998 = vmatmul.mubr.bf16.gmra.mrb[0].mxu0 %v454
      %v999 = vpop.f32.mrb[0].mxu0
      %v1000 = vadd.f32 %v396, %v999
      %v1001 = vpop.f32.mrb[0].mxu0
      %v1002 = vadd.f32 %v400, %v1001
      %v1003 = vpop.f32.mrb[0].mxu0
      %v1004 = vadd.f32 %v396, %v1003
      %v1005 = vpop.f32.mrb[0].mxu0
      %v1006 = vadd.f32 %v400, %v1005
      %1007 = vmatprep.mubr.bf16.mxu0 0
      %1008 = vmatmul.mubr.bf16.gmra.mrb[0].mxu0 %v457
      %v1009 = vpop.f32.mrb[0].mxu0
      %v1010 = vadd.f32 %v396, %v1009
      %v1011 = vpop.f32.mrb[0].mxu0
      %v1012 = vadd.f32 %v400, %v1011
      %v1013 = vpop.f32.mrb[0].mxu0
      %v1014 = vadd.f32 %v396, %v1013
      %v1015 = vpop.f32.mrb[0].mxu0
      %v1016 = vadd.f32 %v400, %v1015
      %1017 = vmatprep.mubr.bf16.mxu0 0
      %1018 = vmatmul.mubr.bf16.gmra.mrb[0].mxu0 %v460
      %v1019 = vpop.f32.mrb[0].mxu0
      %v1020 = vadd.f32 %v396, %v1019
      %v1021 = vpop.f32.mrb[0].mxu0
      %v1022 = vadd.f32 %v400, %v1021
      %v1023 = vpop.f32.mrb[0].mxu0
      %v1024 = vadd.f32 %v396, %v1023
      %v1025 = vpop.f32.mrb[0].mxu0
      %v1026 = vadd.f32 %v400, %v1025
      %1027 = vmatprep.mubr.bf16.mxu0 0
      %1028 = vmatmul.mubr.bf16.gmra.mrb[0].mxu0 %v463
      %v1029 = vpop.f32.mrb[0].mxu0
      %v1030 = vadd.f32 %v396, %v1029
      %v1031 = vpop.f32.mrb[0].mxu0
      %v1032 = vadd.f32 %v400, %v1031
      %v1033 = vpop.f32.mrb[0].mxu0
      %v1034 = vadd.f32 %v396, %v1033
      %v1035 = vpop.f32.mrb[0].mxu0
      %v1036 = vadd.f32 %v400, %v1035
      %1037 = vmatprep.mubr.bf16.mxu0 0
      %1038 = vmatmul.mubr.bf16.gmra.mrb[0].mxu0 %v466
      %v1039 = vpop.f32.mrb[0].mxu0
      %v1040 = vadd.f32 %v396, %v1039
      %v1041 = vpop.f32.mrb[0].mxu0
      %v1042 = vadd.f32 %v400, %v1041
      %v1043 = vpop.f32.mrb[0].mxu0
      %v1044 = vadd.f32 %v396, %v1043
      %v1045 = vpop.f32.mrb[0].mxu0
      %v1046 = vadd.f32 %v400, %v1045
      %1047 = vmatprep.mubr.bf16.mxu0 0
      %1048 = vmatmul.mubr.bf16.gmra.mrb[0].mxu0 %v469
      %v1049 = vpop.f32.mrb[0].mxu0
      %v1050 = vadd.f32 %v396, %v1049
      %v1051 = vpop.f32.mrb[0].mxu0
      %v1052 = vadd.f32 %v400, %v1051
      %v1053 = vpop.f32.mrb[0].mxu0
      %v1054 = vadd.f32 %v396, %v1053
      %v1055 = vpop.f32.mrb[0].mxu0
      %v1056 = vadd.f32 %v400, %v1055
      %1057 = vmatprep.mubr.bf16.mxu0 0
      %1058 = vmatmul.mubr.bf16.gmra.mrb[0].mxu0 %v472
      %v1059 = vpop.f32.mrb[0].mxu0
      %v1060 = vadd.f32 %v396, %v1059
      %v1061 = vpop.f32.mrb[0].mxu0
      %v1062 = vadd.f32 %v400, %v1061
      %v1063 = vpop.f32.mrb[0].mxu0
      %v1064 = vadd.f32 %v396, %v1063
      %v1065 = vpop.f32.mrb[0].mxu0
      %v1066 = vadd.f32 %v400, %v1065
      %1067 = vmatprep.mubr.bf16.mxu0 0
      %1068 = vmatmul.mubr.bf16.gmra.mrb[0].mxu0 %v475
      %v1069 = vpop.f32.mrb[0].mxu0
      %v1070 = vadd.f32 %v396, %v1069
      %v1071 = vpop.f32.mrb[0].mxu0
      %v1072 = vadd.f32 %v400, %v1071
      %v1073 = vpop.f32.mrb[0].mxu0
      %v1074 = vadd.f32 %v396, %v1073
      %v1075 = vpop.f32.mrb[0].mxu0
      %v1076 = vadd.f32 %v400, %v1075
      %1077 = vmatprep.mubr.bf16.mxu0 0
      %1078 = vmatmul.mubr.bf16.gmra.mrb[0].mxu0 %v478
      %v1079 = vpop.f32.mrb[0].mxu0
      %v1080 = vadd.f32 %v396, %v1079
      %v1081 = vpop.f32.mrb[0].mxu0
      %v1082 = vadd.f32 %v400, %v1081
      %v1083 = vpop.f32.mrb[0].mxu0
      %v1084 = vadd.f32 %v396, %v1083
      %v1085 = vpop.f32.mrb[0].mxu0
      %v1086 = vadd.f32 %v400, %v1085
      %1087 = vmatprep.mubr.bf16.mxu0 0
      %1088 = vmatmul.mubr.bf16.gmra.mrb[0].mxu0 %v481
      %v1089 = vpop.f32.mrb[0].mxu0
      %v1090 = vadd.f32 %v396, %v1089
      %v1091 = vpop.f32.mrb[0].mxu0
      %v1092 = vadd.f32 %v400, %v1091
      %v1093 = vpop.f32.mrb[0].mxu0
      %v1094 = vadd.f32 %v396, %v1093
      %v1095 = vpop.f32.mrb[0].mxu0
      %v1096 = vadd.f32 %v400, %v1095
      %1097 = vmatprep.mubr.bf16.mxu0 0
      %1098 = vmatmul.mubr.bf16.gmra.mrb[0].mxu0 %v484
      %v1099 = vpop.f32.mrb[0].mxu0
      %v1100 = vadd.f32 %v396, %v1099
      %v1101 = vpop.f32.mrb[0].mxu0
      %v1102 = vadd.f32 %v400, %v1101
      %v1103 = vpop.f32.mrb[0].mxu0
      %v1104 = vadd.f32 %v396, %v1103
      %v1105 = vpop.f32.mrb[0].mxu0
      %v1106 = vadd.f32 %v400, %v1105
      %1107 = vmatprep.mubr.bf16.mxu0 0
      %1108 = vmatmul.mubr.bf16.gmra.mrb[0].mxu0 %v487
      %v1109 = vpop.f32.mrb[0].mxu0
      %v1110 = vadd.f32 %v396, %v1109
      %v1111 = vpop.f32.mrb[0].mxu0
      %v1112 = vadd.f32 %v400, %v1111
      %v1113 = vpop.f32.mrb[0].mxu0
      %v1114 = vadd.f32 %v396, %v1113
      %v1115 = vpop.f32.mrb[0].mxu0
      %v1116 = vadd.f32 %v400, %v1115
      %1117 = vmatprep.mubr.bf16.mxu0 0
      %1118 = vmatmul.mubr.bf16.gmra.mrb[0].mxu0 %v490
      %v1119 = vpop.f32.mrb[0].mxu0
      %v1120 = vadd.f32 %v396, %v1119
      %v1121 = vpop.f32.mrb[0].mxu0
      %v1122 = vadd.f32 %v400, %v1121
      %v1123 = vpop.f32.mrb[0].mxu0
      %v1124 = vadd.f32 %v396, %v1123
      %v1125 = vpop.f32.mrb[0].mxu0
      %v1126 = vadd.f32 %v400, %v1125
      %1127 = vmatprep.mubr.bf16.mxu0 0
      %1128 = vmatmul.mubr.bf16.gmra.mrb[0].mxu0 %v493
      %v1129 = vpop.f32.mrb[0].mxu0
      %v1130 = vadd.f32 %v396, %v1129
      %v1131 = vpop.f32.mrb[0].mxu0
      %v1132 = vadd.f32 %v400, %v1131
      %v1133 = vpop.f32.mrb[0].mxu0
      %v1134 = vadd.f32 %v396, %v1133
      %v1135 = vpop.f32.mrb[0].mxu0
      %v1136 = vadd.f32 %v400, %v1135
      %1137 = vmatprep.mubr.bf16.mxu0 0
      %1138 = vmatmul.mubr.bf16.gmra.mrb[0].mxu0 %v496
      %v1139 = vpop.f32.mrb[0].mxu0
      %v1140 = vadd.f32 %v396, %v1139
      %v1141 = vpop.f32.mrb[0].mxu0
      %v1142 = vadd.f32 %v400, %v1141
      %v1143 = vpop.f32.mrb[0].mxu0
      %v1144 = vadd.f32 %v396, %v1143
      %v1145 = vpop.f32.mrb[0].mxu0
      %v1146 = vadd.f32 %v400, %v1145
      %1147 = vmatprep.mubr.bf16.mxu0 0
      %1148 = vmatmul.mubr.bf16.gmra.mrb[0].mxu0 %v499
      %v1149 = vpop.f32.mrb[0].mxu0
      %v1150 = vadd.f32 %v396, %v1149
      %v1151 = vpop.f32.mrb[0].mxu0
      %v1152 = vadd.f32 %v400, %v1151
      %v1153 = vpop.f32.mrb[0].mxu0
      %v1154 = vadd.f32 %v396, %v1153
      %v1155 = vpop.f32.mrb[0].mxu0
      %v1156 = vadd.f32 %v400, %v1155
      %1157 = vmatprep.mubr.bf16.mxu0 0
      %1158 = vmatmul.mubr.bf16.gmra.mrb[0].mxu0 %v502
      %v1159 = vpop.f32.mrb[0].mxu0
      %v1160 = vadd.f32 %v396, %v1159
      %v1161 = vpop.f32.mrb[0].mxu0
      %v1162 = vadd.f32 %v400, %v1161
      %v1163 = vpop.f32.mrb[0].mxu0
      %v1164 = vadd.f32 %v396, %v1163
      %v1165 = vpop.f32.mrb[0].mxu0
      %v1166 = vadd.f32 %v400, %v1165
      %1167 = vmatprep.mubr.bf16.mxu0 0
      %1168 = vmatmul.mubr.bf16.gmra.mrb[0].mxu0 %v505
      %v1169 = vpop.f32.mrb[0].mxu0
      %v1170 = vadd.f32 %v396, %v1169
      %v1171 = vpop.f32.mrb[0].mxu0
      %v1172 = vadd.f32 %v400, %v1171
      %v1173 = vpop.f32.mrb[0].mxu0
      %v1174 = vadd.f32 %v396, %v1173
      %v1175 = vpop.f32.mrb[0].mxu0
      %v1176 = vadd.f32 %v400, %v1175
      %1177 = vmatprep.mubr.bf16.mxu0 0
      %1178 = vmatmul.mubr.bf16.gmra.mrb[0].mxu0 %v508
      %v1179 = vpop.f32.mrb[0].mxu0
      %v1180 = vadd.f32 %v396, %v1179
      %v1181 = vpop.f32.mrb[0].mxu0
      %v1182 = vadd.f32 %v400, %v1181
      %v1183 = vpop.f32.mrb[0].mxu0
      %v1184 = vadd.f32 %v396, %v1183
      %v1185 = vpop.f32.mrb[0].mxu0
      %v1186 = vadd.f32 %v400, %v1185
      %1187 = vmatprep.mubr.bf16.mxu0 0
      %1188 = vmatmul.mubr.bf16.gmra.mrb[0].mxu0 %v511
      %v1189 = vpop.f32.mrb[0].mxu0
      %v1190 = vadd.f32 %v396, %v1189
      %v1191 = vpop.f32.mrb[0].mxu0
      %v1192 = vadd.f32 %v400, %v1191
      %v1193 = vpop.f32.mrb[0].mxu0
      %v1194 = vadd.f32 %v396, %v1193
      %v1195 = vpop.f32.mrb[0].mxu0
      %v1196 = vadd.f32 %v400, %v1195
      %1197 = vmatprep.mubr.bf16.mxu0 0
      %1198 = vmatmul.mubr.bf16.gmra.mrb[0].mxu0 %v514
      %v1199 = vpop.f32.mrb[0].mxu0
      %v1200 = vadd.f32 %v396, %v1199
      %v1201 = vpop.f32.mrb[0].mxu0
      %v1202 = vadd.f32 %v400, %v1201
      %v1203 = vpop.f32.mrb[0].mxu0
      %v1204 = vadd.f32 %v396, %v1203
      %v1205 = vpop.f32.mrb[0].mxu0
      %v1206 = vadd.f32 %v400, %v1205
      %1207 = vmatprep.mubr.bf16.mxu0 0
      %1208 = vmatmul.mubr.bf16.gmra.mrb[0].mxu0 %v517
      %v1209 = vpop.f32.mrb[0].mxu0
      %v1210 = vadd.f32 %v396, %v1209
      %v1211 = vpop.f32.mrb[0].mxu0
      %v1212 = vadd.f32 %v400, %v1211
      %v1213 = vpop.f32.mrb[0].mxu0
      %v1214 = vadd.f32 %v396, %v1213
      %v1215 = vpop.f32.mrb[0].mxu0
      %v1216 = vadd.f32 %v400, %v1215
      %1217 = vmatprep.mubr.bf16.mxu0 0
      %1218 = vmatmul.mubr.bf16.gmra.mrb[0].mxu0 %v520
      %v1219 = vpop.f32.mrb[0].mxu0
      %v1220 = vadd.f32 %v396, %v1219
      %v1221 = vpop.f32.mrb[0].mxu0
      %v1222 = vadd.f32 %v400, %v1221
      %v1223 = vpop.f32.mrb[0].mxu0
      %v1224 = vadd.f32 %v396, %v1223
      %v1225 = vpop.f32.mrb[0].mxu0
      %v1226 = vadd.f32 %v400, %v1225
      %1227 = vdwg.mxu0
      %v1228 = vmax.f32 %v557, 0.0
      %v1229 = vmax.f32 %v559, 0.0
      %v1230 = vmax.f32 %v910, 0.0
      %v1231 = vmax.f32 %v912, 0.0
      %v1232 = vmax.f32 %v561, 0.0
      %v1233 = vmax.f32 %v563, 0.0
      %v1234 = vmax.f32 %v914, 0.0
      %v1235 = vmax.f32 %v916, 0.0
      %v1236 = vmax.f32 %v567, 0.0
      %v1237 = vmax.f32 %v569, 0.0
      %v1238 = vmax.f32 %v920, 0.0
      %v1239 = vmax.f32 %v922, 0.0
      %v1240 = vmax.f32 %v571, 0.0
      %v1241 = vmax.f32 %v573, 0.0
      %v1242 = vmax.f32 %v924, 0.0
      %v1243 = vmax.f32 %v926, 0.0
      %v1244 = vmax.f32 %v577, 0.0
      %v1245 = vmax.f32 %v579, 0.0
      %v1246 = vmax.f32 %v930, 0.0
      %v1247 = vmax.f32 %v932, 0.0
      %v1248 = vmax.f32 %v581, 0.0
      %v1249 = vmax.f32 %v583, 0.0
      %v1250 = vmax.f32 %v934, 0.0
      %v1251 = vmax.f32 %v936, 0.0
      %v1252 = vmax.f32 %v587, 0.0
      %v1253 = vmax.f32 %v589, 0.0
      %v1254 = vmax.f32 %v940, 0.0
      %v1255 = vmax.f32 %v942, 0.0
      %v1256 = vmax.f32 %v591, 0.0
      %v1257 = vmax.f32 %v593, 0.0
      %v1258 = vmax.f32 %v944, 0.0
      %v1259 = vmax.f32 %v946, 0.0
      %v1260 = vmax.f32 %v597, 0.0
      %v1261 = vmax.f32 %v599, 0.0
      %v1262 = vmax.f32 %v950, 0.0
      %v1263 = vmax.f32 %v952, 0.0
      %v1264 = vmax.f32 %v601, 0.0
      %v1265 = vmax.f32 %v603, 0.0
      %v1266 = vmax.f32 %v954, 0.0
      %v1267 = vmax.f32 %v956, 0.0
      %v1268 = vmax.f32 %v607, 0.0
      %v1269 = vmax.f32 %v609, 0.0
      %v1270 = vmax.f32 %v960, 0.0
      %v1271 = vmax.f32 %v962, 0.0
      %v1272 = vmax.f32 %v611, 0.0
      %v1273 = vmax.f32 %v613, 0.0
      %v1274 = vmax.f32 %v964, 0.0
      %v1275 = vmax.f32 %v966, 0.0
      %v1276 = vmax.f32 %v617, 0.0
      %v1277 = vmax.f32 %v619, 0.0
      %v1278 = vmax.f32 %v970, 0.0
      %v1279 = vmax.f32 %v972, 0.0
      %v1280 = vmax.f32 %v621, 0.0
      %v1281 = vmax.f32 %v623, 0.0
      %v1282 = vmax.f32 %v974, 0.0
      %v1283 = vmax.f32 %v976, 0.0
      %v1284 = vmax.f32 %v627, 0.0
      %v1285 = vmax.f32 %v629, 0.0
      %v1286 = vmax.f32 %v980, 0.0
      %v1287 = vmax.f32 %v982, 0.0
      %v1288 = vmax.f32 %v631, 0.0
      %v1289 = vmax.f32 %v633, 0.0
      %v1290 = vmax.f32 %v984, 0.0
      %v1291 = vmax.f32 %v986, 0.0
      %v1292 = vmax.f32 %v637, 0.0
      %v1293 = vmax.f32 %v639, 0.0
      %v1294 = vmax.f32 %v990, 0.0
      %v1295 = vmax.f32 %v992, 0.0
      %v1296 = vmax.f32 %v641, 0.0
      %v1297 = vmax.f32 %v643, 0.0
      %v1298 = vmax.f32 %v994, 0.0
      %v1299 = vmax.f32 %v996, 0.0
      %v1300 = vmax.f32 %v647, 0.0
      %v1301 = vmax.f32 %v649, 0.0
      %v1302 = vmax.f32 %v1000, 0.0
      %v1303 = vmax.f32 %v1002, 0.0
      %v1304 = vmax.f32 %v651, 0.0
      %v1305 = vmax.f32 %v653, 0.0
      %v1306 = vmax.f32 %v1004, 0.0
      %v1307 = vmax.f32 %v1006, 0.0
      %v1308 = vmax.f32 %v657, 0.0
      %v1309 = vmax.f32 %v659, 0.0
      %v1310 = vmax.f32 %v1010, 0.0
      %v1311 = vmax.f32 %v1012, 0.0
      %v1312 = vmax.f32 %v661, 0.0
      %v1313 = vmax.f32 %v663, 0.0
      %v1314 = vmax.f32 %v1014, 0.0
      %v1315 = vmax.f32 %v1016, 0.0
      %v1316 = vmax.f32 %v667, 0.0
      %v1317 = vmax.f32 %v669, 0.0
      %v1318 = vmax.f32 %v1020, 0.0
      %v1319 = vmax.f32 %v1022, 0.0
      %v1320 = vmax.f32 %v671, 0.0
      %v1321 = vmax.f32 %v673, 0.0
      %v1322 = vmax.f32 %v1024, 0.0
      %v1323 = vmax.f32 %v1026, 0.0
      %v1324 = vmax.f32 %v677, 0.0
      %v1325 = vmax.f32 %v679, 0.0
      %v1326 = vmax.f32 %v1030, 0.0
      %v1327 = vmax.f32 %v1032, 0.0
      %v1328 = vmax.f32 %v681, 0.0
      %v1329 = vmax.f32 %v683, 0.0
      %v1330 = vmax.f32 %v1034, 0.0
      %v1331 = vmax.f32 %v1036, 0.0
      %v1332 = vmax.f32 %v687, 0.0
      %v1333 = vmax.f32 %v689, 0.0
      %v1334 = vmax.f32 %v1040, 0.0
      %v1335 = vmax.f32 %v1042, 0.0
      %v1336 = vmax.f32 %v691, 0.0
      %v1337 = vmax.f32 %v693, 0.0
      %v1338 = vmax.f32 %v1044, 0.0
      %v1339 = vmax.f32 %v1046, 0.0
      %v1340 = vmax.f32 %v697, 0.0
      %v1341 = vmax.f32 %v699, 0.0
      %v1342 = vmax.f32 %v1050, 0.0
      %v1343 = vmax.f32 %v1052, 0.0
      %v1344 = vmax.f32 %v701, 0.0
      %v1345 = vmax.f32 %v703, 0.0
      %v1346 = vmax.f32 %v1054, 0.0
      %v1347 = vmax.f32 %v1056, 0.0
      %v1348 = vmax.f32 %v707, 0.0
      %v1349 = vmax.f32 %v709, 0.0
      %v1350 = vmax.f32 %v1060, 0.0
      %v1351 = vmax.f32 %v1062, 0.0
      %v1352 = vmax.f32 %v711, 0.0
      %v1353 = vmax.f32 %v713, 0.0
      %v1354 = vmax.f32 %v1064, 0.0
      %v1355 = vmax.f32 %v1066, 0.0
      %v1356 = vmax.f32 %v717, 0.0
      %v1357 = vmax.f32 %v719, 0.0
      %v1358 = vmax.f32 %v1070, 0.0
      %v1359 = vmax.f32 %v1072, 0.0
      %v1360 = vmax.f32 %v721, 0.0
      %v1361 = vmax.f32 %v723, 0.0
      %v1362 = vmax.f32 %v1074, 0.0
      %v1363 = vmax.f32 %v1076, 0.0
      %v1364 = vmax.f32 %v727, 0.0
      %v1365 = vmax.f32 %v729, 0.0
      %v1366 = vmax.f32 %v1080, 0.0
      %v1367 = vmax.f32 %v1082, 0.0
      %v1368 = vmax.f32 %v731, 0.0
      %v1369 = vmax.f32 %v733, 0.0
      %v1370 = vmax.f32 %v1084, 0.0
      %v1371 = vmax.f32 %v1086, 0.0
      %v1372 = vmax.f32 %v737, 0.0
      %v1373 = vmax.f32 %v739, 0.0
      %v1374 = vmax.f32 %v1090, 0.0
      %v1375 = vmax.f32 %v1092, 0.0
      %v1376 = vmax.f32 %v741, 0.0
      %v1377 = vmax.f32 %v743, 0.0
      %v1378 = vmax.f32 %v1094, 0.0
      %v1379 = vmax.f32 %v1096, 0.0
      %v1380 = vmax.f32 %v747, 0.0
      %v1381 = vmax.f32 %v749, 0.0
      %v1382 = vmax.f32 %v1100, 0.0
      %v1383 = vmax.f32 %v1102, 0.0
      %v1384 = vmax.f32 %v751, 0.0
      %v1385 = vmax.f32 %v753, 0.0
      %v1386 = vmax.f32 %v1104, 0.0
      %v1387 = vmax.f32 %v1106, 0.0
      %v1388 = vmax.f32 %v757, 0.0
      %v1389 = vmax.f32 %v759, 0.0
      %v1390 = vmax.f32 %v1110, 0.0
      %v1391 = vmax.f32 %v1112, 0.0
      %v1392 = vmax.f32 %v761, 0.0
      %v1393 = vmax.f32 %v763, 0.0
      %v1394 = vmax.f32 %v1114, 0.0
      %v1395 = vmax.f32 %v1116, 0.0
      %v1396 = vmax.f32 %v767, 0.0
      %v1397 = vmax.f32 %v769, 0.0
      %v1398 = vmax.f32 %v1120, 0.0
      %v1399 = vmax.f32 %v1122, 0.0
      %v1400 = vmax.f32 %v771, 0.0
      %v1401 = vmax.f32 %v773, 0.0
      %v1402 = vmax.f32 %v1124, 0.0
      %v1403 = vmax.f32 %v1126, 0.0
      %v1404 = vmax.f32 %v777, 0.0
      %v1405 = vmax.f32 %v779, 0.0
      %v1406 = vmax.f32 %v1130, 0.0
      %v1407 = vmax.f32 %v1132, 0.0
      %v1408 = vmax.f32 %v781, 0.0
      %v1409 = vmax.f32 %v783, 0.0
      %v1410 = vmax.f32 %v1134, 0.0
      %v1411 = vmax.f32 %v1136, 0.0
      %v1412 = vmax.f32 %v787, 0.0
      %v1413 = vmax.f32 %v789, 0.0
      %v1414 = vmax.f32 %v1140, 0.0
      %v1415 = vmax.f32 %v1142, 0.0
      %v1416 = vmax.f32 %v791, 0.0
      %v1417 = vmax.f32 %v793, 0.0
      %v1418 = vmax.f32 %v1144, 0.0
      %v1419 = vmax.f32 %v1146, 0.0
      %v1420 = vmax.f32 %v797, 0.0
      %v1421 = vmax.f32 %v799, 0.0
      %v1422 = vmax.f32 %v1150, 0.0
      %v1423 = vmax.f32 %v1152, 0.0
      %v1424 = vmax.f32 %v801, 0.0
      %v1425 = vmax.f32 %v803, 0.0
      %v1426 = vmax.f32 %v1154, 0.0
      %v1427 = vmax.f32 %v1156, 0.0
      %v1428 = vmax.f32 %v807, 0.0
      %v1429 = vmax.f32 %v809, 0.0
      %v1430 = vmax.f32 %v1160, 0.0
      %v1431 = vmax.f32 %v1162, 0.0
      %v1432 = vmax.f32 %v811, 0.0
      %v1433 = vmax.f32 %v813, 0.0
      %v1434 = vmax.f32 %v1164, 0.0
      %v1435 = vmax.f32 %v1166, 0.0
      %v1436 = vmax.f32 %v817, 0.0
      %v1437 = vmax.f32 %v819, 0.0
      %v1438 = vmax.f32 %v1170, 0.0
      %v1439 = vmax.f32 %v1172, 0.0
      %v1440 = vmax.f32 %v821, 0.0
      %v1441 = vmax.f32 %v823, 0.0
      %v1442 = vmax.f32 %v1174, 0.0
      %v1443 = vmax.f32 %v1176, 0.0
      %v1444 = vmax.f32 %v827, 0.0
      %v1445 = vmax.f32 %v829, 0.0
      %v1446 = vmax.f32 %v1180, 0.0
      %v1447 = vmax.f32 %v1182, 0.0
      %v1448 = vmax.f32 %v831, 0.0
      %v1449 = vmax.f32 %v833, 0.0
      %v1450 = vmax.f32 %v1184, 0.0
      %v1451 = vmax.f32 %v1186, 0.0
      %v1452 = vmax.f32 %v837, 0.0
      %v1453 = vmax.f32 %v839, 0.0
      %v1454 = vmax.f32 %v1190, 0.0
      %v1455 = vmax.f32 %v1192, 0.0
      %v1456 = vmax.f32 %v841, 0.0
      %v1457 = vmax.f32 %v843, 0.0
      %v1458 = vmax.f32 %v1194, 0.0
      %v1459 = vmax.f32 %v1196, 0.0
      %v1460 = vmax.f32 %v847, 0.0
      %v1461 = vmax.f32 %v849, 0.0
      %v1462 = vmax.f32 %v1200, 0.0
      %v1463 = vmax.f32 %v1202, 0.0
      %v1464 = vmax.f32 %v851, 0.0
      %v1465 = vmax.f32 %v853, 0.0
      %v1466 = vmax.f32 %v1204, 0.0
      %v1467 = vmax.f32 %v1206, 0.0
      %v1468 = vmax.f32 %v857, 0.0
      %v1469 = vmax.f32 %v859, 0.0
      %v1470 = vmax.f32 %v1210, 0.0
      %v1471 = vmax.f32 %v1212, 0.0
      %v1472 = vmax.f32 %v861, 0.0
      %v1473 = vmax.f32 %v863, 0.0
      %v1474 = vmax.f32 %v1214, 0.0
      %v1475 = vmax.f32 %v1216, 0.0
      %v1476 = vmax.f32 %v867, 0.0
      %v1477 = vmax.f32 %v869, 0.0
      %v1478 = vmax.f32 %v1220, 0.0
      %v1479 = vmax.f32 %v1222, 0.0
      %v1480 = vmax.f32 %v871, 0.0
      %v1481 = vmax.f32 %v873, 0.0
      %v1482 = vmax.f32 %v1224, 0.0
      %v1483 = vmax.f32 %v1226, 0.0
      %v1484 = vpack.c.bf16 %v1232, %v1228
      %v1485 = vpack.c.bf16 %v1233, %v1229
      %v1486 = vpack.c.bf16 %v1234, %v1230
      %v1487 = vpack.c.bf16 %v1235, %v1231
      %v1488 = vpack.c.bf16 %v1240, %v1236
      %v1489 = vpack.c.bf16 %v1241, %v1237
      %v1490 = vpack.c.bf16 %v1242, %v1238
      %v1491 = vpack.c.bf16 %v1243, %v1239
      %v1492 = vpack.c.bf16 %v1248, %v1244
      %v1493 = vpack.c.bf16 %v1249, %v1245
      %v1494 = vpack.c.bf16 %v1250, %v1246
      %v1495 = vpack.c.bf16 %v1251, %v1247
      %v1496 = vpack.c.bf16 %v1256, %v1252
      %v1497 = vpack.c.bf16 %v1257, %v1253
      %v1498 = vpack.c.bf16 %v1258, %v1254
      %v1499 = vpack.c.bf16 %v1259, %v1255
      %v1500 = vpack.c.bf16 %v1264, %v1260
      %v1501 = vpack.c.bf16 %v1265, %v1261
      %v1502 = vpack.c.bf16 %v1266, %v1262
      %v1503 = vpack.c.bf16 %v1267, %v1263
      %v1504 = vpack.c.bf16 %v1272, %v1268
      %v1505 = vpack.c.bf16 %v1273, %v1269
      %v1506 = vpack.c.bf16 %v1274, %v1270
      %v1507 = vpack.c.bf16 %v1275, %v1271
      %v1508 = vpack.c.bf16 %v1280, %v1276
      %v1509 = vpack.c.bf16 %v1281, %v1277
      %v1510 = vpack.c.bf16 %v1282, %v1278
      %v1511 = vpack.c.bf16 %v1283, %v1279
      %v1512 = vpack.c.bf16 %v1288, %v1284
      %v1513 = vpack.c.bf16 %v1289, %v1285
      %v1514 = vpack.c.bf16 %v1290, %v1286
      %v1515 = vpack.c.bf16 %v1291, %v1287
      %v1516 = vpack.c.bf16 %v1296, %v1292
      %v1517 = vpack.c.bf16 %v1297, %v1293
      %v1518 = vpack.c.bf16 %v1298, %v1294
      %v1519 = vpack.c.bf16 %v1299, %v1295
      %v1520 = vpack.c.bf16 %v1304, %v1300
      %v1521 = vpack.c.bf16 %v1305, %v1301
      %v1522 = vpack.c.bf16 %v1306, %v1302
      %v1523 = vpack.c.bf16 %v1307, %v1303
      %v1524 = vpack.c.bf16 %v1312, %v1308
      %v1525 = vpack.c.bf16 %v1313, %v1309
      %v1526 = vpack.c.bf16 %v1314, %v1310
      %v1527 = vpack.c.bf16 %v1315, %v1311
      %v1528 = vpack.c.bf16 %v1320, %v1316
      %v1529 = vpack.c.bf16 %v1321, %v1317
      %v1530 = vpack.c.bf16 %v1322, %v1318
      %v1531 = vpack.c.bf16 %v1323, %v1319
      %v1532 = vpack.c.bf16 %v1328, %v1324
      %v1533 = vpack.c.bf16 %v1329, %v1325
      %v1534 = vpack.c.bf16 %v1330, %v1326
      %v1535 = vpack.c.bf16 %v1331, %v1327
      %v1536 = vpack.c.bf16 %v1336, %v1332
      %v1537 = vpack.c.bf16 %v1337, %v1333
      %v1538 = vpack.c.bf16 %v1338, %v1334
      %v1539 = vpack.c.bf16 %v1339, %v1335
      %v1540 = vpack.c.bf16 %v1344, %v1340
      %v1541 = vpack.c.bf16 %v1345, %v1341
      %v1542 = vpack.c.bf16 %v1346, %v1342
      %v1543 = vpack.c.bf16 %v1347, %v1343
      %v1544 = vpack.c.bf16 %v1352, %v1348
      %v1545 = vpack.c.bf16 %v1353, %v1349
      %v1546 = vpack.c.bf16 %v1354, %v1350
      %v1547 = vpack.c.bf16 %v1355, %v1351
      %v1548 = vpack.c.bf16 %v1360, %v1356
      %v1549 = vpack.c.bf16 %v1361, %v1357
      %v1550 = vpack.c.bf16 %v1362, %v1358
      %v1551 = vpack.c.bf16 %v1363, %v1359
      %v1552 = vpack.c.bf16 %v1368, %v1364
      %v1553 = vpack.c.bf16 %v1369, %v1365
      %v1554 = vpack.c.bf16 %v1370, %v1366
      %v1555 = vpack.c.bf16 %v1371, %v1367
      %v1556 = vpack.c.bf16 %v1376, %v1372
      %v1557 = vpack.c.bf16 %v1377, %v1373
      %v1558 = vpack.c.bf16 %v1378, %v1374
      %v1559 = vpack.c.bf16 %v1379, %v1375
      %v1560 = vpack.c.bf16 %v1384, %v1380
      %v1561 = vpack.c.bf16 %v1385, %v1381
      %v1562 = vpack.c.bf16 %v1386, %v1382
      %v1563 = vpack.c.bf16 %v1387, %v1383
      %v1564 = vpack.c.bf16 %v1392, %v1388
      %v1565 = vpack.c.bf16 %v1393, %v1389
      %v1566 = vpack.c.bf16 %v1394, %v1390
      %v1567 = vpack.c.bf16 %v1395, %v1391
      %v1568 = vpack.c.bf16 %v1400, %v1396
      %v1569 = vpack.c.bf16 %v1401, %v1397
      %v1570 = vpack.c.bf16 %v1402, %v1398
      %v1571 = vpack.c.bf16 %v1403, %v1399
      %v1572 = vpack.c.bf16 %v1408, %v1404
      %v1573 = vpack.c.bf16 %v1409, %v1405
      %v1574 = vpack.c.bf16 %v1410, %v1406
      %v1575 = vpack.c.bf16 %v1411, %v1407
      %v1576 = vpack.c.bf16 %v1416, %v1412
      %v1577 = vpack.c.bf16 %v1417, %v1413
      %v1578 = vpack.c.bf16 %v1418, %v1414
      %v1579 = vpack.c.bf16 %v1419, %v1415
      %v1580 = vpack.c.bf16 %v1424, %v1420
      %v1581 = vpack.c.bf16 %v1425, %v1421
      %v1582 = vpack.c.bf16 %v1426, %v1422
      %v1583 = vpack.c.bf16 %v1427, %v1423
      %v1584 = vpack.c.bf16 %v1432, %v1428
      %v1585 = vpack.c.bf16 %v1433, %v1429
      %v1586 = vpack.c.bf16 %v1434, %v1430
      %v1587 = vpack.c.bf16 %v1435, %v1431
      %v1588 = vpack.c.bf16 %v1440, %v1436
      %v1589 = vpack.c.bf16 %v1441, %v1437
      %v1590 = vpack.c.bf16 %v1442, %v1438
      %v1591 = vpack.c.bf16 %v1443, %v1439
      %v1592 = vpack.c.bf16 %v1448, %v1444
      %v1593 = vpack.c.bf16 %v1449, %v1445
      %v1594 = vpack.c.bf16 %v1450, %v1446
      %v1595 = vpack.c.bf16 %v1451, %v1447
      %v1596 = vpack.c.bf16 %v1456, %v1452
      %v1597 = vpack.c.bf16 %v1457, %v1453
      %v1598 = vpack.c.bf16 %v1458, %v1454
      %v1599 = vpack.c.bf16 %v1459, %v1455
      %v1600 = vpack.c.bf16 %v1464, %v1460
      %v1601 = vpack.c.bf16 %v1465, %v1461
      %v1602 = vpack.c.bf16 %v1466, %v1462
      %v1603 = vpack.c.bf16 %v1467, %v1463
      %v1604 = vpack.c.bf16 %v1472, %v1468
      %v1605 = vpack.c.bf16 %v1473, %v1469
      %v1606 = vpack.c.bf16 %v1474, %v1470
      %v1607 = vpack.c.bf16 %v1475, %v1471
      %v1608 = vpack.c.bf16 %v1480, %v1476
      %v1609 = vpack.c.bf16 %v1481, %v1477
      %v1610 = vpack.c.bf16 %v1482, %v1478
      %v1611 = vpack.c.bf16 %v1483, %v1479
      %v1612 = vld [vmem:[%s3] sm:$0xff]
      %v1613 = vld [vmem:[%s3 + $0x8] sm:$0xff]
      %v1614 = vld [vmem:[%s3 + $0x10] sm:$0xff]
      %v1615 = vld [vmem:[%s3 + $0x18] sm:$0xff]
      %v1616 = vld [vmem:[%s3 + $0x20] sm:$0xff]
      %v1617 = vld [vmem:[%s3 + $0x28] sm:$0xff]
      %v1618 = vld [vmem:[%s3 + $0x30] sm:$0xff]
      %v1619 = vld [vmem:[%s3 + $0x38] sm:$0xff]
      %v1620 = vld [vmem:[%s3 + $0x40] sm:$0xff]
      %v1621 = vld [vmem:[%s3 + $0x48] sm:$0xff]
      %v1622 = vld [vmem:[%s3 + $0x50] sm:$0xff]
      %v1623 = vld [vmem:[%s3 + $0x58] sm:$0xff]
      %v1624 = vld [vmem:[%s3 + $0x60] sm:$0xff]
      %v1625 = vld [vmem:[%s3 + $0x68] sm:$0xff]
      %v1626 = vld [vmem:[%s3 + $0x70] sm:$0xff]
      %v1627 = vld [vmem:[%s3 + $0x78] sm:$0xff]
      %v1628 = vld [vmem:[%s3 + $0x80] sm:$0xff]
      %v1629 = vld [vmem:[%s3 + $0x88] sm:$0xff]
      %v1630 = vld [vmem:[%s3 + $0x90] sm:$0xff]
      %v1631 = vld [vmem:[%s3 + $0x98] sm:$0xff]
      %v1632 = vld [vmem:[%s3 + $0xa0] sm:$0xff]
      %v1633 = vld [vmem:[%s3 + $0xa8] sm:$0xff]
      %v1634 = vld [vmem:[%s3 + $0xb0] sm:$0xff]
      %v1635 = vld [vmem:[%s3 + $0xb8] sm:$0xff]
      %v1636 = vld [vmem:[%s3 + $0xc0] sm:$0xff]
      %v1637 = vld [vmem:[%s3 + $0xc8] sm:$0xff]
      %v1638 = vld [vmem:[%s3 + $0xd0] sm:$0xff]
      %v1639 = vld [vmem:[%s3 + $0xd8] sm:$0xff]
      %v1640 = vld [vmem:[%s3 + $0xe0] sm:$0xff]
      %v1641 = vld [vmem:[%s3 + $0xe8] sm:$0xff]
      %v1642 = vld [vmem:[%s3 + $0xf0] sm:$0xff]
      %v1643 = vld [vmem:[%s3 + $0xf8] sm:$0xff]
      %v1644 = vld [vmem:[%s3 + $0x100] sm:$0xff]
      %v1645 = vld [vmem:[%s3 + $0x108] sm:$0xff]
      %v1646 = vld [vmem:[%s3 + $0x110] sm:$0xff]
      %v1647 = vld [vmem:[%s3 + $0x118] sm:$0xff]
      %v1648 = vld [vmem:[%s3 + $0x120] sm:$0xff]
      %v1649 = vld [vmem:[%s3 + $0x128] sm:$0xff]
      %v1650 = vld [vmem:[%s3 + $0x130] sm:$0xff]
      %v1651 = vld [vmem:[%s3 + $0x138] sm:$0xff]
      %v1652 = vld [vmem:[%s3 + $0x140] sm:$0xff]
      %v1653 = vld [vmem:[%s3 + $0x148] sm:$0xff]
      %v1654 = vld [vmem:[%s3 + $0x150] sm:$0xff]
      %v1655 = vld [vmem:[%s3 + $0x158] sm:$0xff]
      %v1656 = vld [vmem:[%s3 + $0x160] sm:$0xff]
      %v1657 = vld [vmem:[%s3 + $0x168] sm:$0xff]
      %v1658 = vld [vmem:[%s3 + $0x170] sm:$0xff]
      %v1659 = vld [vmem:[%s3 + $0x178] sm:$0xff]
      %v1660 = vld [vmem:[%s3 + $0x180] sm:$0xff]
      %v1661 = vld [vmem:[%s3 + $0x188] sm:$0xff]
      %v1662 = vld [vmem:[%s3 + $0x190] sm:$0xff]
      %v1663 = vld [vmem:[%s3 + $0x198] sm:$0xff]
      %v1664 = vld [vmem:[%s3 + $0x1a0] sm:$0xff]
      %v1665 = vld [vmem:[%s3 + $0x1a8] sm:$0xff]
      %v1666 = vld [vmem:[%s3 + $0x1b0] sm:$0xff]
      %v1667 = vld [vmem:[%s3 + $0x1b8] sm:$0xff]
      %v1668 = vld [vmem:[%s3 + $0x1c0] sm:$0xff]
      %v1669 = vld [vmem:[%s3 + $0x1c8] sm:$0xff]
      %v1670 = vld [vmem:[%s3 + $0x1d0] sm:$0xff]
      %v1671 = vld [vmem:[%s3 + $0x1d8] sm:$0xff]
      %v1672 = vld [vmem:[%s3 + $0x1e0] sm:$0xff]
      %v1673 = vld [vmem:[%s3 + $0x1e8] sm:$0xff]
      %v1674 = vld [vmem:[%s3 + $0x1f0] sm:$0xff]
      %v1675 = vld [vmem:[%s3 + $0x1f8] sm:$0xff]
      %v1676 = vld [vmem:[%s3 + $0x200] sm:$0xff]
      %v1677 = vld [vmem:[%s3 + $0x208] sm:$0xff]
      %v1678 = vld [vmem:[%s3 + $0x210] sm:$0xff]
      %v1679 = vld [vmem:[%s3 + $0x218] sm:$0xff]
      %v1680 = vld [vmem:[%s3 + $0x220] sm:$0xff]
      %v1681 = vld [vmem:[%s3 + $0x228] sm:$0xff]
      %v1682 = vld [vmem:[%s3 + $0x230] sm:$0xff]
      %v1683 = vld [vmem:[%s3 + $0x238] sm:$0xff]
      %v1684 = vld [vmem:[%s3 + $0x240] sm:$0xff]
      %v1685 = vld [vmem:[%s3 + $0x248] sm:$0xff]
      %v1686 = vld [vmem:[%s3 + $0x250] sm:$0xff]
      %v1687 = vld [vmem:[%s3 + $0x258] sm:$0xff]
      %v1688 = vld [vmem:[%s3 + $0x260] sm:$0xff]
      %v1689 = vld [vmem:[%s3 + $0x268] sm:$0xff]
      %v1690 = vld [vmem:[%s3 + $0x270] sm:$0xff]
      %v1691 = vld [vmem:[%s3 + $0x278] sm:$0xff]
      %v1692 = vld [vmem:[%s3 + $0x280] sm:$0xff]
      %v1693 = vld [vmem:[%s3 + $0x288] sm:$0xff]
      %v1694 = vld [vmem:[%s3 + $0x290] sm:$0xff]
      %v1695 = vld [vmem:[%s3 + $0x298] sm:$0xff]
      %v1696 = vld [vmem:[%s3 + $0x2a0] sm:$0xff]
      %v1697 = vld [vmem:[%s3 + $0x2a8] sm:$0xff]
      %v1698 = vld [vmem:[%s3 + $0x2b0] sm:$0xff]
      %v1699 = vld [vmem:[%s3 + $0x2b8] sm:$0xff]
      %v1700 = vld [vmem:[%s3 + $0x2c0] sm:$0xff]
      %v1701 = vld [vmem:[%s3 + $0x2c8] sm:$0xff]
      %v1702 = vld [vmem:[%s3 + $0x2d0] sm:$0xff]
      %v1703 = vld [vmem:[%s3 + $0x2d8] sm:$0xff]
      %v1704 = vld [vmem:[%s3 + $0x2e0] sm:$0xff]
      %v1705 = vld [vmem:[%s3 + $0x2e8] sm:$0xff]
      %v1706 = vld [vmem:[%s3 + $0x2f0] sm:$0xff]
      %v1707 = vld [vmem:[%s3 + $0x2f8] sm:$0xff]
      %v1708 = vld [vmem:[%s3 + $0x300] sm:$0xff]
      %v1709 = vld [vmem:[%s3 + $0x308] sm:$0xff]
      %v1710 = vld [vmem:[%s3 + $0x310] sm:$0xff]
      %v1711 = vld [vmem:[%s3 + $0x318] sm:$0xff]
      %v1712 = vld [vmem:[%s3 + $0x320] sm:$0xff]
      %v1713 = vld [vmem:[%s3 + $0x328] sm:$0xff]
      %v1714 = vld [vmem:[%s3 + $0x330] sm:$0xff]
      %v1715 = vld [vmem:[%s3 + $0x338] sm:$0xff]
      %v1716 = vld [vmem:[%s3 + $0x340] sm:$0xff]
      %v1717 = vld [vmem:[%s3 + $0x348] sm:$0xff]
      %v1718 = vld [vmem:[%s3 + $0x350] sm:$0xff]
      %v1719 = vld [vmem:[%s3 + $0x358] sm:$0xff]
      %v1720 = vld [vmem:[%s3 + $0x360] sm:$0xff]
      %v1721 = vld [vmem:[%s3 + $0x368] sm:$0xff]
      %v1722 = vld [vmem:[%s3 + $0x370] sm:$0xff]
      %v1723 = vld [vmem:[%s3 + $0x378] sm:$0xff]
      %v1724 = vld [vmem:[%s3 + $0x380] sm:$0xff]
      %v1725 = vld [vmem:[%s3 + $0x388] sm:$0xff]
      %v1726 = vld [vmem:[%s3 + $0x390] sm:$0xff]
      %v1727 = vld [vmem:[%s3 + $0x398] sm:$0xff]
      %v1728 = vld [vmem:[%s3 + $0x3a0] sm:$0xff]
      %v1729 = vld [vmem:[%s3 + $0x3a8] sm:$0xff]
      %v1730 = vld [vmem:[%s3 + $0x3b0] sm:$0xff]
      %v1731 = vld [vmem:[%s3 + $0x3b8] sm:$0xff]
      %v1732 = vld [vmem:[%s3 + $0x3c0] sm:$0xff]
      %v1733 = vld [vmem:[%s3 + $0x3c8] sm:$0xff]
      %v1734 = vld [vmem:[%s3 + $0x3d0] sm:$0xff]
      %v1735 = vld [vmem:[%s3 + $0x3d8] sm:$0xff]
      %v1736 = vld [vmem:[%s3 + $0x3e0] sm:$0xff]
      %v1737 = vld [vmem:[%s3 + $0x3e8] sm:$0xff]
      %v1738 = vld [vmem:[%s3 + $0x3f0] sm:$0xff]
      %v1739 = vld [vmem:[%s3 + $0x3f8] sm:$0xff]
      %v1740 = vld [vmem:[%s4] sm:$0xf]
      %v1742 = vlaneseq
      %v1743 = vshrl.u32 %v1742, 7
      %v1744 = vsub.s32 0, %v1743
      %v1745 = vrot.slane %v1740, %v1744
      %v1746 = vlaneseq
      %v1747 = vshrl.u32 %v1746, 7
      %v1748 = vsub.s32 1, %v1747
      %v1749 = vrot.slane %v1740, %v1748
      %v1750 = vlaneseq
      %v1751 = vshrl.u32 %v1750, 7
      %v1752 = vsub.s32 2, %v1751
      %v1753 = vrot.slane %v1740, %v1752
      %v1754 = vlaneseq
      %v1755 = vshrl.u32 %v1754, 7
      %v1756 = vsub.s32 3, %v1755
      %v1757 = vrot.slane %v1740, %v1756
      %v1890 = vunpack.c.l.b16 %v1612
      %v1891 = vunpack.c.h.b16 %v1612
      %v1892 = vunpack.c.l.b16 %v1613
      %v1893 = vunpack.c.h.b16 %v1613
      %v1894 = vunpack.c.l.b16 %v1614
      %v1895 = vunpack.c.h.b16 %v1614
      %v1896 = vunpack.c.l.b16 %v1615
      %v1897 = vunpack.c.h.b16 %v1615
      %v1898 = vunpack.c.l.b16 %v1616
      %v1899 = vunpack.c.h.b16 %v1616
      %v1900 = vunpack.c.l.b16 %v1617
      %v1901 = vunpack.c.h.b16 %v1617
      %v1902 = vunpack.c.l.b16 %v1618
      %v1903 = vunpack.c.h.b16 %v1618
      %v1904 = vunpack.c.l.b16 %v1619
      %v1905 = vunpack.c.h.b16 %v1619
      %v1906 = vunpack.c.l.b16 %v1620
      %v1907 = vunpack.c.h.b16 %v1620
      %v1908 = vunpack.c.l.b16 %v1621
      %v1909 = vunpack.c.h.b16 %v1621
      %v1910 = vunpack.c.l.b16 %v1622
      %v1911 = vunpack.c.h.b16 %v1622
      %v1912 = vunpack.c.l.b16 %v1623
      %v1913 = vunpack.c.h.b16 %v1623
      %v1914 = vunpack.c.l.b16 %v1624
      %v1915 = vunpack.c.h.b16 %v1624
      %v1916 = vunpack.c.l.b16 %v1625
      %v1917 = vunpack.c.h.b16 %v1625
      %v1918 = vunpack.c.l.b16 %v1626
      %v1919 = vunpack.c.h.b16 %v1626
      %v1920 = vunpack.c.l.b16 %v1627
      %v1921 = vunpack.c.h.b16 %v1627
      %v1922 = vunpack.c.l.b16 %v1628
      %v1923 = vunpack.c.h.b16 %v1628
      %v1924 = vunpack.c.l.b16 %v1629
      %v1925 = vunpack.c.h.b16 %v1629
      %v1926 = vunpack.c.l.b16 %v1630
      %v1927 = vunpack.c.h.b16 %v1630
      %v1928 = vunpack.c.l.b16 %v1631
      %v1929 = vunpack.c.h.b16 %v1631
      %v1930 = vunpack.c.l.b16 %v1632
      %v1931 = vunpack.c.h.b16 %v1632
      %v1932 = vunpack.c.l.b16 %v1633
      %v1933 = vunpack.c.h.b16 %v1633
      %v1934 = vunpack.c.l.b16 %v1634
      %v1935 = vunpack.c.h.b16 %v1634
      %v1936 = vunpack.c.l.b16 %v1635
      %v1937 = vunpack.c.h.b16 %v1635
      %v1938 = vunpack.c.l.b16 %v1636
      %v1939 = vunpack.c.h.b16 %v1636
      %v1940 = vunpack.c.l.b16 %v1637
      %v1941 = vunpack.c.h.b16 %v1637
      %v1942 = vunpack.c.l.b16 %v1638
      %v1943 = vunpack.c.h.b16 %v1638
      %v1944 = vunpack.c.l.b16 %v1639
      %v1945 = vunpack.c.h.b16 %v1639
      %v1946 = vunpack.c.l.b16 %v1640
      %v1947 = vunpack.c.h.b16 %v1640
      %v1948 = vunpack.c.l.b16 %v1641
      %v1949 = vunpack.c.h.b16 %v1641
      %v1950 = vunpack.c.l.b16 %v1642
      %v1951 = vunpack.c.h.b16 %v1642
      %v1952 = vunpack.c.l.b16 %v1643
      %v1953 = vunpack.c.h.b16 %v1643
      %v1954 = vunpack.c.l.b16 %v1644
      %v1955 = vunpack.c.h.b16 %v1644
      %v1956 = vunpack.c.l.b16 %v1645
      %v1957 = vunpack.c.h.b16 %v1645
      %v1958 = vunpack.c.l.b16 %v1646
      %v1959 = vunpack.c.h.b16 %v1646
      %v1960 = vunpack.c.l.b16 %v1647
      %v1961 = vunpack.c.h.b16 %v1647
      %v1962 = vunpack.c.l.b16 %v1648
      %v1963 = vunpack.c.h.b16 %v1648
      %v1964 = vunpack.c.l.b16 %v1649
      %v1965 = vunpack.c.h.b16 %v1649
      %v1966 = vunpack.c.l.b16 %v1650
      %v1967 = vunpack.c.h.b16 %v1650
      %v1968 = vunpack.c.l.b16 %v1651
      %v1969 = vunpack.c.h.b16 %v1651
      %v1970 = vunpack.c.l.b16 %v1652
      %v1971 = vunpack.c.h.b16 %v1652
      %v1972 = vunpack.c.l.b16 %v1653
      %v1973 = vunpack.c.h.b16 %v1653
      %v1974 = vunpack.c.l.b16 %v1654
      %v1975 = vunpack.c.h.b16 %v1654
      %v1976 = vunpack.c.l.b16 %v1655
      %v1977 = vunpack.c.h.b16 %v1655
      %v1978 = vunpack.c.l.b16 %v1656
      %v1979 = vunpack.c.h.b16 %v1656
      %v1980 = vunpack.c.l.b16 %v1657
      %v1981 = vunpack.c.h.b16 %v1657
      %v1982 = vunpack.c.l.b16 %v1658
      %v1983 = vunpack.c.h.b16 %v1658
      %v1984 = vunpack.c.l.b16 %v1659
      %v1985 = vunpack.c.h.b16 %v1659
      %v1986 = vunpack.c.l.b16 %v1660
      %v1987 = vunpack.c.h.b16 %v1660
      %v1988 = vunpack.c.l.b16 %v1661
      %v1989 = vunpack.c.h.b16 %v1661
      %v1990 = vunpack.c.l.b16 %v1662
      %v1991 = vunpack.c.h.b16 %v1662
      %v1992 = vunpack.c.l.b16 %v1663
      %v1993 = vunpack.c.h.b16 %v1663
      %v1994 = vunpack.c.l.b16 %v1664
      %v1995 = vunpack.c.h.b16 %v1664
      %v1996 = vunpack.c.l.b16 %v1665
      %v1997 = vunpack.c.h.b16 %v1665
      %v1998 = vunpack.c.l.b16 %v1666
      %v1999 = vunpack.c.h.b16 %v1666
      %v2000 = vunpack.c.l.b16 %v1667
      %v2001 = vunpack.c.h.b16 %v1667
      %v2002 = vunpack.c.l.b16 %v1668
      %v2003 = vunpack.c.h.b16 %v1668
      %v2004 = vunpack.c.l.b16 %v1669
      %v2005 = vunpack.c.h.b16 %v1669
      %v2006 = vunpack.c.l.b16 %v1670
      %v2007 = vunpack.c.h.b16 %v1670
      %v2008 = vunpack.c.l.b16 %v1671
      %v2009 = vunpack.c.h.b16 %v1671
      %v2010 = vunpack.c.l.b16 %v1672
      %v2011 = vunpack.c.h.b16 %v1672
      %v2012 = vunpack.c.l.b16 %v1673
      %v2013 = vunpack.c.h.b16 %v1673
      %v2014 = vunpack.c.l.b16 %v1674
      %v2015 = vunpack.c.h.b16 %v1674
      %v2016 = vunpack.c.l.b16 %v1675
      %v2017 = vunpack.c.h.b16 %v1675
      %v2018 = vunpack.c.l.b16 %v1676
      %v2019 = vunpack.c.h.b16 %v1676
      %v2020 = vunpack.c.l.b16 %v1677
      %v2021 = vunpack.c.h.b16 %v1677
      %v2022 = vunpack.c.l.b16 %v1678
      %v2023 = vunpack.c.h.b16 %v1678
      %v2024 = vunpack.c.l.b16 %v1679
      %v2025 = vunpack.c.h.b16 %v1679
      %v2026 = vunpack.c.l.b16 %v1680
      %v2027 = vunpack.c.h.b16 %v1680
      %v2028 = vunpack.c.l.b16 %v1681
      %v2029 = vunpack.c.h.b16 %v1681
      %v2030 = vunpack.c.l.b16 %v1682
      %v2031 = vunpack.c.h.b16 %v1682
      %v2032 = vunpack.c.l.b16 %v1683
      %v2033 = vunpack.c.h.b16 %v1683
      %v2034 = vunpack.c.l.b16 %v1684
      %v2035 = vunpack.c.h.b16 %v1684
      %v2036 = vunpack.c.l.b16 %v1685
      %v2037 = vunpack.c.h.b16 %v1685
      %v2038 = vunpack.c.l.b16 %v1686
      %v2039 = vunpack.c.h.b16 %v1686
      %v2040 = vunpack.c.l.b16 %v1687
      %v2041 = vunpack.c.h.b16 %v1687
      %v2042 = vunpack.c.l.b16 %v1688
      %v2043 = vunpack.c.h.b16 %v1688
      %v2044 = vunpack.c.l.b16 %v1689
      %v2045 = vunpack.c.h.b16 %v1689
      %v2046 = vunpack.c.l.b16 %v1690
      %v2047 = vunpack.c.h.b16 %v1690
      %v2048 = vunpack.c.l.b16 %v1691
      %v2049 = vunpack.c.h.b16 %v1691
      %v2050 = vunpack.c.l.b16 %v1692
      %v2051 = vunpack.c.h.b16 %v1692
      %v2052 = vunpack.c.l.b16 %v1693
      %v2053 = vunpack.c.h.b16 %v1693
      %v2054 = vunpack.c.l.b16 %v1694
      %v2055 = vunpack.c.h.b16 %v1694
      %v2056 = vunpack.c.l.b16 %v1695
      %v2057 = vunpack.c.h.b16 %v1695
      %v2058 = vunpack.c.l.b16 %v1696
      %v2059 = vunpack.c.h.b16 %v1696
      %v2060 = vunpack.c.l.b16 %v1697
      %v2061 = vunpack.c.h.b16 %v1697
      %v2062 = vunpack.c.l.b16 %v1698
      %v2063 = vunpack.c.h.b16 %v1698
      %v2064 = vunpack.c.l.b16 %v1699
      %v2065 = vunpack.c.h.b16 %v1699
      %v2066 = vunpack.c.l.b16 %v1700
      %v2067 = vunpack.c.h.b16 %v1700
      %v2068 = vunpack.c.l.b16 %v1701
      %v2069 = vunpack.c.h.b16 %v1701
      %v2070 = vunpack.c.l.b16 %v1702
      %v2071 = vunpack.c.h.b16 %v1702
      %v2072 = vunpack.c.l.b16 %v1703
      %v2073 = vunpack.c.h.b16 %v1703
      %v2074 = vunpack.c.l.b16 %v1704
      %v2075 = vunpack.c.h.b16 %v1704
      %v2076 = vunpack.c.l.b16 %v1705
      %v2077 = vunpack.c.h.b16 %v1705
      %v2078 = vunpack.c.l.b16 %v1706
      %v2079 = vunpack.c.h.b16 %v1706
      %v2080 = vunpack.c.l.b16 %v1707
      %v2081 = vunpack.c.h.b16 %v1707
      %v2082 = vunpack.c.l.b16 %v1708
      %v2083 = vunpack.c.h.b16 %v1708
      %v2084 = vunpack.c.l.b16 %v1709
      %v2085 = vunpack.c.h.b16 %v1709
      %v2086 = vunpack.c.l.b16 %v1710
      %v2087 = vunpack.c.h.b16 %v1710
      %v2088 = vunpack.c.l.b16 %v1711
      %v2089 = vunpack.c.h.b16 %v1711
      %v2090 = vunpack.c.l.b16 %v1712
      %v2091 = vunpack.c.h.b16 %v1712
      %v2092 = vunpack.c.l.b16 %v1713
      %v2093 = vunpack.c.h.b16 %v1713
      %v2094 = vunpack.c.l.b16 %v1714
      %v2095 = vunpack.c.h.b16 %v1714
      %v2096 = vunpack.c.l.b16 %v1715
      %v2097 = vunpack.c.h.b16 %v1715
      %v2098 = vunpack.c.l.b16 %v1716
      %v2099 = vunpack.c.h.b16 %v1716
      %v2100 = vunpack.c.l.b16 %v1717
      %v2101 = vunpack.c.h.b16 %v1717
      %v2102 = vunpack.c.l.b16 %v1718
      %v2103 = vunpack.c.h.b16 %v1718
      %v2104 = vunpack.c.l.b16 %v1719
      %v2105 = vunpack.c.h.b16 %v1719
      %v2106 = vunpack.c.l.b16 %v1720
      %v2107 = vunpack.c.h.b16 %v1720
      %v2108 = vunpack.c.l.b16 %v1721
      %v2109 = vunpack.c.h.b16 %v1721
      %v2110 = vunpack.c.l.b16 %v1722
      %v2111 = vunpack.c.h.b16 %v1722
      %v2112 = vunpack.c.l.b16 %v1723
      %v2113 = vunpack.c.h.b16 %v1723
      %v2114 = vunpack.c.l.b16 %v1724
      %v2115 = vunpack.c.h.b16 %v1724
      %v2116 = vunpack.c.l.b16 %v1725
      %v2117 = vunpack.c.h.b16 %v1725
      %v2118 = vunpack.c.l.b16 %v1726
      %v2119 = vunpack.c.h.b16 %v1726
      %v2120 = vunpack.c.l.b16 %v1727
      %v2121 = vunpack.c.h.b16 %v1727
      %v2122 = vunpack.c.l.b16 %v1728
      %v2123 = vunpack.c.h.b16 %v1728
      %v2124 = vunpack.c.l.b16 %v1729
      %v2125 = vunpack.c.h.b16 %v1729
      %v2126 = vunpack.c.l.b16 %v1730
      %v2127 = vunpack.c.h.b16 %v1730
      %v2128 = vunpack.c.l.b16 %v1731
      %v2129 = vunpack.c.h.b16 %v1731
      %v2130 = vunpack.c.l.b16 %v1732
      %v2131 = vunpack.c.h.b16 %v1732
      %v2132 = vunpack.c.l.b16 %v1733
      %v2133 = vunpack.c.h.b16 %v1733
      %v2134 = vunpack.c.l.b16 %v1734
      %v2135 = vunpack.c.h.b16 %v1734
      %v2136 = vunpack.c.l.b16 %v1735
      %v2137 = vunpack.c.h.b16 %v1735
      %v2138 = vunpack.c.l.b16 %v1736
      %v2139 = vunpack.c.h.b16 %v1736
      %v2140 = vunpack.c.l.b16 %v1737
      %v2141 = vunpack.c.h.b16 %v1737
      %v2142 = vunpack.c.l.b16 %v1738
      %v2143 = vunpack.c.h.b16 %v1738
      %v2144 = vunpack.c.l.b16 %v1739
      %v2145 = vunpack.c.h.b16 %v1739
      %v2146 = vpack.c.b16 %v1894, %v1890
      %v2147 = vpack.c.b16 %v1895, %v1891
      %v2148 = vpack.c.b16 %v1896, %v1892
      %v2149 = vpack.c.b16 %v1897, %v1893
      %v2150 = vpack.c.b16 %v1902, %v1898
      %v2151 = vpack.c.b16 %v1903, %v1899
      %v2152 = vpack.c.b16 %v1904, %v1900
      %v2153 = vpack.c.b16 %v1905, %v1901
      %v2154 = vpack.c.b16 %v1910, %v1906
      %v2155 = vpack.c.b16 %v1911, %v1907
      %v2156 = vpack.c.b16 %v1912, %v1908
      %v2157 = vpack.c.b16 %v1913, %v1909
      %v2158 = vpack.c.b16 %v1918, %v1914
      %v2159 = vpack.c.b16 %v1919, %v1915
      %v2160 = vpack.c.b16 %v1920, %v1916
      %v2161 = vpack.c.b16 %v1921, %v1917
      %v2162 = vpack.c.b16 %v1926, %v1922
      %v2163 = vpack.c.b16 %v1927, %v1923
      %v2164 = vpack.c.b16 %v1928, %v1924
      %v2165 = vpack.c.b16 %v1929, %v1925
      %v2166 = vpack.c.b16 %v1934, %v1930
      %v2167 = vpack.c.b16 %v1935, %v1931
      %v2168 = vpack.c.b16 %v1936, %v1932
      %v2169 = vpack.c.b16 %v1937, %v1933
      %v2170 = vpack.c.b16 %v1942, %v1938
      %v2171 = vpack.c.b16 %v1943, %v1939
      %v2172 = vpack.c.b16 %v1944, %v1940
      %v2173 = vpack.c.b16 %v1945, %v1941
      %v2174 = vpack.c.b16 %v1950, %v1946
      %v2175 = vpack.c.b16 %v1951, %v1947
      %v2176 = vpack.c.b16 %v1952, %v1948
      %v2177 = vpack.c.b16 %v1953, %v1949
      %v2178 = vpack.c.b16 %v1958, %v1954
      %v2179 = vpack.c.b16 %v1959, %v1955
      %v2180 = vpack.c.b16 %v1960, %v1956
      %v2181 = vpack.c.b16 %v1961, %v1957
      %v2182 = vpack.c.b16 %v1966, %v1962
      %v2183 = vpack.c.b16 %v1967, %v1963
      %v2184 = vpack.c.b16 %v1968, %v1964
      %v2185 = vpack.c.b16 %v1969, %v1965
      %v2186 = vpack.c.b16 %v1974, %v1970
      %v2187 = vpack.c.b16 %v1975, %v1971
      %v2188 = vpack.c.b16 %v1976, %v1972
      %v2189 = vpack.c.b16 %v1977, %v1973
      %v2190 = vpack.c.b16 %v1982, %v1978
      %v2191 = vpack.c.b16 %v1983, %v1979
      %v2192 = vpack.c.b16 %v1984, %v1980
      %v2193 = vpack.c.b16 %v1985, %v1981
      %v2194 = vpack.c.b16 %v1990, %v1986
      %v2195 = vpack.c.b16 %v1991, %v1987
      %v2196 = vpack.c.b16 %v1992, %v1988
      %v2197 = vpack.c.b16 %v1993, %v1989
      %v2198 = vpack.c.b16 %v1998, %v1994
      %v2199 = vpack.c.b16 %v1999, %v1995
      %v2200 = vpack.c.b16 %v2000, %v1996
      %v2201 = vpack.c.b16 %v2001, %v1997
      %v2202 = vpack.c.b16 %v2006, %v2002
      %v2203 = vpack.c.b16 %v2007, %v2003
      %v2204 = vpack.c.b16 %v2008, %v2004
      %v2205 = vpack.c.b16 %v2009, %v2005
      %v2206 = vpack.c.b16 %v2014, %v2010
      %v2207 = vpack.c.b16 %v2015, %v2011
      %v2208 = vpack.c.b16 %v2016, %v2012
      %v2209 = vpack.c.b16 %v2017, %v2013
      %v2210 = vpack.c.b16 %v2022, %v2018
      %v2211 = vpack.c.b16 %v2023, %v2019
      %v2212 = vpack.c.b16 %v2024, %v2020
      %v2213 = vpack.c.b16 %v2025, %v2021
      %v2214 = vpack.c.b16 %v2030, %v2026
      %v2215 = vpack.c.b16 %v2031, %v2027
      %v2216 = vpack.c.b16 %v2032, %v2028
      %v2217 = vpack.c.b16 %v2033, %v2029
      %v2218 = vpack.c.b16 %v2038, %v2034
      %v2219 = vpack.c.b16 %v2039, %v2035
      %v2220 = vpack.c.b16 %v2040, %v2036
      %v2221 = vpack.c.b16 %v2041, %v2037
      %v2222 = vpack.c.b16 %v2046, %v2042
      %v2223 = vpack.c.b16 %v2047, %v2043
      %v2224 = vpack.c.b16 %v2048, %v2044
      %v2225 = vpack.c.b16 %v2049, %v2045
      %v2226 = vpack.c.b16 %v2054, %v2050
      %v2227 = vpack.c.b16 %v2055, %v2051
      %v2228 = vpack.c.b16 %v2056, %v2052
      %v2229 = vpack.c.b16 %v2057, %v2053
      %v2230 = vpack.c.b16 %v2062, %v2058
      %v2231 = vpack.c.b16 %v2063, %v2059
      %v2232 = vpack.c.b16 %v2064, %v2060
      %v2233 = vpack.c.b16 %v2065, %v2061
      %v2234 = vpack.c.b16 %v2070, %v2066
      %v2235 = vpack.c.b16 %v2071, %v2067
      %v2236 = vpack.c.b16 %v2072, %v2068
      %v2237 = vpack.c.b16 %v2073, %v2069
      %v2238 = vpack.c.b16 %v2078, %v2074
      %v2239 = vpack.c.b16 %v2079, %v2075
      %v2240 = vpack.c.b16 %v2080, %v2076
      %v2241 = vpack.c.b16 %v2081, %v2077
      %v2242 = vpack.c.b16 %v2086, %v2082
      %v2243 = vpack.c.b16 %v2087, %v2083
      %v2244 = vpack.c.b16 %v2088, %v2084
      %v2245 = vpack.c.b16 %v2089, %v2085
      %v2246 = vpack.c.b16 %v2094, %v2090
      %v2247 = vpack.c.b16 %v2095, %v2091
      %v2248 = vpack.c.b16 %v2096, %v2092
      %v2249 = vpack.c.b16 %v2097, %v2093
      %v2250 = vpack.c.b16 %v2102, %v2098
      %v2251 = vpack.c.b16 %v2103, %v2099
      %v2252 = vpack.c.b16 %v2104, %v2100
      %v2253 = vpack.c.b16 %v2105, %v2101
      %v2254 = vpack.c.b16 %v2110, %v2106
      %v2255 = vpack.c.b16 %v2111, %v2107
      %v2256 = vpack.c.b16 %v2112, %v2108
      %v2257 = vpack.c.b16 %v2113, %v2109
      %v2258 = vpack.c.b16 %v2118, %v2114
      %v2259 = vpack.c.b16 %v2119, %v2115
      %v2260 = vpack.c.b16 %v2120, %v2116
      %v2261 = vpack.c.b16 %v2121, %v2117
      %v2262 = vpack.c.b16 %v2126, %v2122
      %v2263 = vpack.c.b16 %v2127, %v2123
      %v2264 = vpack.c.b16 %v2128, %v2124
      %v2265 = vpack.c.b16 %v2129, %v2125
      %v2266 = vpack.c.b16 %v2134, %v2130
      %v2267 = vpack.c.b16 %v2135, %v2131
      %v2268 = vpack.c.b16 %v2136, %v2132
      %v2269 = vpack.c.b16 %v2137, %v2133
      %v2270 = vpack.c.b16 %v2142, %v2138
      %v2271 = vpack.c.b16 %v2143, %v2139
      %v2272 = vpack.c.b16 %v2144, %v2140
      %v2273 = vpack.c.b16 %v2145, %v2141
      %2402 = vmatprep.subr.bf16.mxu0 %v2147
      %2403 = vmatpush1.bf16.msra.mxu0 %v2146
      %2404 = vmatprep.subr.bf16.mxu0 %v2151
      %2405 = vmatpush1.bf16.msra.mxu0 %v2150
      %2406 = vmatprep.subr.bf16.mxu0 %v2155
      %2407 = vmatpush1.bf16.msra.mxu0 %v2154
      %2408 = vmatprep.subr.bf16.mxu0 %v2159
      %2409 = vmatpush1.bf16.msra.mxu0 %v2158
      %2410 = vmatprep.subr.bf16.mxu0 %v2163
      %2411 = vmatpush1.bf16.msra.mxu0 %v2162
      %2412 = vmatprep.subr.bf16.mxu0 %v2167
      %2413 = vmatpush1.bf16.msra.mxu0 %v2166
      %2414 = vmatprep.subr.bf16.mxu0 %v2171
      %2415 = vmatpush1.bf16.msra.mxu0 %v2170
      %2416 = vmatprep.subr.bf16.mxu0 %v2175
      %2417 = vmatpush1.bf16.msra.mxu0 %v2174
      %2418 = vmatprep.subr.bf16.mxu0 %v2179
      %2419 = vmatpush1.bf16.msra.mxu0 %v2178
      %2420 = vmatprep.subr.bf16.mxu0 %v2183
      %2421 = vmatpush1.bf16.msra.mxu0 %v2182
      %2422 = vmatprep.subr.bf16.mxu0 %v2187
      %2423 = vmatpush1.bf16.msra.mxu0 %v2186
      %2424 = vmatprep.subr.bf16.mxu0 %v2191
      %2425 = vmatpush1.bf16.msra.mxu0 %v2190
      %2426 = vmatprep.subr.bf16.mxu0 %v2195
      %2427 = vmatpush1.bf16.msra.mxu0 %v2194
      %2428 = vmatprep.subr.bf16.mxu0 %v2199
      %2429 = vmatpush1.bf16.msra.mxu0 %v2198
      %2430 = vmatprep.subr.bf16.mxu0 %v2203
      %2431 = vmatpush1.bf16.msra.mxu0 %v2202
      %2432 = vmatprep.subr.bf16.mxu0 %v2207
      %2433 = vmatpush1.bf16.msra.mxu0 %v2206
      %2434 = vmatprep.mubr.bf16.mxu0 %v1485
      %2435 = vmatmul.mubr.bf16.gmra.mrb[0].mxu0 %v1484
      %v2436 = vpop.f32.mrb[0].mxu0
      %v2437 = vadd.f32 %v1745, %v2436
      %v2438 = vpop.f32.mrb[0].mxu0
      %v2439 = vadd.f32 %v1749, %v2438
      %v2440 = vpop.f32.mrb[0].mxu0
      %v2441 = vadd.f32 %v1745, %v2440
      %v2442 = vpop.f32.mrb[0].mxu0
      %v2443 = vadd.f32 %v1749, %v2442
      %2444 = vmatprep.mubr.bf16.mxu0 %v1489
      %2445 = vmatmul.mubr.bf16.gmra.mrb[0].mxu0 %v1488
      %v2446 = vpop.f32.mrb[0].mxu0
      %v2447 = vadd.f32 %v1745, %v2446
      %v2448 = vpop.f32.mrb[0].mxu0
      %v2449 = vadd.f32 %v1749, %v2448
      %v2450 = vpop.f32.mrb[0].mxu0
      %v2451 = vadd.f32 %v1745, %v2450
      %v2452 = vpop.f32.mrb[0].mxu0
      %v2453 = vadd.f32 %v1749, %v2452
      %2454 = vmatprep.mubr.bf16.mxu0 %v1493
      %2455 = vmatmul.mubr.bf16.gmra.mrb[0].mxu0 %v1492
      %v2456 = vpop.f32.mrb[0].mxu0
      %v2457 = vadd.f32 %v1745, %v2456
      %v2458 = vpop.f32.mrb[0].mxu0
      %v2459 = vadd.f32 %v1749, %v2458
      %v2460 = vpop.f32.mrb[0].mxu0
      %v2461 = vadd.f32 %v1745, %v2460
      %v2462 = vpop.f32.mrb[0].mxu0
      %v2463 = vadd.f32 %v1749, %v2462
      %2464 = vmatprep.mubr.bf16.mxu0 %v1497
      %2465 = vmatmul.mubr.bf16.gmra.mrb[0].mxu0 %v1496
      %v2466 = vpop.f32.mrb[0].mxu0
      %v2467 = vadd.f32 %v1745, %v2466
      %v2468 = vpop.f32.mrb[0].mxu0
      %v2469 = vadd.f32 %v1749, %v2468
      %v2470 = vpop.f32.mrb[0].mxu0
      %v2471 = vadd.f32 %v1745, %v2470
      %v2472 = vpop.f32.mrb[0].mxu0
      %v2473 = vadd.f32 %v1749, %v2472
      %2474 = vmatprep.mubr.bf16.mxu0 %v1501
      %2475 = vmatmul.mubr.bf16.gmra.mrb[0].mxu0 %v1500
      %v2476 = vpop.f32.mrb[0].mxu0
      %v2477 = vadd.f32 %v1745, %v2476
      %v2478 = vpop.f32.mrb[0].mxu0
      %v2479 = vadd.f32 %v1749, %v2478
      %v2480 = vpop.f32.mrb[0].mxu0
      %v2481 = vadd.f32 %v1745, %v2480
      %v2482 = vpop.f32.mrb[0].mxu0
      %v2483 = vadd.f32 %v1749, %v2482
      %2484 = vmatprep.mubr.bf16.mxu0 %v1505
      %2485 = vmatmul.mubr.bf16.gmra.mrb[0].mxu0 %v1504
      %v2486 = vpop.f32.mrb[0].mxu0
      %v2487 = vadd.f32 %v1745, %v2486
      %v2488 = vpop.f32.mrb[0].mxu0
      %v2489 = vadd.f32 %v1749, %v2488
      %v2490 = vpop.f32.mrb[0].mxu0
      %v2491 = vadd.f32 %v1745, %v2490
      %v2492 = vpop.f32.mrb[0].mxu0
      %v2493 = vadd.f32 %v1749, %v2492
      %2494 = vmatprep.mubr.bf16.mxu0 %v1509
      %2495 = vmatmul.mubr.bf16.gmra.mrb[0].mxu0 %v1508
      %v2496 = vpop.f32.mrb[0].mxu0
      %v2497 = vadd.f32 %v1745, %v2496
      %v2498 = vpop.f32.mrb[0].mxu0
      %v2499 = vadd.f32 %v1749, %v2498
      %v2500 = vpop.f32.mrb[0].mxu0
      %v2501 = vadd.f32 %v1745, %v2500
      %v2502 = vpop.f32.mrb[0].mxu0
      %v2503 = vadd.f32 %v1749, %v2502
      %2504 = vmatprep.mubr.bf16.mxu0 %v1513
      %2505 = vmatmul.mubr.bf16.gmra.mrb[0].mxu0 %v1512
      %v2506 = vpop.f32.mrb[0].mxu0
      %v2507 = vadd.f32 %v1745, %v2506
      %v2508 = vpop.f32.mrb[0].mxu0
      %v2509 = vadd.f32 %v1749, %v2508
      %v2510 = vpop.f32.mrb[0].mxu0
      %v2511 = vadd.f32 %v1745, %v2510
      %v2512 = vpop.f32.mrb[0].mxu0
      %v2513 = vadd.f32 %v1749, %v2512
      %2514 = vmatprep.mubr.bf16.mxu0 %v1517
      %2515 = vmatmul.mubr.bf16.gmra.mrb[0].mxu0 %v1516
      %v2516 = vpop.f32.mrb[0].mxu0
      %v2517 = vadd.f32 %v1745, %v2516
      %v2518 = vpop.f32.mrb[0].mxu0
      %v2519 = vadd.f32 %v1749, %v2518
      %v2520 = vpop.f32.mrb[0].mxu0
      %v2521 = vadd.f32 %v1745, %v2520
      %v2522 = vpop.f32.mrb[0].mxu0
      %v2523 = vadd.f32 %v1749, %v2522
      %2524 = vmatprep.mubr.bf16.mxu0 %v1521
      %2525 = vmatmul.mubr.bf16.gmra.mrb[0].mxu0 %v1520
      %v2526 = vpop.f32.mrb[0].mxu0
      %v2527 = vadd.f32 %v1745, %v2526
      %v2528 = vpop.f32.mrb[0].mxu0
      %v2529 = vadd.f32 %v1749, %v2528
      %v2530 = vpop.f32.mrb[0].mxu0
      %v2531 = vadd.f32 %v1745, %v2530
      %v2532 = vpop.f32.mrb[0].mxu0
      %v2533 = vadd.f32 %v1749, %v2532
      %2534 = vmatprep.mubr.bf16.mxu0 %v1525
      %2535 = vmatmul.mubr.bf16.gmra.mrb[0].mxu0 %v1524
      %v2536 = vpop.f32.mrb[0].mxu0
      %v2537 = vadd.f32 %v1745, %v2536
      %v2538 = vpop.f32.mrb[0].mxu0
      %v2539 = vadd.f32 %v1749, %v2538
      %v2540 = vpop.f32.mrb[0].mxu0
      %v2541 = vadd.f32 %v1745, %v2540
      %v2542 = vpop.f32.mrb[0].mxu0
      %v2543 = vadd.f32 %v1749, %v2542
      %2544 = vmatprep.mubr.bf16.mxu0 %v1529
      %2545 = vmatmul.mubr.bf16.gmra.mrb[0].mxu0 %v1528
      %v2546 = vpop.f32.mrb[0].mxu0
      %v2547 = vadd.f32 %v1745, %v2546
      %v2548 = vpop.f32.mrb[0].mxu0
      %v2549 = vadd.f32 %v1749, %v2548
      %v2550 = vpop.f32.mrb[0].mxu0
      %v2551 = vadd.f32 %v1745, %v2550
      %v2552 = vpop.f32.mrb[0].mxu0
      %v2553 = vadd.f32 %v1749, %v2552
      %2554 = vmatprep.mubr.bf16.mxu0 %v1533
      %2555 = vmatmul.mubr.bf16.gmra.mrb[0].mxu0 %v1532
      %v2556 = vpop.f32.mrb[0].mxu0
      %v2557 = vadd.f32 %v1745, %v2556
      %v2558 = vpop.f32.mrb[0].mxu0
      %v2559 = vadd.f32 %v1749, %v2558
      %v2560 = vpop.f32.mrb[0].mxu0
      %v2561 = vadd.f32 %v1745, %v2560
      %v2562 = vpop.f32.mrb[0].mxu0
      %v2563 = vadd.f32 %v1749, %v2562
      %2564 = vmatprep.mubr.bf16.mxu0 %v1537
      %2565 = vmatmul.mubr.bf16.gmra.mrb[0].mxu0 %v1536
      %v2566 = vpop.f32.mrb[0].mxu0
      %v2567 = vadd.f32 %v1745, %v2566
      %v2568 = vpop.f32.mrb[0].mxu0
      %v2569 = vadd.f32 %v1749, %v2568
      %v2570 = vpop.f32.mrb[0].mxu0
      %v2571 = vadd.f32 %v1745, %v2570
      %v2572 = vpop.f32.mrb[0].mxu0
      %v2573 = vadd.f32 %v1749, %v2572
      %2574 = vmatprep.mubr.bf16.mxu0 %v1541
      %2575 = vmatmul.mubr.bf16.gmra.mrb[0].mxu0 %v1540
      %v2576 = vpop.f32.mrb[0].mxu0
      %v2577 = vadd.f32 %v1745, %v2576
      %v2578 = vpop.f32.mrb[0].mxu0
      %v2579 = vadd.f32 %v1749, %v2578
      %v2580 = vpop.f32.mrb[0].mxu0
      %v2581 = vadd.f32 %v1745, %v2580
      %v2582 = vpop.f32.mrb[0].mxu0
      %v2583 = vadd.f32 %v1749, %v2582
      %2584 = vmatprep.mubr.bf16.mxu0 %v1545
      %2585 = vmatmul.mubr.bf16.gmra.mrb[0].mxu0 %v1544
      %v2586 = vpop.f32.mrb[0].mxu0
      %v2587 = vadd.f32 %v1745, %v2586
      %v2588 = vpop.f32.mrb[0].mxu0
      %v2589 = vadd.f32 %v1749, %v2588
      %v2590 = vpop.f32.mrb[0].mxu0
      %v2591 = vadd.f32 %v1745, %v2590
      %v2592 = vpop.f32.mrb[0].mxu0
      %v2593 = vadd.f32 %v1749, %v2592
      %2594 = vmatprep.mubr.bf16.mxu0 %v1549
      %2595 = vmatmul.mubr.bf16.gmra.mrb[0].mxu0 %v1548
      %v2596 = vpop.f32.mrb[0].mxu0
      %v2597 = vadd.f32 %v1745, %v2596
      %v2598 = vpop.f32.mrb[0].mxu0
      %v2599 = vadd.f32 %v1749, %v2598
      %v2600 = vpop.f32.mrb[0].mxu0
      %v2601 = vadd.f32 %v1745, %v2600
      %v2602 = vpop.f32.mrb[0].mxu0
      %v2603 = vadd.f32 %v1749, %v2602
      %2604 = vmatprep.mubr.bf16.mxu0 %v1553
      %2605 = vmatmul.mubr.bf16.gmra.mrb[0].mxu0 %v1552
      %v2606 = vpop.f32.mrb[0].mxu0
      %v2607 = vadd.f32 %v1745, %v2606
      %v2608 = vpop.f32.mrb[0].mxu0
      %v2609 = vadd.f32 %v1749, %v2608
      %v2610 = vpop.f32.mrb[0].mxu0
      %v2611 = vadd.f32 %v1745, %v2610
      %v2612 = vpop.f32.mrb[0].mxu0
      %v2613 = vadd.f32 %v1749, %v2612
      %2614 = vmatprep.mubr.bf16.mxu0 %v1557
      %2615 = vmatmul.mubr.bf16.gmra.mrb[0].mxu0 %v1556
      %v2616 = vpop.f32.mrb[0].mxu0
      %v2617 = vadd.f32 %v1745, %v2616
      %v2618 = vpop.f32.mrb[0].mxu0
      %v2619 = vadd.f32 %v1749, %v2618
      %v2620 = vpop.f32.mrb[0].mxu0
      %v2621 = vadd.f32 %v1745, %v2620
      %v2622 = vpop.f32.mrb[0].mxu0
      %v2623 = vadd.f32 %v1749, %v2622
      %2624 = vmatprep.mubr.bf16.mxu0 %v1561
      %2625 = vmatmul.mubr.bf16.gmra.mrb[0].mxu0 %v1560
      %v2626 = vpop.f32.mrb[0].mxu0
      %v2627 = vadd.f32 %v1745, %v2626
      %v2628 = vpop.f32.mrb[0].mxu0
      %v2629 = vadd.f32 %v1749, %v2628
      %v2630 = vpop.f32.mrb[0].mxu0
      %v2631 = vadd.f32 %v1745, %v2630
      %v2632 = vpop.f32.mrb[0].mxu0
      %v2633 = vadd.f32 %v1749, %v2632
      %2634 = vmatprep.mubr.bf16.mxu0 %v1565
      %2635 = vmatmul.mubr.bf16.gmra.mrb[0].mxu0 %v1564
      %v2636 = vpop.f32.mrb[0].mxu0
      %v2637 = vadd.f32 %v1745, %v2636
      %v2638 = vpop.f32.mrb[0].mxu0
      %v2639 = vadd.f32 %v1749, %v2638
      %v2640 = vpop.f32.mrb[0].mxu0
      %v2641 = vadd.f32 %v1745, %v2640
      %v2642 = vpop.f32.mrb[0].mxu0
      %v2643 = vadd.f32 %v1749, %v2642
      %2644 = vmatprep.mubr.bf16.mxu0 %v1569
      %2645 = vmatmul.mubr.bf16.gmra.mrb[0].mxu0 %v1568
      %v2646 = vpop.f32.mrb[0].mxu0
      %v2647 = vadd.f32 %v1745, %v2646
      %v2648 = vpop.f32.mrb[0].mxu0
      %v2649 = vadd.f32 %v1749, %v2648
      %v2650 = vpop.f32.mrb[0].mxu0
      %v2651 = vadd.f32 %v1745, %v2650
      %v2652 = vpop.f32.mrb[0].mxu0
      %v2653 = vadd.f32 %v1749, %v2652
      %2654 = vmatprep.mubr.bf16.mxu0 %v1573
      %2655 = vmatmul.mubr.bf16.gmra.mrb[0].mxu0 %v1572
      %v2656 = vpop.f32.mrb[0].mxu0
      %v2657 = vadd.f32 %v1745, %v2656
      %v2658 = vpop.f32.mrb[0].mxu0
      %v2659 = vadd.f32 %v1749, %v2658
      %v2660 = vpop.f32.mrb[0].mxu0
      %v2661 = vadd.f32 %v1745, %v2660
      %v2662 = vpop.f32.mrb[0].mxu0
      %v2663 = vadd.f32 %v1749, %v2662
      %2664 = vmatprep.mubr.bf16.mxu0 %v1577
      %2665 = vmatmul.mubr.bf16.gmra.mrb[0].mxu0 %v1576
      %v2666 = vpop.f32.mrb[0].mxu0
      %v2667 = vadd.f32 %v1745, %v2666
      %v2668 = vpop.f32.mrb[0].mxu0
      %v2669 = vadd.f32 %v1749, %v2668
      %v2670 = vpop.f32.mrb[0].mxu0
      %v2671 = vadd.f32 %v1745, %v2670
      %v2672 = vpop.f32.mrb[0].mxu0
      %v2673 = vadd.f32 %v1749, %v2672
      %2674 = vmatprep.mubr.bf16.mxu0 %v1581
      %2675 = vmatmul.mubr.bf16.gmra.mrb[0].mxu0 %v1580
      %v2676 = vpop.f32.mrb[0].mxu0
      %v2677 = vadd.f32 %v1745, %v2676
      %v2678 = vpop.f32.mrb[0].mxu0
      %v2679 = vadd.f32 %v1749, %v2678
      %v2680 = vpop.f32.mrb[0].mxu0
      %v2681 = vadd.f32 %v1745, %v2680
      %v2682 = vpop.f32.mrb[0].mxu0
      %v2683 = vadd.f32 %v1749, %v2682
      %2684 = vmatprep.mubr.bf16.mxu0 %v1585
      %2685 = vmatmul.mubr.bf16.gmra.mrb[0].mxu0 %v1584
      %v2686 = vpop.f32.mrb[0].mxu0
      %v2687 = vadd.f32 %v1745, %v2686
      %v2688 = vpop.f32.mrb[0].mxu0
      %v2689 = vadd.f32 %v1749, %v2688
      %v2690 = vpop.f32.mrb[0].mxu0
      %v2691 = vadd.f32 %v1745, %v2690
      %v2692 = vpop.f32.mrb[0].mxu0
      %v2693 = vadd.f32 %v1749, %v2692
      %2694 = vmatprep.mubr.bf16.mxu0 %v1589
      %2695 = vmatmul.mubr.bf16.gmra.mrb[0].mxu0 %v1588
      %v2696 = vpop.f32.mrb[0].mxu0
      %v2697 = vadd.f32 %v1745, %v2696
      %v2698 = vpop.f32.mrb[0].mxu0
      %v2699 = vadd.f32 %v1749, %v2698
      %v2700 = vpop.f32.mrb[0].mxu0
      %v2701 = vadd.f32 %v1745, %v2700
      %v2702 = vpop.f32.mrb[0].mxu0
      %v2703 = vadd.f32 %v1749, %v2702
      %2704 = vmatprep.mubr.bf16.mxu0 %v1593
      %2705 = vmatmul.mubr.bf16.gmra.mrb[0].mxu0 %v1592
      %v2706 = vpop.f32.mrb[0].mxu0
      %v2707 = vadd.f32 %v1745, %v2706
      %v2708 = vpop.f32.mrb[0].mxu0
      %v2709 = vadd.f32 %v1749, %v2708
      %v2710 = vpop.f32.mrb[0].mxu0
      %v2711 = vadd.f32 %v1745, %v2710
      %v2712 = vpop.f32.mrb[0].mxu0
      %v2713 = vadd.f32 %v1749, %v2712
      %2714 = vmatprep.mubr.bf16.mxu0 %v1597
      %2715 = vmatmul.mubr.bf16.gmra.mrb[0].mxu0 %v1596
      %v2716 = vpop.f32.mrb[0].mxu0
      %v2717 = vadd.f32 %v1745, %v2716
      %v2718 = vpop.f32.mrb[0].mxu0
      %v2719 = vadd.f32 %v1749, %v2718
      %v2720 = vpop.f32.mrb[0].mxu0
      %v2721 = vadd.f32 %v1745, %v2720
      %v2722 = vpop.f32.mrb[0].mxu0
      %v2723 = vadd.f32 %v1749, %v2722
      %2724 = vmatprep.mubr.bf16.mxu0 %v1601
      %2725 = vmatmul.mubr.bf16.gmra.mrb[0].mxu0 %v1600
      %v2726 = vpop.f32.mrb[0].mxu0
      %v2727 = vadd.f32 %v1745, %v2726
      %v2728 = vpop.f32.mrb[0].mxu0
      %v2729 = vadd.f32 %v1749, %v2728
      %v2730 = vpop.f32.mrb[0].mxu0
      %v2731 = vadd.f32 %v1745, %v2730
      %v2732 = vpop.f32.mrb[0].mxu0
      %v2733 = vadd.f32 %v1749, %v2732
      %2734 = vmatprep.mubr.bf16.mxu0 %v1605
      %2735 = vmatmul.mubr.bf16.gmra.mrb[0].mxu0 %v1604
      %v2736 = vpop.f32.mrb[0].mxu0
      %v2737 = vadd.f32 %v1745, %v2736
      %v2738 = vpop.f32.mrb[0].mxu0
      %v2739 = vadd.f32 %v1749, %v2738
      %v2740 = vpop.f32.mrb[0].mxu0
      %v2741 = vadd.f32 %v1745, %v2740
      %v2742 = vpop.f32.mrb[0].mxu0
      %v2743 = vadd.f32 %v1749, %v2742
      %2744 = vmatprep.mubr.bf16.mxu0 %v1609
      %2745 = vmatmul.mubr.bf16.gmra.mrb[0].mxu0 %v1608
      %v2746 = vpop.f32.mrb[0].mxu0
      %v2747 = vadd.f32 %v1745, %v2746
      %v2748 = vpop.f32.mrb[0].mxu0
      %v2749 = vadd.f32 %v1749, %v2748
      %v2750 = vpop.f32.mrb[0].mxu0
      %v2751 = vadd.f32 %v1745, %v2750
      %v2752 = vpop.f32.mrb[0].mxu0
      %v2753 = vadd.f32 %v1749, %v2752
      %2754 = vdwg.mxu0
      %2755 = vmatprep.subr.bf16.mxu0 %v2211
      %2756 = vmatpush1.bf16.msra.mxu0 %v2210
      %2757 = vmatprep.subr.bf16.mxu0 %v2215
      %2758 = vmatpush1.bf16.msra.mxu0 %v2214
      %2759 = vmatprep.subr.bf16.mxu0 %v2219
      %2760 = vmatpush1.bf16.msra.mxu0 %v2218
      %2761 = vmatprep.subr.bf16.mxu0 %v2223
      %2762 = vmatpush1.bf16.msra.mxu0 %v2222
      %2763 = vmatprep.subr.bf16.mxu0 %v2227
      %2764 = vmatpush1.bf16.msra.mxu0 %v2226
      %2765 = vmatprep.subr.bf16.mxu0 %v2231
      %2766 = vmatpush1.bf16.msra.mxu0 %v2230
      %2767 = vmatprep.subr.bf16.mxu0 %v2235
      %2768 = vmatpush1.bf16.msra.mxu0 %v2234
      %2769 = vmatprep.subr.bf16.mxu0 %v2239
      %2770 = vmatpush1.bf16.msra.mxu0 %v2238
      %2771 = vmatprep.subr.bf16.mxu0 %v2243
      %2772 = vmatpush1.bf16.msra.mxu0 %v2242
      %2773 = vmatprep.subr.bf16.mxu0 %v2247
      %2774 = vmatpush1.bf16.msra.mxu0 %v2246
      %2775 = vmatprep.subr.bf16.mxu0 %v2251
      %2776 = vmatpush1.bf16.msra.mxu0 %v2250
      %2777 = vmatprep.subr.bf16.mxu0 %v2255
      %2778 = vmatpush1.bf16.msra.mxu0 %v2254
      %2779 = vmatprep.subr.bf16.mxu0 %v2259
      %2780 = vmatpush1.bf16.msra.mxu0 %v2258
      %2781 = vmatprep.subr.bf16.mxu0 %v2263
      %2782 = vmatpush1.bf16.msra.mxu0 %v2262
      %2783 = vmatprep.subr.bf16.mxu0 %v2267
      %2784 = vmatpush1.bf16.msra.mxu0 %v2266
      %2785 = vmatprep.subr.bf16.mxu0 %v2271
      %2786 = vmatpush1.bf16.msra.mxu0 %v2270
      %2787 = vmatprep.mubr.bf16.mxu0 %v1487
      %2788 = vmatmul.mubr.bf16.gmra.mrb[0].mxu0 %v1486
      %v2789 = vpop.f32.mrb[0].mxu0
      %v2790 = vadd.f32 %v2437, %v2789
      %v2791 = vpop.f32.mrb[0].mxu0
      %v2792 = vadd.f32 %v2439, %v2791
      %v2793 = vpop.f32.mrb[0].mxu0
      %v2794 = vadd.f32 %v2441, %v2793
      %v2795 = vpop.f32.mrb[0].mxu0
      %v2796 = vadd.f32 %v2443, %v2795
      %2797 = vmatprep.mubr.bf16.mxu0 %v1491
      %2798 = vmatmul.mubr.bf16.gmra.mrb[0].mxu0 %v1490
      %v2799 = vpop.f32.mrb[0].mxu0
      %v2800 = vadd.f32 %v2447, %v2799
      %v2801 = vpop.f32.mrb[0].mxu0
      %v2802 = vadd.f32 %v2449, %v2801
      %v2803 = vpop.f32.mrb[0].mxu0
      %v2804 = vadd.f32 %v2451, %v2803
      %v2805 = vpop.f32.mrb[0].mxu0
      %v2806 = vadd.f32 %v2453, %v2805
      %2807 = vmatprep.mubr.bf16.mxu0 %v1495
      %2808 = vmatmul.mubr.bf16.gmra.mrb[0].mxu0 %v1494
      %v2809 = vpop.f32.mrb[0].mxu0
      %v2810 = vadd.f32 %v2457, %v2809
      %v2811 = vpop.f32.mrb[0].mxu0
      %v2812 = vadd.f32 %v2459, %v2811
      %v2813 = vpop.f32.mrb[0].mxu0
      %v2814 = vadd.f32 %v2461, %v2813
      %v2815 = vpop.f32.mrb[0].mxu0
      %v2816 = vadd.f32 %v2463, %v2815
      %2817 = vmatprep.mubr.bf16.mxu0 %v1499
      %2818 = vmatmul.mubr.bf16.gmra.mrb[0].mxu0 %v1498
      %v2819 = vpop.f32.mrb[0].mxu0
      %v2820 = vadd.f32 %v2467, %v2819
      %v2821 = vpop.f32.mrb[0].mxu0
      %v2822 = vadd.f32 %v2469, %v2821
      %v2823 = vpop.f32.mrb[0].mxu0
      %v2824 = vadd.f32 %v2471, %v2823
      %v2825 = vpop.f32.mrb[0].mxu0
      %v2826 = vadd.f32 %v2473, %v2825
      %2827 = vmatprep.mubr.bf16.mxu0 %v1503
      %2828 = vmatmul.mubr.bf16.gmra.mrb[0].mxu0 %v1502
      %v2829 = vpop.f32.mrb[0].mxu0
      %v2830 = vadd.f32 %v2477, %v2829
      %v2831 = vpop.f32.mrb[0].mxu0
      %v2832 = vadd.f32 %v2479, %v2831
      %v2833 = vpop.f32.mrb[0].mxu0
      %v2834 = vadd.f32 %v2481, %v2833
      %v2835 = vpop.f32.mrb[0].mxu0
      %v2836 = vadd.f32 %v2483, %v2835
      %2837 = vmatprep.mubr.bf16.mxu0 %v1507
      %2838 = vmatmul.mubr.bf16.gmra.mrb[0].mxu0 %v1506
      %v2839 = vpop.f32.mrb[0].mxu0
      %v2840 = vadd.f32 %v2487, %v2839
      %v2841 = vpop.f32.mrb[0].mxu0
      %v2842 = vadd.f32 %v2489, %v2841
      %v2843 = vpop.f32.mrb[0].mxu0
      %v2844 = vadd.f32 %v2491, %v2843
      %v2845 = vpop.f32.mrb[0].mxu0
      %v2846 = vadd.f32 %v2493, %v2845
      %2847 = vmatprep.mubr.bf16.mxu0 %v1511
      %2848 = vmatmul.mubr.bf16.gmra.mrb[0].mxu0 %v1510
      %v2849 = vpop.f32.mrb[0].mxu0
      %v2850 = vadd.f32 %v2497, %v2849
      %v2851 = vpop.f32.mrb[0].mxu0
      %v2852 = vadd.f32 %v2499, %v2851
      %v2853 = vpop.f32.mrb[0].mxu0
      %v2854 = vadd.f32 %v2501, %v2853
      %v2855 = vpop.f32.mrb[0].mxu0
      %v2856 = vadd.f32 %v2503, %v2855
      %2857 = vmatprep.mubr.bf16.mxu0 %v1515
      %2858 = vmatmul.mubr.bf16.gmra.mrb[0].mxu0 %v1514
      %v2859 = vpop.f32.mrb[0].mxu0
      %v2860 = vadd.f32 %v2507, %v2859
      %v2861 = vpop.f32.mrb[0].mxu0
      %v2862 = vadd.f32 %v2509, %v2861
      %v2863 = vpop.f32.mrb[0].mxu0
      %v2864 = vadd.f32 %v2511, %v2863
      %v2865 = vpop.f32.mrb[0].mxu0
      %v2866 = vadd.f32 %v2513, %v2865
      %2867 = vmatprep.mubr.bf16.mxu0 %v1519
      %2868 = vmatmul.mubr.bf16.gmra.mrb[0].mxu0 %v1518
      %v2869 = vpop.f32.mrb[0].mxu0
      %v2870 = vadd.f32 %v2517, %v2869
      %v2871 = vpop.f32.mrb[0].mxu0
      %v2872 = vadd.f32 %v2519, %v2871
      %v2873 = vpop.f32.mrb[0].mxu0
      %v2874 = vadd.f32 %v2521, %v2873
      %v2875 = vpop.f32.mrb[0].mxu0
      %v2876 = vadd.f32 %v2523, %v2875
      %2877 = vmatprep.mubr.bf16.mxu0 %v1523
      %2878 = vmatmul.mubr.bf16.gmra.mrb[0].mxu0 %v1522
      %v2879 = vpop.f32.mrb[0].mxu0
      %v2880 = vadd.f32 %v2527, %v2879
      %v2881 = vpop.f32.mrb[0].mxu0
      %v2882 = vadd.f32 %v2529, %v2881
      %v2883 = vpop.f32.mrb[0].mxu0
      %v2884 = vadd.f32 %v2531, %v2883
      %v2885 = vpop.f32.mrb[0].mxu0
      %v2886 = vadd.f32 %v2533, %v2885
      %2887 = vmatprep.mubr.bf16.mxu0 %v1527
      %2888 = vmatmul.mubr.bf16.gmra.mrb[0].mxu0 %v1526
      %v2889 = vpop.f32.mrb[0].mxu0
      %v2890 = vadd.f32 %v2537, %v2889
      %v2891 = vpop.f32.mrb[0].mxu0
      %v2892 = vadd.f32 %v2539, %v2891
      %v2893 = vpop.f32.mrb[0].mxu0
      %v2894 = vadd.f32 %v2541, %v2893
      %v2895 = vpop.f32.mrb[0].mxu0
      %v2896 = vadd.f32 %v2543, %v2895
      %2897 = vmatprep.mubr.bf16.mxu0 %v1531
      %2898 = vmatmul.mubr.bf16.gmra.mrb[0].mxu0 %v1530
      %v2899 = vpop.f32.mrb[0].mxu0
      %v2900 = vadd.f32 %v2547, %v2899
      %v2901 = vpop.f32.mrb[0].mxu0
      %v2902 = vadd.f32 %v2549, %v2901
      %v2903 = vpop.f32.mrb[0].mxu0
      %v2904 = vadd.f32 %v2551, %v2903
      %v2905 = vpop.f32.mrb[0].mxu0
      %v2906 = vadd.f32 %v2553, %v2905
      %2907 = vmatprep.mubr.bf16.mxu0 %v1535
      %2908 = vmatmul.mubr.bf16.gmra.mrb[0].mxu0 %v1534
      %v2909 = vpop.f32.mrb[0].mxu0
      %v2910 = vadd.f32 %v2557, %v2909
      %v2911 = vpop.f32.mrb[0].mxu0
      %v2912 = vadd.f32 %v2559, %v2911
      %v2913 = vpop.f32.mrb[0].mxu0
      %v2914 = vadd.f32 %v2561, %v2913
      %v2915 = vpop.f32.mrb[0].mxu0
      %v2916 = vadd.f32 %v2563, %v2915
      %2917 = vmatprep.mubr.bf16.mxu0 %v1539
      %2918 = vmatmul.mubr.bf16.gmra.mrb[0].mxu0 %v1538
      %v2919 = vpop.f32.mrb[0].mxu0
      %v2920 = vadd.f32 %v2567, %v2919
      %v2921 = vpop.f32.mrb[0].mxu0
      %v2922 = vadd.f32 %v2569, %v2921
      %v2923 = vpop.f32.mrb[0].mxu0
      %v2924 = vadd.f32 %v2571, %v2923
      %v2925 = vpop.f32.mrb[0].mxu0
      %v2926 = vadd.f32 %v2573, %v2925
      %2927 = vmatprep.mubr.bf16.mxu0 %v1543
      %2928 = vmatmul.mubr.bf16.gmra.mrb[0].mxu0 %v1542
      %v2929 = vpop.f32.mrb[0].mxu0
      %v2930 = vadd.f32 %v2577, %v2929
      %v2931 = vpop.f32.mrb[0].mxu0
      %v2932 = vadd.f32 %v2579, %v2931
      %v2933 = vpop.f32.mrb[0].mxu0
      %v2934 = vadd.f32 %v2581, %v2933
      %v2935 = vpop.f32.mrb[0].mxu0
      %v2936 = vadd.f32 %v2583, %v2935
      %2937 = vmatprep.mubr.bf16.mxu0 %v1547
      %2938 = vmatmul.mubr.bf16.gmra.mrb[0].mxu0 %v1546
      %v2939 = vpop.f32.mrb[0].mxu0
      %v2940 = vadd.f32 %v2587, %v2939
      %v2941 = vpop.f32.mrb[0].mxu0
      %v2942 = vadd.f32 %v2589, %v2941
      %v2943 = vpop.f32.mrb[0].mxu0
      %v2944 = vadd.f32 %v2591, %v2943
      %v2945 = vpop.f32.mrb[0].mxu0
      %v2946 = vadd.f32 %v2593, %v2945
      %2947 = vmatprep.mubr.bf16.mxu0 %v1551
      %2948 = vmatmul.mubr.bf16.gmra.mrb[0].mxu0 %v1550
      %v2949 = vpop.f32.mrb[0].mxu0
      %v2950 = vadd.f32 %v2597, %v2949
      %v2951 = vpop.f32.mrb[0].mxu0
      %v2952 = vadd.f32 %v2599, %v2951
      %v2953 = vpop.f32.mrb[0].mxu0
      %v2954 = vadd.f32 %v2601, %v2953
      %v2955 = vpop.f32.mrb[0].mxu0
      %v2956 = vadd.f32 %v2603, %v2955
      %2957 = vmatprep.mubr.bf16.mxu0 %v1555
      %2958 = vmatmul.mubr.bf16.gmra.mrb[0].mxu0 %v1554
      %v2959 = vpop.f32.mrb[0].mxu0
      %v2960 = vadd.f32 %v2607, %v2959
      %v2961 = vpop.f32.mrb[0].mxu0
      %v2962 = vadd.f32 %v2609, %v2961
      %v2963 = vpop.f32.mrb[0].mxu0
      %v2964 = vadd.f32 %v2611, %v2963
      %v2965 = vpop.f32.mrb[0].mxu0
      %v2966 = vadd.f32 %v2613, %v2965
      %2967 = vmatprep.mubr.bf16.mxu0 %v1559
      %2968 = vmatmul.mubr.bf16.gmra.mrb[0].mxu0 %v1558
      %v2969 = vpop.f32.mrb[0].mxu0
      %v2970 = vadd.f32 %v2617, %v2969
      %v2971 = vpop.f32.mrb[0].mxu0
      %v2972 = vadd.f32 %v2619, %v2971
      %v2973 = vpop.f32.mrb[0].mxu0
      %v2974 = vadd.f32 %v2621, %v2973
      %v2975 = vpop.f32.mrb[0].mxu0
      %v2976 = vadd.f32 %v2623, %v2975
      %2977 = vmatprep.mubr.bf16.mxu0 %v1563
      %2978 = vmatmul.mubr.bf16.gmra.mrb[0].mxu0 %v1562
      %v2979 = vpop.f32.mrb[0].mxu0
      %v2980 = vadd.f32 %v2627, %v2979
      %v2981 = vpop.f32.mrb[0].mxu0
      %v2982 = vadd.f32 %v2629, %v2981
      %v2983 = vpop.f32.mrb[0].mxu0
      %v2984 = vadd.f32 %v2631, %v2983
      %v2985 = vpop.f32.mrb[0].mxu0
      %v2986 = vadd.f32 %v2633, %v2985
      %2987 = vmatprep.mubr.bf16.mxu0 %v1567
      %2988 = vmatmul.mubr.bf16.gmra.mrb[0].mxu0 %v1566
      %v2989 = vpop.f32.mrb[0].mxu0
      %v2990 = vadd.f32 %v2637, %v2989
      %v2991 = vpop.f32.mrb[0].mxu0
      %v2992 = vadd.f32 %v2639, %v2991
      %v2993 = vpop.f32.mrb[0].mxu0
      %v2994 = vadd.f32 %v2641, %v2993
      %v2995 = vpop.f32.mrb[0].mxu0
      %v2996 = vadd.f32 %v2643, %v2995
      %2997 = vmatprep.mubr.bf16.mxu0 %v1571
      %2998 = vmatmul.mubr.bf16.gmra.mrb[0].mxu0 %v1570
      %v2999 = vpop.f32.mrb[0].mxu0
      %v3000 = vadd.f32 %v2647, %v2999
      %v3001 = vpop.f32.mrb[0].mxu0
      %v3002 = vadd.f32 %v2649, %v3001
      %v3003 = vpop.f32.mrb[0].mxu0
      %v3004 = vadd.f32 %v2651, %v3003
      %v3005 = vpop.f32.mrb[0].mxu0
      %v3006 = vadd.f32 %v2653, %v3005
      %3007 = vmatprep.mubr.bf16.mxu0 %v1575
      %3008 = vmatmul.mubr.bf16.gmra.mrb[0].mxu0 %v1574
      %v3009 = vpop.f32.mrb[0].mxu0
      %v3010 = vadd.f32 %v2657, %v3009
      %v3011 = vpop.f32.mrb[0].mxu0
      %v3012 = vadd.f32 %v2659, %v3011
      %v3013 = vpop.f32.mrb[0].mxu0
      %v3014 = vadd.f32 %v2661, %v3013
      %v3015 = vpop.f32.mrb[0].mxu0
      %v3016 = vadd.f32 %v2663, %v3015
      %3017 = vmatprep.mubr.bf16.mxu0 %v1579
      %3018 = vmatmul.mubr.bf16.gmra.mrb[0].mxu0 %v1578
      %v3019 = vpop.f32.mrb[0].mxu0
      %v3020 = vadd.f32 %v2667, %v3019
      %v3021 = vpop.f32.mrb[0].mxu0
      %v3022 = vadd.f32 %v2669, %v3021
      %v3023 = vpop.f32.mrb[0].mxu0
      %v3024 = vadd.f32 %v2671, %v3023
      %v3025 = vpop.f32.mrb[0].mxu0
      %v3026 = vadd.f32 %v2673, %v3025
      %3027 = vmatprep.mubr.bf16.mxu0 %v1583
      %3028 = vmatmul.mubr.bf16.gmra.mrb[0].mxu0 %v1582
      %v3029 = vpop.f32.mrb[0].mxu0
      %v3030 = vadd.f32 %v2677, %v3029
      %v3031 = vpop.f32.mrb[0].mxu0
      %v3032 = vadd.f32 %v2679, %v3031
      %v3033 = vpop.f32.mrb[0].mxu0
      %v3034 = vadd.f32 %v2681, %v3033
      %v3035 = vpop.f32.mrb[0].mxu0
      %v3036 = vadd.f32 %v2683, %v3035
      %3037 = vmatprep.mubr.bf16.mxu0 %v1587
      %3038 = vmatmul.mubr.bf16.gmra.mrb[0].mxu0 %v1586
      %v3039 = vpop.f32.mrb[0].mxu0
      %v3040 = vadd.f32 %v2687, %v3039
      %v3041 = vpop.f32.mrb[0].mxu0
      %v3042 = vadd.f32 %v2689, %v3041
      %v3043 = vpop.f32.mrb[0].mxu0
      %v3044 = vadd.f32 %v2691, %v3043
      %v3045 = vpop.f32.mrb[0].mxu0
      %v3046 = vadd.f32 %v2693, %v3045
      %3047 = vmatprep.mubr.bf16.mxu0 %v1591
      %3048 = vmatmul.mubr.bf16.gmra.mrb[0].mxu0 %v1590
      %v3049 = vpop.f32.mrb[0].mxu0
      %v3050 = vadd.f32 %v2697, %v3049
      %v3051 = vpop.f32.mrb[0].mxu0
      %v3052 = vadd.f32 %v2699, %v3051
      %v3053 = vpop.f32.mrb[0].mxu0
      %v3054 = vadd.f32 %v2701, %v3053
      %v3055 = vpop.f32.mrb[0].mxu0
      %v3056 = vadd.f32 %v2703, %v3055
      %3057 = vmatprep.mubr.bf16.mxu0 %v1595
      %3058 = vmatmul.mubr.bf16.gmra.mrb[0].mxu0 %v1594
      %v3059 = vpop.f32.mrb[0].mxu0
      %v3060 = vadd.f32 %v2707, %v3059
      %v3061 = vpop.f32.mrb[0].mxu0
      %v3062 = vadd.f32 %v2709, %v3061
      %v3063 = vpop.f32.mrb[0].mxu0
      %v3064 = vadd.f32 %v2711, %v3063
      %v3065 = vpop.f32.mrb[0].mxu0
      %v3066 = vadd.f32 %v2713, %v3065
      %3067 = vmatprep.mubr.bf16.mxu0 %v1599
      %3068 = vmatmul.mubr.bf16.gmra.mrb[0].mxu0 %v1598
      %v3069 = vpop.f32.mrb[0].mxu0
      %v3070 = vadd.f32 %v2717, %v3069
      %v3071 = vpop.f32.mrb[0].mxu0
      %v3072 = vadd.f32 %v2719, %v3071
      %v3073 = vpop.f32.mrb[0].mxu0
      %v3074 = vadd.f32 %v2721, %v3073
      %v3075 = vpop.f32.mrb[0].mxu0
      %v3076 = vadd.f32 %v2723, %v3075
      %3077 = vmatprep.mubr.bf16.mxu0 %v1603
      %3078 = vmatmul.mubr.bf16.gmra.mrb[0].mxu0 %v1602
      %v3079 = vpop.f32.mrb[0].mxu0
      %v3080 = vadd.f32 %v2727, %v3079
      %v3081 = vpop.f32.mrb[0].mxu0
      %v3082 = vadd.f32 %v2729, %v3081
      %v3083 = vpop.f32.mrb[0].mxu0
      %v3084 = vadd.f32 %v2731, %v3083
      %v3085 = vpop.f32.mrb[0].mxu0
      %v3086 = vadd.f32 %v2733, %v3085
      %3087 = vmatprep.mubr.bf16.mxu0 %v1607
      %3088 = vmatmul.mubr.bf16.gmra.mrb[0].mxu0 %v1606
      %v3089 = vpop.f32.mrb[0].mxu0
      %v3090 = vadd.f32 %v2737, %v3089
      %v3091 = vpop.f32.mrb[0].mxu0
      %v3092 = vadd.f32 %v2739, %v3091
      %v3093 = vpop.f32.mrb[0].mxu0
      %v3094 = vadd.f32 %v2741, %v3093
      %v3095 = vpop.f32.mrb[0].mxu0
      %v3096 = vadd.f32 %v2743, %v3095
      %3097 = vmatprep.mubr.bf16.mxu0 %v1611
      %3098 = vmatmul.mubr.bf16.gmra.mrb[0].mxu0 %v1610
      %v3099 = vpop.f32.mrb[0].mxu0
      %v3100 = vadd.f32 %v2747, %v3099
      %v3101 = vpop.f32.mrb[0].mxu0
      %v3102 = vadd.f32 %v2749, %v3101
      %v3103 = vpop.f32.mrb[0].mxu0
      %v3104 = vadd.f32 %v2751, %v3103
      %v3105 = vpop.f32.mrb[0].mxu0
      %v3106 = vadd.f32 %v2753, %v3105
      %3107 = vdwg.mxu0
      %3108 = vmatprep.subr.bf16.mxu0 %v2149
      %3109 = vmatpush1.bf16.msra.mxu0 %v2148
      %3110 = vmatprep.subr.bf16.mxu0 %v2153
      %3111 = vmatpush1.bf16.msra.mxu0 %v2152
      %3112 = vmatprep.subr.bf16.mxu0 %v2157
      %3113 = vmatpush1.bf16.msra.mxu0 %v2156
      %3114 = vmatprep.subr.bf16.mxu0 %v2161
      %3115 = vmatpush1.bf16.msra.mxu0 %v2160
      %3116 = vmatprep.subr.bf16.mxu0 %v2165
      %3117 = vmatpush1.bf16.msra.mxu0 %v2164
      %3118 = vmatprep.subr.bf16.mxu0 %v2169
      %3119 = vmatpush1.bf16.msra.mxu0 %v2168
      %3120 = vmatprep.subr.bf16.mxu0 %v2173
      %3121 = vmatpush1.bf16.msra.mxu0 %v2172
      %3122 = vmatprep.subr.bf16.mxu0 %v2177
      %3123 = vmatpush1.bf16.msra.mxu0 %v2176
      %3124 = vmatprep.subr.bf16.mxu0 %v2181
      %3125 = vmatpush1.bf16.msra.mxu0 %v2180
      %3126 = vmatprep.subr.bf16.mxu0 %v2185
      %3127 = vmatpush1.bf16.msra.mxu0 %v2184
      %3128 = vmatprep.subr.bf16.mxu0 %v2189
      %3129 = vmatpush1.bf16.msra.mxu0 %v2188
      %3130 = vmatprep.subr.bf16.mxu0 %v2193
      %3131 = vmatpush1.bf16.msra.mxu0 %v2192
      %3132 = vmatprep.subr.bf16.mxu0 %v2197
      %3133 = vmatpush1.bf16.msra.mxu0 %v2196
      %3134 = vmatprep.subr.bf16.mxu0 %v2201
      %3135 = vmatpush1.bf16.msra.mxu0 %v2200
      %3136 = vmatprep.subr.bf16.mxu0 %v2205
      %3137 = vmatpush1.bf16.msra.mxu0 %v2204
      %3138 = vmatprep.subr.bf16.mxu0 %v2209
      %3139 = vmatpush1.bf16.msra.mxu0 %v2208
      %3140 = vmatprep.mubr.bf16.mxu0 %v1485
      %3141 = vmatmul.mubr.bf16.gmra.mrb[0].mxu0 %v1484
      %v3142 = vpop.f32.mrb[0].mxu0
      %v3143 = vadd.f32 %v1753, %v3142
      %v3144 = vpop.f32.mrb[0].mxu0
      %v3145 = vadd.f32 %v1757, %v3144
      %v3146 = vpop.f32.mrb[0].mxu0
      %v3147 = vadd.f32 %v1753, %v3146
      %v3148 = vpop.f32.mrb[0].mxu0
      %v3149 = vadd.f32 %v1757, %v3148
      %3150 = vmatprep.mubr.bf16.mxu0 %v1489
      %3151 = vmatmul.mubr.bf16.gmra.mrb[0].mxu0 %v1488
      %v3152 = vpop.f32.mrb[0].mxu0
      %v3153 = vadd.f32 %v1753, %v3152
      %v3154 = vpop.f32.mrb[0].mxu0
      %v3155 = vadd.f32 %v1757, %v3154
      %v3156 = vpop.f32.mrb[0].mxu0
      %v3157 = vadd.f32 %v1753, %v3156
      %v3158 = vpop.f32.mrb[0].mxu0
      %v3159 = vadd.f32 %v1757, %v3158
      %3160 = vmatprep.mubr.bf16.mxu0 %v1493
      %3161 = vmatmul.mubr.bf16.gmra.mrb[0].mxu0 %v1492
      %v3162 = vpop.f32.mrb[0].mxu0
      %v3163 = vadd.f32 %v1753, %v3162
      %v3164 = vpop.f32.mrb[0].mxu0
      %v3165 = vadd.f32 %v1757, %v3164
      %v3166 = vpop.f32.mrb[0].mxu0
      %v3167 = vadd.f32 %v1753, %v3166
      %v3168 = vpop.f32.mrb[0].mxu0
      %v3169 = vadd.f32 %v1757, %v3168
      %3170 = vmatprep.mubr.bf16.mxu0 %v1497
      %3171 = vmatmul.mubr.bf16.gmra.mrb[0].mxu0 %v1496
      %v3172 = vpop.f32.mrb[0].mxu0
      %v3173 = vadd.f32 %v1753, %v3172
      %v3174 = vpop.f32.mrb[0].mxu0
      %v3175 = vadd.f32 %v1757, %v3174
      %v3176 = vpop.f32.mrb[0].mxu0
      %v3177 = vadd.f32 %v1753, %v3176
      %v3178 = vpop.f32.mrb[0].mxu0
      %v3179 = vadd.f32 %v1757, %v3178
      %3180 = vmatprep.mubr.bf16.mxu0 %v1501
      %3181 = vmatmul.mubr.bf16.gmra.mrb[0].mxu0 %v1500
      %v3182 = vpop.f32.mrb[0].mxu0
      %v3183 = vadd.f32 %v1753, %v3182
      %v3184 = vpop.f32.mrb[0].mxu0
      %v3185 = vadd.f32 %v1757, %v3184
      %v3186 = vpop.f32.mrb[0].mxu0
      %v3187 = vadd.f32 %v1753, %v3186
      %v3188 = vpop.f32.mrb[0].mxu0
      %v3189 = vadd.f32 %v1757, %v3188
      %3190 = vmatprep.mubr.bf16.mxu0 %v1505
      %3191 = vmatmul.mubr.bf16.gmra.mrb[0].mxu0 %v1504
      %v3192 = vpop.f32.mrb[0].mxu0
      %v3193 = vadd.f32 %v1753, %v3192
      %v3194 = vpop.f32.mrb[0].mxu0
      %v3195 = vadd.f32 %v1757, %v3194
      %v3196 = vpop.f32.mrb[0].mxu0
      %v3197 = vadd.f32 %v1753, %v3196
      %v3198 = vpop.f32.mrb[0].mxu0
      %v3199 = vadd.f32 %v1757, %v3198
      %3200 = vmatprep.mubr.bf16.mxu0 %v1509
      %3201 = vmatmul.mubr.bf16.gmra.mrb[0].mxu0 %v1508
      %v3202 = vpop.f32.mrb[0].mxu0
      %v3203 = vadd.f32 %v1753, %v3202
      %v3204 = vpop.f32.mrb[0].mxu0
      %v3205 = vadd.f32 %v1757, %v3204
      %v3206 = vpop.f32.mrb[0].mxu0
      %v3207 = vadd.f32 %v1753, %v3206
      %v3208 = vpop.f32.mrb[0].mxu0
      %v3209 = vadd.f32 %v1757, %v3208
      %3210 = vmatprep.mubr.bf16.mxu0 %v1513
      %3211 = vmatmul.mubr.bf16.gmra.mrb[0].mxu0 %v1512
      %v3212 = vpop.f32.mrb[0].mxu0
      %v3213 = vadd.f32 %v1753, %v3212
      %v3214 = vpop.f32.mrb[0].mxu0
      %v3215 = vadd.f32 %v1757, %v3214
      %v3216 = vpop.f32.mrb[0].mxu0
      %v3217 = vadd.f32 %v1753, %v3216
      %v3218 = vpop.f32.mrb[0].mxu0
      %v3219 = vadd.f32 %v1757, %v3218
      %3220 = vmatprep.mubr.bf16.mxu0 %v1517
      %3221 = vmatmul.mubr.bf16.gmra.mrb[0].mxu0 %v1516
      %v3222 = vpop.f32.mrb[0].mxu0
      %v3223 = vadd.f32 %v1753, %v3222
      %v3224 = vpop.f32.mrb[0].mxu0
      %v3225 = vadd.f32 %v1757, %v3224
      %v3226 = vpop.f32.mrb[0].mxu0
      %v3227 = vadd.f32 %v1753, %v3226
      %v3228 = vpop.f32.mrb[0].mxu0
      %v3229 = vadd.f32 %v1757, %v3228
      %3230 = vmatprep.mubr.bf16.mxu0 %v1521
      %3231 = vmatmul.mubr.bf16.gmra.mrb[0].mxu0 %v1520
      %v3232 = vpop.f32.mrb[0].mxu0
      %v3233 = vadd.f32 %v1753, %v3232
      %v3234 = vpop.f32.mrb[0].mxu0
      %v3235 = vadd.f32 %v1757, %v3234
      %v3236 = vpop.f32.mrb[0].mxu0
      %v3237 = vadd.f32 %v1753, %v3236
      %v3238 = vpop.f32.mrb[0].mxu0
      %v3239 = vadd.f32 %v1757, %v3238
      %3240 = vmatprep.mubr.bf16.mxu0 %v1525
      %3241 = vmatmul.mubr.bf16.gmra.mrb[0].mxu0 %v1524
      %v3242 = vpop.f32.mrb[0].mxu0
      %v3243 = vadd.f32 %v1753, %v3242
      %v3244 = vpop.f32.mrb[0].mxu0
      %v3245 = vadd.f32 %v1757, %v3244
      %v3246 = vpop.f32.mrb[0].mxu0
      %v3247 = vadd.f32 %v1753, %v3246
      %v3248 = vpop.f32.mrb[0].mxu0
      %v3249 = vadd.f32 %v1757, %v3248
      %3250 = vmatprep.mubr.bf16.mxu0 %v1529
      %3251 = vmatmul.mubr.bf16.gmra.mrb[0].mxu0 %v1528
      %v3252 = vpop.f32.mrb[0].mxu0
      %v3253 = vadd.f32 %v1753, %v3252
      %v3254 = vpop.f32.mrb[0].mxu0
      %v3255 = vadd.f32 %v1757, %v3254
      %v3256 = vpop.f32.mrb[0].mxu0
      %v3257 = vadd.f32 %v1753, %v3256
      %v3258 = vpop.f32.mrb[0].mxu0
      %v3259 = vadd.f32 %v1757, %v3258
      %3260 = vmatprep.mubr.bf16.mxu0 %v1533
      %3261 = vmatmul.mubr.bf16.gmra.mrb[0].mxu0 %v1532
      %v3262 = vpop.f32.mrb[0].mxu0
      %v3263 = vadd.f32 %v1753, %v3262
      %v3264 = vpop.f32.mrb[0].mxu0
      %v3265 = vadd.f32 %v1757, %v3264
      %v3266 = vpop.f32.mrb[0].mxu0
      %v3267 = vadd.f32 %v1753, %v3266
      %v3268 = vpop.f32.mrb[0].mxu0
      %v3269 = vadd.f32 %v1757, %v3268
      %3270 = vmatprep.mubr.bf16.mxu0 %v1537
      %3271 = vmatmul.mubr.bf16.gmra.mrb[0].mxu0 %v1536
      %v3272 = vpop.f32.mrb[0].mxu0
      %v3273 = vadd.f32 %v1753, %v3272
      %v3274 = vpop.f32.mrb[0].mxu0
      %v3275 = vadd.f32 %v1757, %v3274
      %v3276 = vpop.f32.mrb[0].mxu0
      %v3277 = vadd.f32 %v1753, %v3276
      %v3278 = vpop.f32.mrb[0].mxu0
      %v3279 = vadd.f32 %v1757, %v3278
      %3280 = vmatprep.mubr.bf16.mxu0 %v1541
      %3281 = vmatmul.mubr.bf16.gmra.mrb[0].mxu0 %v1540
      %v3282 = vpop.f32.mrb[0].mxu0
      %v3283 = vadd.f32 %v1753, %v3282
      %v3284 = vpop.f32.mrb[0].mxu0
      %v3285 = vadd.f32 %v1757, %v3284
      %v3286 = vpop.f32.mrb[0].mxu0
      %v3287 = vadd.f32 %v1753, %v3286
      %v3288 = vpop.f32.mrb[0].mxu0
      %v3289 = vadd.f32 %v1757, %v3288
      %3290 = vmatprep.mubr.bf16.mxu0 %v1545
      %3291 = vmatmul.mubr.bf16.gmra.mrb[0].mxu0 %v1544
      %v3292 = vpop.f32.mrb[0].mxu0
      %v3293 = vadd.f32 %v1753, %v3292
      %v3294 = vpop.f32.mrb[0].mxu0
      %v3295 = vadd.f32 %v1757, %v3294
      %v3296 = vpop.f32.mrb[0].mxu0
      %v3297 = vadd.f32 %v1753, %v3296
      %v3298 = vpop.f32.mrb[0].mxu0
      %v3299 = vadd.f32 %v1757, %v3298
      %3300 = vmatprep.mubr.bf16.mxu0 %v1549
      %3301 = vmatmul.mubr.bf16.gmra.mrb[0].mxu0 %v1548
      %v3302 = vpop.f32.mrb[0].mxu0
      %v3303 = vadd.f32 %v1753, %v3302
      %v3304 = vpop.f32.mrb[0].mxu0
      %v3305 = vadd.f32 %v1757, %v3304
      %v3306 = vpop.f32.mrb[0].mxu0
      %v3307 = vadd.f32 %v1753, %v3306
      %v3308 = vpop.f32.mrb[0].mxu0
      %v3309 = vadd.f32 %v1757, %v3308
      %3310 = vmatprep.mubr.bf16.mxu0 %v1553
      %3311 = vmatmul.mubr.bf16.gmra.mrb[0].mxu0 %v1552
      %v3312 = vpop.f32.mrb[0].mxu0
      %v3313 = vadd.f32 %v1753, %v3312
      %v3314 = vpop.f32.mrb[0].mxu0
      %v3315 = vadd.f32 %v1757, %v3314
      %v3316 = vpop.f32.mrb[0].mxu0
      %v3317 = vadd.f32 %v1753, %v3316
      %v3318 = vpop.f32.mrb[0].mxu0
      %v3319 = vadd.f32 %v1757, %v3318
      %3320 = vmatprep.mubr.bf16.mxu0 %v1557
      %3321 = vmatmul.mubr.bf16.gmra.mrb[0].mxu0 %v1556
      %v3322 = vpop.f32.mrb[0].mxu0
      %v3323 = vadd.f32 %v1753, %v3322
      %v3324 = vpop.f32.mrb[0].mxu0
      %v3325 = vadd.f32 %v1757, %v3324
      %v3326 = vpop.f32.mrb[0].mxu0
      %v3327 = vadd.f32 %v1753, %v3326
      %v3328 = vpop.f32.mrb[0].mxu0
      %v3329 = vadd.f32 %v1757, %v3328
      %3330 = vmatprep.mubr.bf16.mxu0 %v1561
      %3331 = vmatmul.mubr.bf16.gmra.mrb[0].mxu0 %v1560
      %v3332 = vpop.f32.mrb[0].mxu0
      %v3333 = vadd.f32 %v1753, %v3332
      %v3334 = vpop.f32.mrb[0].mxu0
      %v3335 = vadd.f32 %v1757, %v3334
      %v3336 = vpop.f32.mrb[0].mxu0
      %v3337 = vadd.f32 %v1753, %v3336
      %v3338 = vpop.f32.mrb[0].mxu0
      %v3339 = vadd.f32 %v1757, %v3338
      %3340 = vmatprep.mubr.bf16.mxu0 %v1565
      %3341 = vmatmul.mubr.bf16.gmra.mrb[0].mxu0 %v1564
      %v3342 = vpop.f32.mrb[0].mxu0
      %v3343 = vadd.f32 %v1753, %v3342
      %v3344 = vpop.f32.mrb[0].mxu0
      %v3345 = vadd.f32 %v1757, %v3344
      %v3346 = vpop.f32.mrb[0].mxu0
      %v3347 = vadd.f32 %v1753, %v3346
      %v3348 = vpop.f32.mrb[0].mxu0
      %v3349 = vadd.f32 %v1757, %v3348
      %3350 = vmatprep.mubr.bf16.mxu0 %v1569
      %3351 = vmatmul.mubr.bf16.gmra.mrb[0].mxu0 %v1568
      %v3352 = vpop.f32.mrb[0].mxu0
      %v3353 = vadd.f32 %v1753, %v3352
      %v3354 = vpop.f32.mrb[0].mxu0
      %v3355 = vadd.f32 %v1757, %v3354
      %v3356 = vpop.f32.mrb[0].mxu0
      %v3357 = vadd.f32 %v1753, %v3356
      %v3358 = vpop.f32.mrb[0].mxu0
      %v3359 = vadd.f32 %v1757, %v3358
      %3360 = vmatprep.mubr.bf16.mxu0 %v1573
      %3361 = vmatmul.mubr.bf16.gmra.mrb[0].mxu0 %v1572
      %v3362 = vpop.f32.mrb[0].mxu0
      %v3363 = vadd.f32 %v1753, %v3362
      %v3364 = vpop.f32.mrb[0].mxu0
      %v3365 = vadd.f32 %v1757, %v3364
      %v3366 = vpop.f32.mrb[0].mxu0
      %v3367 = vadd.f32 %v1753, %v3366
      %v3368 = vpop.f32.mrb[0].mxu0
      %v3369 = vadd.f32 %v1757, %v3368
      %3370 = vmatprep.mubr.bf16.mxu0 %v1577
      %3371 = vmatmul.mubr.bf16.gmra.mrb[0].mxu0 %v1576
      %v3372 = vpop.f32.mrb[0].mxu0
      %v3373 = vadd.f32 %v1753, %v3372
      %v3374 = vpop.f32.mrb[0].mxu0
      %v3375 = vadd.f32 %v1757, %v3374
      %v3376 = vpop.f32.mrb[0].mxu0
      %v3377 = vadd.f32 %v1753, %v3376
      %v3378 = vpop.f32.mrb[0].mxu0
      %v3379 = vadd.f32 %v1757, %v3378
      %3380 = vmatprep.mubr.bf16.mxu0 %v1581
      %3381 = vmatmul.mubr.bf16.gmra.mrb[0].mxu0 %v1580
      %v3382 = vpop.f32.mrb[0].mxu0
      %v3383 = vadd.f32 %v1753, %v3382
      %v3384 = vpop.f32.mrb[0].mxu0
      %v3385 = vadd.f32 %v1757, %v3384
      %v3386 = vpop.f32.mrb[0].mxu0
      %v3387 = vadd.f32 %v1753, %v3386
      %v3388 = vpop.f32.mrb[0].mxu0
      %v3389 = vadd.f32 %v1757, %v3388
      %3390 = vmatprep.mubr.bf16.mxu0 %v1585
      %3391 = vmatmul.mubr.bf16.gmra.mrb[0].mxu0 %v1584
      %v3392 = vpop.f32.mrb[0].mxu0
      %v3393 = vadd.f32 %v1753, %v3392
      %v3394 = vpop.f32.mrb[0].mxu0
      %v3395 = vadd.f32 %v1757, %v3394
      %v3396 = vpop.f32.mrb[0].mxu0
      %v3397 = vadd.f32 %v1753, %v3396
      %v3398 = vpop.f32.mrb[0].mxu0
      %v3399 = vadd.f32 %v1757, %v3398
      %3400 = vmatprep.mubr.bf16.mxu0 %v1589
      %3401 = vmatmul.mubr.bf16.gmra.mrb[0].mxu0 %v1588
      %v3402 = vpop.f32.mrb[0].mxu0
      %v3403 = vadd.f32 %v1753, %v3402
      %v3404 = vpop.f32.mrb[0].mxu0
      %v3405 = vadd.f32 %v1757, %v3404
      %v3406 = vpop.f32.mrb[0].mxu0
      %v3407 = vadd.f32 %v1753, %v3406
      %v3408 = vpop.f32.mrb[0].mxu0
      %v3409 = vadd.f32 %v1757, %v3408
      %3410 = vmatprep.mubr.bf16.mxu0 %v1593
      %3411 = vmatmul.mubr.bf16.gmra.mrb[0].mxu0 %v1592
      %v3412 = vpop.f32.mrb[0].mxu0
      %v3413 = vadd.f32 %v1753, %v3412
      %v3414 = vpop.f32.mrb[0].mxu0
      %v3415 = vadd.f32 %v1757, %v3414
      %v3416 = vpop.f32.mrb[0].mxu0
      %v3417 = vadd.f32 %v1753, %v3416
      %v3418 = vpop.f32.mrb[0].mxu0
      %v3419 = vadd.f32 %v1757, %v3418
      %3420 = vmatprep.mubr.bf16.mxu0 %v1597
      %3421 = vmatmul.mubr.bf16.gmra.mrb[0].mxu0 %v1596
      %v3422 = vpop.f32.mrb[0].mxu0
      %v3423 = vadd.f32 %v1753, %v3422
      %v3424 = vpop.f32.mrb[0].mxu0
      %v3425 = vadd.f32 %v1757, %v3424
      %v3426 = vpop.f32.mrb[0].mxu0
      %v3427 = vadd.f32 %v1753, %v3426
      %v3428 = vpop.f32.mrb[0].mxu0
      %v3429 = vadd.f32 %v1757, %v3428
      %3430 = vmatprep.mubr.bf16.mxu0 %v1601
      %3431 = vmatmul.mubr.bf16.gmra.mrb[0].mxu0 %v1600
      %v3432 = vpop.f32.mrb[0].mxu0
      %v3433 = vadd.f32 %v1753, %v3432
      %v3434 = vpop.f32.mrb[0].mxu0
      %v3435 = vadd.f32 %v1757, %v3434
      %v3436 = vpop.f32.mrb[0].mxu0
      %v3437 = vadd.f32 %v1753, %v3436
      %v3438 = vpop.f32.mrb[0].mxu0
      %v3439 = vadd.f32 %v1757, %v3438
      %3440 = vmatprep.mubr.bf16.mxu0 %v1605
      %3441 = vmatmul.mubr.bf16.gmra.mrb[0].mxu0 %v1604
      %v3442 = vpop.f32.mrb[0].mxu0
      %v3443 = vadd.f32 %v1753, %v3442
      %v3444 = vpop.f32.mrb[0].mxu0
      %v3445 = vadd.f32 %v1757, %v3444
      %v3446 = vpop.f32.mrb[0].mxu0
      %v3447 = vadd.f32 %v1753, %v3446
      %v3448 = vpop.f32.mrb[0].mxu0
      %v3449 = vadd.f32 %v1757, %v3448
      %3450 = vmatprep.mubr.bf16.mxu0 %v1609
      %3451 = vmatmul.mubr.bf16.gmra.mrb[0].mxu0 %v1608
      %v3452 = vpop.f32.mrb[0].mxu0
      %v3453 = vadd.f32 %v1753, %v3452
      %v3454 = vpop.f32.mrb[0].mxu0
      %v3455 = vadd.f32 %v1757, %v3454
      %v3456 = vpop.f32.mrb[0].mxu0
      %v3457 = vadd.f32 %v1753, %v3456
      %v3458 = vpop.f32.mrb[0].mxu0
      %v3459 = vadd.f32 %v1757, %v3458
      %3460 = vdwg.mxu0
      %3461 = vmatprep.subr.bf16.mxu0 %v2213
      %3462 = vmatpush1.bf16.msra.mxu0 %v2212
      %3463 = vmatprep.subr.bf16.mxu0 %v2217
      %3464 = vmatpush1.bf16.msra.mxu0 %v2216
      %3465 = vmatprep.subr.bf16.mxu0 %v2221
      %3466 = vmatpush1.bf16.msra.mxu0 %v2220
      %3467 = vmatprep.subr.bf16.mxu0 %v2225
      %3468 = vmatpush1.bf16.msra.mxu0 %v2224
      %3469 = vmatprep.subr.bf16.mxu0 %v2229
      %3470 = vmatpush1.bf16.msra.mxu0 %v2228
      %3471 = vmatprep.subr.bf16.mxu0 %v2233
      %3472 = vmatpush1.bf16.msra.mxu0 %v2232
      %3473 = vmatprep.subr.bf16.mxu0 %v2237
      %3474 = vmatpush1.bf16.msra.mxu0 %v2236
      %3475 = vmatprep.subr.bf16.mxu0 %v2241
      %3476 = vmatpush1.bf16.msra.mxu0 %v2240
      %3477 = vmatprep.subr.bf16.mxu0 %v2245
      %3478 = vmatpush1.bf16.msra.mxu0 %v2244
      %3479 = vmatprep.subr.bf16.mxu0 %v2249
      %3480 = vmatpush1.bf16.msra.mxu0 %v2248
      %3481 = vmatprep.subr.bf16.mxu0 %v2253
      %3482 = vmatpush1.bf16.msra.mxu0 %v2252
      %3483 = vmatprep.subr.bf16.mxu0 %v2257
      %3484 = vmatpush1.bf16.msra.mxu0 %v2256
      %3485 = vmatprep.subr.bf16.mxu0 %v2261
      %3486 = vmatpush1.bf16.msra.mxu0 %v2260
      %3487 = vmatprep.subr.bf16.mxu0 %v2265
      %3488 = vmatpush1.bf16.msra.mxu0 %v2264
      %3489 = vmatprep.subr.bf16.mxu0 %v2269
      %3490 = vmatpush1.bf16.msra.mxu0 %v2268
      %3491 = vmatprep.subr.bf16.mxu0 %v2273
      %3492 = vmatpush1.bf16.msra.mxu0 %v2272
      %3493 = vmatprep.mubr.bf16.mxu0 %v1487
      %3494 = vmatmul.mubr.bf16.gmra.mrb[0].mxu0 %v1486
      %v3495 = vpop.f32.mrb[0].mxu0
      %v3496 = vadd.f32 %v3143, %v3495
      %v3497 = vpop.f32.mrb[0].mxu0
      %v3498 = vadd.f32 %v3145, %v3497
      %v3499 = vpop.f32.mrb[0].mxu0
      %v3500 = vadd.f32 %v3147, %v3499
      %v3501 = vpop.f32.mrb[0].mxu0
      %v3502 = vadd.f32 %v3149, %v3501
      %3503 = vmatprep.mubr.bf16.mxu0 %v1491
      %3504 = vmatmul.mubr.bf16.gmra.mrb[0].mxu0 %v1490
      %v3505 = vpop.f32.mrb[0].mxu0
      %v3506 = vadd.f32 %v3153, %v3505
      %v3507 = vpop.f32.mrb[0].mxu0
      %v3508 = vadd.f32 %v3155, %v3507
      %v3509 = vpop.f32.mrb[0].mxu0
      %v3510 = vadd.f32 %v3157, %v3509
      %v3511 = vpop.f32.mrb[0].mxu0
      %v3512 = vadd.f32 %v3159, %v3511
      %3513 = vmatprep.mubr.bf16.mxu0 %v1495
      %3514 = vmatmul.mubr.bf16.gmra.mrb[0].mxu0 %v1494
      %v3515 = vpop.f32.mrb[0].mxu0
      %v3516 = vadd.f32 %v3163, %v3515
      %v3517 = vpop.f32.mrb[0].mxu0
      %v3518 = vadd.f32 %v3165, %v3517
      %v3519 = vpop.f32.mrb[0].mxu0
      %v3520 = vadd.f32 %v3167, %v3519
      %v3521 = vpop.f32.mrb[0].mxu0
      %v3522 = vadd.f32 %v3169, %v3521
      %3523 = vmatprep.mubr.bf16.mxu0 %v1499
      %3524 = vmatmul.mubr.bf16.gmra.mrb[0].mxu0 %v1498
      %v3525 = vpop.f32.mrb[0].mxu0
      %v3526 = vadd.f32 %v3173, %v3525
      %v3527 = vpop.f32.mrb[0].mxu0
      %v3528 = vadd.f32 %v3175, %v3527
      %v3529 = vpop.f32.mrb[0].mxu0
      %v3530 = vadd.f32 %v3177, %v3529
      %v3531 = vpop.f32.mrb[0].mxu0
      %v3532 = vadd.f32 %v3179, %v3531
      %3533 = vmatprep.mubr.bf16.mxu0 %v1503
      %3534 = vmatmul.mubr.bf16.gmra.mrb[0].mxu0 %v1502
      %v3535 = vpop.f32.mrb[0].mxu0
      %v3536 = vadd.f32 %v3183, %v3535
      %v3537 = vpop.f32.mrb[0].mxu0
      %v3538 = vadd.f32 %v3185, %v3537
      %v3539 = vpop.f32.mrb[0].mxu0
      %v3540 = vadd.f32 %v3187, %v3539
      %v3541 = vpop.f32.mrb[0].mxu0
      %v3542 = vadd.f32 %v3189, %v3541
      %3543 = vmatprep.mubr.bf16.mxu0 %v1507
      %3544 = vmatmul.mubr.bf16.gmra.mrb[0].mxu0 %v1506
      %v3545 = vpop.f32.mrb[0].mxu0
      %v3546 = vadd.f32 %v3193, %v3545
      %v3547 = vpop.f32.mrb[0].mxu0
      %v3548 = vadd.f32 %v3195, %v3547
      %v3549 = vpop.f32.mrb[0].mxu0
      %v3550 = vadd.f32 %v3197, %v3549
      %v3551 = vpop.f32.mrb[0].mxu0
      %v3552 = vadd.f32 %v3199, %v3551
      %3553 = vmatprep.mubr.bf16.mxu0 %v1511
      %3554 = vmatmul.mubr.bf16.gmra.mrb[0].mxu0 %v1510
      %v3555 = vpop.f32.mrb[0].mxu0
      %v3556 = vadd.f32 %v3203, %v3555
      %v3557 = vpop.f32.mrb[0].mxu0
      %v3558 = vadd.f32 %v3205, %v3557
      %v3559 = vpop.f32.mrb[0].mxu0
      %v3560 = vadd.f32 %v3207, %v3559
      %v3561 = vpop.f32.mrb[0].mxu0
      %v3562 = vadd.f32 %v3209, %v3561
      %3563 = vmatprep.mubr.bf16.mxu0 %v1515
      %3564 = vmatmul.mubr.bf16.gmra.mrb[0].mxu0 %v1514
      %v3565 = vpop.f32.mrb[0].mxu0
      %v3566 = vadd.f32 %v3213, %v3565
      %v3567 = vpop.f32.mrb[0].mxu0
      %v3568 = vadd.f32 %v3215, %v3567
      %v3569 = vpop.f32.mrb[0].mxu0
      %v3570 = vadd.f32 %v3217, %v3569
      %v3571 = vpop.f32.mrb[0].mxu0
      %v3572 = vadd.f32 %v3219, %v3571
      %3573 = vmatprep.mubr.bf16.mxu0 %v1519
      %3574 = vmatmul.mubr.bf16.gmra.mrb[0].mxu0 %v1518
      %v3575 = vpop.f32.mrb[0].mxu0
      %v3576 = vadd.f32 %v3223, %v3575
      %v3577 = vpop.f32.mrb[0].mxu0
      %v3578 = vadd.f32 %v3225, %v3577
      %v3579 = vpop.f32.mrb[0].mxu0
      %v3580 = vadd.f32 %v3227, %v3579
      %v3581 = vpop.f32.mrb[0].mxu0
      %v3582 = vadd.f32 %v3229, %v3581
      %3583 = vmatprep.mubr.bf16.mxu0 %v1523
      %3584 = vmatmul.mubr.bf16.gmra.mrb[0].mxu0 %v1522
      %v3585 = vpop.f32.mrb[0].mxu0
      %v3586 = vadd.f32 %v3233, %v3585
      %v3587 = vpop.f32.mrb[0].mxu0
      %v3588 = vadd.f32 %v3235, %v3587
      %v3589 = vpop.f32.mrb[0].mxu0
      %v3590 = vadd.f32 %v3237, %v3589
      %v3591 = vpop.f32.mrb[0].mxu0
      %v3592 = vadd.f32 %v3239, %v3591
      %3593 = vmatprep.mubr.bf16.mxu0 %v1527
      %3594 = vmatmul.mubr.bf16.gmra.mrb[0].mxu0 %v1526
      %v3595 = vpop.f32.mrb[0].mxu0
      %v3596 = vadd.f32 %v3243, %v3595
      %v3597 = vpop.f32.mrb[0].mxu0
      %v3598 = vadd.f32 %v3245, %v3597
      %v3599 = vpop.f32.mrb[0].mxu0
      %v3600 = vadd.f32 %v3247, %v3599
      %v3601 = vpop.f32.mrb[0].mxu0
      %v3602 = vadd.f32 %v3249, %v3601
      %3603 = vmatprep.mubr.bf16.mxu0 %v1531
      %3604 = vmatmul.mubr.bf16.gmra.mrb[0].mxu0 %v1530
      %v3605 = vpop.f32.mrb[0].mxu0
      %v3606 = vadd.f32 %v3253, %v3605
      %v3607 = vpop.f32.mrb[0].mxu0
      %v3608 = vadd.f32 %v3255, %v3607
      %v3609 = vpop.f32.mrb[0].mxu0
      %v3610 = vadd.f32 %v3257, %v3609
      %v3611 = vpop.f32.mrb[0].mxu0
      %v3612 = vadd.f32 %v3259, %v3611
      %3613 = vmatprep.mubr.bf16.mxu0 %v1535
      %3614 = vmatmul.mubr.bf16.gmra.mrb[0].mxu0 %v1534
      %v3615 = vpop.f32.mrb[0].mxu0
      %v3616 = vadd.f32 %v3263, %v3615
      %v3617 = vpop.f32.mrb[0].mxu0
      %v3618 = vadd.f32 %v3265, %v3617
      %v3619 = vpop.f32.mrb[0].mxu0
      %v3620 = vadd.f32 %v3267, %v3619
      %v3621 = vpop.f32.mrb[0].mxu0
      %v3622 = vadd.f32 %v3269, %v3621
      %3623 = vmatprep.mubr.bf16.mxu0 %v1539
      %3624 = vmatmul.mubr.bf16.gmra.mrb[0].mxu0 %v1538
      %v3625 = vpop.f32.mrb[0].mxu0
      %v3626 = vadd.f32 %v3273, %v3625
      %v3627 = vpop.f32.mrb[0].mxu0
      %v3628 = vadd.f32 %v3275, %v3627
      %v3629 = vpop.f32.mrb[0].mxu0
      %v3630 = vadd.f32 %v3277, %v3629
      %v3631 = vpop.f32.mrb[0].mxu0
      %v3632 = vadd.f32 %v3279, %v3631
      %3633 = vmatprep.mubr.bf16.mxu0 %v1543
      %3634 = vmatmul.mubr.bf16.gmra.mrb[0].mxu0 %v1542
      %v3635 = vpop.f32.mrb[0].mxu0
      %v3636 = vadd.f32 %v3283, %v3635
      %v3637 = vpop.f32.mrb[0].mxu0
      %v3638 = vadd.f32 %v3285, %v3637
      %v3639 = vpop.f32.mrb[0].mxu0
      %v3640 = vadd.f32 %v3287, %v3639
      %v3641 = vpop.f32.mrb[0].mxu0
      %v3642 = vadd.f32 %v3289, %v3641
      %3643 = vmatprep.mubr.bf16.mxu0 %v1547
      %3644 = vmatmul.mubr.bf16.gmra.mrb[0].mxu0 %v1546
      %v3645 = vpop.f32.mrb[0].mxu0
      %v3646 = vadd.f32 %v3293, %v3645
      %v3647 = vpop.f32.mrb[0].mxu0
      %v3648 = vadd.f32 %v3295, %v3647
      %v3649 = vpop.f32.mrb[0].mxu0
      %v3650 = vadd.f32 %v3297, %v3649
      %v3651 = vpop.f32.mrb[0].mxu0
      %v3652 = vadd.f32 %v3299, %v3651
      %3653 = vmatprep.mubr.bf16.mxu0 %v1551
      %3654 = vmatmul.mubr.bf16.gmra.mrb[0].mxu0 %v1550
      %v3655 = vpop.f32.mrb[0].mxu0
      %v3656 = vadd.f32 %v3303, %v3655
      %v3657 = vpop.f32.mrb[0].mxu0
      %v3658 = vadd.f32 %v3305, %v3657
      %v3659 = vpop.f32.mrb[0].mxu0
      %v3660 = vadd.f32 %v3307, %v3659
      %v3661 = vpop.f32.mrb[0].mxu0
      %v3662 = vadd.f32 %v3309, %v3661
      %3663 = vmatprep.mubr.bf16.mxu0 %v1555
      %3664 = vmatmul.mubr.bf16.gmra.mrb[0].mxu0 %v1554
      %v3665 = vpop.f32.mrb[0].mxu0
      %v3666 = vadd.f32 %v3313, %v3665
      %v3667 = vpop.f32.mrb[0].mxu0
      %v3668 = vadd.f32 %v3315, %v3667
      %v3669 = vpop.f32.mrb[0].mxu0
      %v3670 = vadd.f32 %v3317, %v3669
      %v3671 = vpop.f32.mrb[0].mxu0
      %v3672 = vadd.f32 %v3319, %v3671
      %3673 = vmatprep.mubr.bf16.mxu0 %v1559
      %3674 = vmatmul.mubr.bf16.gmra.mrb[0].mxu0 %v1558
      %v3675 = vpop.f32.mrb[0].mxu0
      %v3676 = vadd.f32 %v3323, %v3675
      %v3677 = vpop.f32.mrb[0].mxu0
      %v3678 = vadd.f32 %v3325, %v3677
      %v3679 = vpop.f32.mrb[0].mxu0
      %v3680 = vadd.f32 %v3327, %v3679
      %v3681 = vpop.f32.mrb[0].mxu0
      %v3682 = vadd.f32 %v3329, %v3681
      %3683 = vmatprep.mubr.bf16.mxu0 %v1563
      %3684 = vmatmul.mubr.bf16.gmra.mrb[0].mxu0 %v1562
      %v3685 = vpop.f32.mrb[0].mxu0
      %v3686 = vadd.f32 %v3333, %v3685
      %v3687 = vpop.f32.mrb[0].mxu0
      %v3688 = vadd.f32 %v3335, %v3687
      %v3689 = vpop.f32.mrb[0].mxu0
      %v3690 = vadd.f32 %v3337, %v3689
      %v3691 = vpop.f32.mrb[0].mxu0
      %v3692 = vadd.f32 %v3339, %v3691
      %3693 = vmatprep.mubr.bf16.mxu0 %v1567
      %3694 = vmatmul.mubr.bf16.gmra.mrb[0].mxu0 %v1566
      %v3695 = vpop.f32.mrb[0].mxu0
      %v3696 = vadd.f32 %v3343, %v3695
      %v3697 = vpop.f32.mrb[0].mxu0
      %v3698 = vadd.f32 %v3345, %v3697
      %v3699 = vpop.f32.mrb[0].mxu0
      %v3700 = vadd.f32 %v3347, %v3699
      %v3701 = vpop.f32.mrb[0].mxu0
      %v3702 = vadd.f32 %v3349, %v3701
      %3703 = vmatprep.mubr.bf16.mxu0 %v1571
      %3704 = vmatmul.mubr.bf16.gmra.mrb[0].mxu0 %v1570
      %v3705 = vpop.f32.mrb[0].mxu0
      %v3706 = vadd.f32 %v3353, %v3705
      %v3707 = vpop.f32.mrb[0].mxu0
      %v3708 = vadd.f32 %v3355, %v3707
      %v3709 = vpop.f32.mrb[0].mxu0
      %v3710 = vadd.f32 %v3357, %v3709
      %v3711 = vpop.f32.mrb[0].mxu0
      %v3712 = vadd.f32 %v3359, %v3711
      %3713 = vmatprep.mubr.bf16.mxu0 %v1575
      %3714 = vmatmul.mubr.bf16.gmra.mrb[0].mxu0 %v1574
      %v3715 = vpop.f32.mrb[0].mxu0
      %v3716 = vadd.f32 %v3363, %v3715
      %v3717 = vpop.f32.mrb[0].mxu0
      %v3718 = vadd.f32 %v3365, %v3717
      %v3719 = vpop.f32.mrb[0].mxu0
      %v3720 = vadd.f32 %v3367, %v3719
      %v3721 = vpop.f32.mrb[0].mxu0
      %v3722 = vadd.f32 %v3369, %v3721
      %3723 = vmatprep.mubr.bf16.mxu0 %v1579
      %3724 = vmatmul.mubr.bf16.gmra.mrb[0].mxu0 %v1578
      %v3725 = vpop.f32.mrb[0].mxu0
      %v3726 = vadd.f32 %v3373, %v3725
      %v3727 = vpop.f32.mrb[0].mxu0
      %v3728 = vadd.f32 %v3375, %v3727
      %v3729 = vpop.f32.mrb[0].mxu0
      %v3730 = vadd.f32 %v3377, %v3729
      %v3731 = vpop.f32.mrb[0].mxu0
      %v3732 = vadd.f32 %v3379, %v3731
      %3733 = vmatprep.mubr.bf16.mxu0 %v1583
      %3734 = vmatmul.mubr.bf16.gmra.mrb[0].mxu0 %v1582
      %v3735 = vpop.f32.mrb[0].mxu0
      %v3736 = vadd.f32 %v3383, %v3735
      %v3737 = vpop.f32.mrb[0].mxu0
      %v3738 = vadd.f32 %v3385, %v3737
      %v3739 = vpop.f32.mrb[0].mxu0
      %v3740 = vadd.f32 %v3387, %v3739
      %v3741 = vpop.f32.mrb[0].mxu0
      %v3742 = vadd.f32 %v3389, %v3741
      %3743 = vmatprep.mubr.bf16.mxu0 %v1587
      %3744 = vmatmul.mubr.bf16.gmra.mrb[0].mxu0 %v1586
      %v3745 = vpop.f32.mrb[0].mxu0
      %v3746 = vadd.f32 %v3393, %v3745
      %v3747 = vpop.f32.mrb[0].mxu0
      %v3748 = vadd.f32 %v3395, %v3747
      %v3749 = vpop.f32.mrb[0].mxu0
      %v3750 = vadd.f32 %v3397, %v3749
      %v3751 = vpop.f32.mrb[0].mxu0
      %v3752 = vadd.f32 %v3399, %v3751
      %3753 = vmatprep.mubr.bf16.mxu0 %v1591
      %3754 = vmatmul.mubr.bf16.gmra.mrb[0].mxu0 %v1590
      %v3755 = vpop.f32.mrb[0].mxu0
      %v3756 = vadd.f32 %v3403, %v3755
      %v3757 = vpop.f32.mrb[0].mxu0
      %v3758 = vadd.f32 %v3405, %v3757
      %v3759 = vpop.f32.mrb[0].mxu0
      %v3760 = vadd.f32 %v3407, %v3759
      %v3761 = vpop.f32.mrb[0].mxu0
      %v3762 = vadd.f32 %v3409, %v3761
      %3763 = vmatprep.mubr.bf16.mxu0 %v1595
      %3764 = vmatmul.mubr.bf16.gmra.mrb[0].mxu0 %v1594
      %v3765 = vpop.f32.mrb[0].mxu0
      %v3766 = vadd.f32 %v3413, %v3765
      %v3767 = vpop.f32.mrb[0].mxu0
      %v3768 = vadd.f32 %v3415, %v3767
      %v3769 = vpop.f32.mrb[0].mxu0
      %v3770 = vadd.f32 %v3417, %v3769
      %v3771 = vpop.f32.mrb[0].mxu0
      %v3772 = vadd.f32 %v3419, %v3771
      %3773 = vmatprep.mubr.bf16.mxu0 %v1599
      %3774 = vmatmul.mubr.bf16.gmra.mrb[0].mxu0 %v1598
      %v3775 = vpop.f32.mrb[0].mxu0
      %v3776 = vadd.f32 %v3423, %v3775
      %v3777 = vpop.f32.mrb[0].mxu0
      %v3778 = vadd.f32 %v3425, %v3777
      %v3779 = vpop.f32.mrb[0].mxu0
      %v3780 = vadd.f32 %v3427, %v3779
      %v3781 = vpop.f32.mrb[0].mxu0
      %v3782 = vadd.f32 %v3429, %v3781
      %3783 = vmatprep.mubr.bf16.mxu0 %v1603
      %3784 = vmatmul.mubr.bf16.gmra.mrb[0].mxu0 %v1602
      %v3785 = vpop.f32.mrb[0].mxu0
      %v3786 = vadd.f32 %v3433, %v3785
      %v3787 = vpop.f32.mrb[0].mxu0
      %v3788 = vadd.f32 %v3435, %v3787
      %v3789 = vpop.f32.mrb[0].mxu0
      %v3790 = vadd.f32 %v3437, %v3789
      %v3791 = vpop.f32.mrb[0].mxu0
      %v3792 = vadd.f32 %v3439, %v3791
      %3793 = vmatprep.mubr.bf16.mxu0 %v1607
      %3794 = vmatmul.mubr.bf16.gmra.mrb[0].mxu0 %v1606
      %v3795 = vpop.f32.mrb[0].mxu0
      %v3796 = vadd.f32 %v3443, %v3795
      %v3797 = vpop.f32.mrb[0].mxu0
      %v3798 = vadd.f32 %v3445, %v3797
      %v3799 = vpop.f32.mrb[0].mxu0
      %v3800 = vadd.f32 %v3447, %v3799
      %v3801 = vpop.f32.mrb[0].mxu0
      %v3802 = vadd.f32 %v3449, %v3801
      %3803 = vmatprep.mubr.bf16.mxu0 %v1611
      %3804 = vmatmul.mubr.bf16.gmra.mrb[0].mxu0 %v1610
      %v3805 = vpop.f32.mrb[0].mxu0
      %v3806 = vadd.f32 %v3453, %v3805
      %v3807 = vpop.f32.mrb[0].mxu0
      %v3808 = vadd.f32 %v3455, %v3807
      %v3809 = vpop.f32.mrb[0].mxu0
      %v3810 = vadd.f32 %v3457, %v3809
      %v3811 = vpop.f32.mrb[0].mxu0
      %v3812 = vadd.f32 %v3459, %v3811
      %3813 = vdwg.mxu0
      %v3814 = vmax.f32 %v2790, 0.0
      %v3815 = vmax.f32 %v2792, 0.0
      %v3816 = vmax.f32 %v3496, 0.0
      %v3817 = vmax.f32 %v3498, 0.0
      %v3818 = vmax.f32 %v2794, 0.0
      %v3819 = vmax.f32 %v2796, 0.0
      %v3820 = vmax.f32 %v3500, 0.0
      %v3821 = vmax.f32 %v3502, 0.0
      %v3822 = vmax.f32 %v2800, 0.0
      %v3823 = vmax.f32 %v2802, 0.0
      %v3824 = vmax.f32 %v3506, 0.0
      %v3825 = vmax.f32 %v3508, 0.0
      %v3826 = vmax.f32 %v2804, 0.0
      %v3827 = vmax.f32 %v2806, 0.0
      %v3828 = vmax.f32 %v3510, 0.0
      %v3829 = vmax.f32 %v3512, 0.0
      %v3830 = vmax.f32 %v2810, 0.0
      %v3831 = vmax.f32 %v2812, 0.0
      %v3832 = vmax.f32 %v3516, 0.0
      %v3833 = vmax.f32 %v3518, 0.0
      %v3834 = vmax.f32 %v2814, 0.0
      %v3835 = vmax.f32 %v2816, 0.0
      %v3836 = vmax.f32 %v3520, 0.0
      %v3837 = vmax.f32 %v3522, 0.0
      %v3838 = vmax.f32 %v2820, 0.0
      %v3839 = vmax.f32 %v2822, 0.0
      %v3840 = vmax.f32 %v3526, 0.0
      %v3841 = vmax.f32 %v3528, 0.0
      %v3842 = vmax.f32 %v2824, 0.0
      %v3843 = vmax.f32 %v2826, 0.0
      %v3844 = vmax.f32 %v3530, 0.0
      %v3845 = vmax.f32 %v3532, 0.0
      %v3846 = vmax.f32 %v2830, 0.0
      %v3847 = vmax.f32 %v2832, 0.0
      %v3848 = vmax.f32 %v3536, 0.0
      %v3849 = vmax.f32 %v3538, 0.0
      %v3850 = vmax.f32 %v2834, 0.0
      %v3851 = vmax.f32 %v2836, 0.0
      %v3852 = vmax.f32 %v3540, 0.0
      %v3853 = vmax.f32 %v3542, 0.0
      %v3854 = vmax.f32 %v2840, 0.0
      %v3855 = vmax.f32 %v2842, 0.0
      %v3856 = vmax.f32 %v3546, 0.0
      %v3857 = vmax.f32 %v3548, 0.0
      %v3858 = vmax.f32 %v2844, 0.0
      %v3859 = vmax.f32 %v2846, 0.0
      %v3860 = vmax.f32 %v3550, 0.0
      %v3861 = vmax.f32 %v3552, 0.0
      %v3862 = vmax.f32 %v2850, 0.0
      %v3863 = vmax.f32 %v2852, 0.0
      %v3864 = vmax.f32 %v3556, 0.0
      %v3865 = vmax.f32 %v3558, 0.0
      %v3866 = vmax.f32 %v2854, 0.0
      %v3867 = vmax.f32 %v2856, 0.0
      %v3868 = vmax.f32 %v3560, 0.0
      %v3869 = vmax.f32 %v3562, 0.0
      %v3870 = vmax.f32 %v2860, 0.0
      %v3871 = vmax.f32 %v2862, 0.0
      %v3872 = vmax.f32 %v3566, 0.0
      %v3873 = vmax.f32 %v3568, 0.0
      %v3874 = vmax.f32 %v2864, 0.0
      %v3875 = vmax.f32 %v2866, 0.0
      %v3876 = vmax.f32 %v3570, 0.0
      %v3877 = vmax.f32 %v3572, 0.0
      %v3878 = vmax.f32 %v2870, 0.0
      %v3879 = vmax.f32 %v2872, 0.0
      %v3880 = vmax.f32 %v3576, 0.0
      %v3881 = vmax.f32 %v3578, 0.0
      %v3882 = vmax.f32 %v2874, 0.0
      %v3883 = vmax.f32 %v2876, 0.0
      %v3884 = vmax.f32 %v3580, 0.0
      %v3885 = vmax.f32 %v3582, 0.0
      %v3886 = vmax.f32 %v2880, 0.0
      %v3887 = vmax.f32 %v2882, 0.0
      %v3888 = vmax.f32 %v3586, 0.0
      %v3889 = vmax.f32 %v3588, 0.0
      %v3890 = vmax.f32 %v2884, 0.0
      %v3891 = vmax.f32 %v2886, 0.0
      %v3892 = vmax.f32 %v3590, 0.0
      %v3893 = vmax.f32 %v3592, 0.0
      %v3894 = vmax.f32 %v2890, 0.0
      %v3895 = vmax.f32 %v2892, 0.0
      %v3896 = vmax.f32 %v3596, 0.0
      %v3897 = vmax.f32 %v3598, 0.0
      %v3898 = vmax.f32 %v2894, 0.0
      %v3899 = vmax.f32 %v2896, 0.0
      %v3900 = vmax.f32 %v3600, 0.0
      %v3901 = vmax.f32 %v3602, 0.0
      %v3902 = vmax.f32 %v2900, 0.0
      %v3903 = vmax.f32 %v2902, 0.0
      %v3904 = vmax.f32 %v3606, 0.0
      %v3905 = vmax.f32 %v3608, 0.0
      %v3906 = vmax.f32 %v2904, 0.0
      %v3907 = vmax.f32 %v2906, 0.0
      %v3908 = vmax.f32 %v3610, 0.0
      %v3909 = vmax.f32 %v3612, 0.0
      %v3910 = vmax.f32 %v2910, 0.0
      %v3911 = vmax.f32 %v2912, 0.0
      %v3912 = vmax.f32 %v3616, 0.0
      %v3913 = vmax.f32 %v3618, 0.0
      %v3914 = vmax.f32 %v2914, 0.0
      %v3915 = vmax.f32 %v2916, 0.0
      %v3916 = vmax.f32 %v3620, 0.0
      %v3917 = vmax.f32 %v3622, 0.0
      %v3918 = vmax.f32 %v2920, 0.0
      %v3919 = vmax.f32 %v2922, 0.0
      %v3920 = vmax.f32 %v3626, 0.0
      %v3921 = vmax.f32 %v3628, 0.0
      %v3922 = vmax.f32 %v2924, 0.0
      %v3923 = vmax.f32 %v2926, 0.0
      %v3924 = vmax.f32 %v3630, 0.0
      %v3925 = vmax.f32 %v3632, 0.0
      %v3926 = vmax.f32 %v2930, 0.0
      %v3927 = vmax.f32 %v2932, 0.0
      %v3928 = vmax.f32 %v3636, 0.0
      %v3929 = vmax.f32 %v3638, 0.0
      %v3930 = vmax.f32 %v2934, 0.0
      %v3931 = vmax.f32 %v2936, 0.0
      %v3932 = vmax.f32 %v3640, 0.0
      %v3933 = vmax.f32 %v3642, 0.0
      %v3934 = vmax.f32 %v2940, 0.0
      %v3935 = vmax.f32 %v2942, 0.0
      %v3936 = vmax.f32 %v3646, 0.0
      %v3937 = vmax.f32 %v3648, 0.0
      %v3938 = vmax.f32 %v2944, 0.0
      %v3939 = vmax.f32 %v2946, 0.0
      %v3940 = vmax.f32 %v3650, 0.0
      %v3941 = vmax.f32 %v3652, 0.0
      %v3942 = vmax.f32 %v2950, 0.0
      %v3943 = vmax.f32 %v2952, 0.0
      %v3944 = vmax.f32 %v3656, 0.0
      %v3945 = vmax.f32 %v3658, 0.0
      %v3946 = vmax.f32 %v2954, 0.0
      %v3947 = vmax.f32 %v2956, 0.0
      %v3948 = vmax.f32 %v3660, 0.0
      %v3949 = vmax.f32 %v3662, 0.0
      %v3950 = vmax.f32 %v2960, 0.0
      %v3951 = vmax.f32 %v2962, 0.0
      %v3952 = vmax.f32 %v3666, 0.0
      %v3953 = vmax.f32 %v3668, 0.0
      %v3954 = vmax.f32 %v2964, 0.0
      %v3955 = vmax.f32 %v2966, 0.0
      %v3956 = vmax.f32 %v3670, 0.0
      %v3957 = vmax.f32 %v3672, 0.0
      %v3958 = vmax.f32 %v2970, 0.0
      %v3959 = vmax.f32 %v2972, 0.0
      %v3960 = vmax.f32 %v3676, 0.0
      %v3961 = vmax.f32 %v3678, 0.0
      %v3962 = vmax.f32 %v2974, 0.0
      %v3963 = vmax.f32 %v2976, 0.0
      %v3964 = vmax.f32 %v3680, 0.0
      %v3965 = vmax.f32 %v3682, 0.0
      %v3966 = vmax.f32 %v2980, 0.0
      %v3967 = vmax.f32 %v2982, 0.0
      %v3968 = vmax.f32 %v3686, 0.0
      %v3969 = vmax.f32 %v3688, 0.0
      %v3970 = vmax.f32 %v2984, 0.0
      %v3971 = vmax.f32 %v2986, 0.0
      %v3972 = vmax.f32 %v3690, 0.0
      %v3973 = vmax.f32 %v3692, 0.0
      %v3974 = vmax.f32 %v2990, 0.0
      %v3975 = vmax.f32 %v2992, 0.0
      %v3976 = vmax.f32 %v3696, 0.0
      %v3977 = vmax.f32 %v3698, 0.0
      %v3978 = vmax.f32 %v2994, 0.0
      %v3979 = vmax.f32 %v2996, 0.0
      %v3980 = vmax.f32 %v3700, 0.0
      %v3981 = vmax.f32 %v3702, 0.0
      %v3982 = vmax.f32 %v3000, 0.0
      %v3983 = vmax.f32 %v3002, 0.0
      %v3984 = vmax.f32 %v3706, 0.0
      %v3985 = vmax.f32 %v3708, 0.0
      %v3986 = vmax.f32 %v3004, 0.0
      %v3987 = vmax.f32 %v3006, 0.0
      %v3988 = vmax.f32 %v3710, 0.0
      %v3989 = vmax.f32 %v3712, 0.0
      %v3990 = vmax.f32 %v3010, 0.0
      %v3991 = vmax.f32 %v3012, 0.0
      %v3992 = vmax.f32 %v3716, 0.0
      %v3993 = vmax.f32 %v3718, 0.0
      %v3994 = vmax.f32 %v3014, 0.0
      %v3995 = vmax.f32 %v3016, 0.0
      %v3996 = vmax.f32 %v3720, 0.0
      %v3997 = vmax.f32 %v3722, 0.0
      %v3998 = vmax.f32 %v3020, 0.0
      %v3999 = vmax.f32 %v3022, 0.0
      %v4000 = vmax.f32 %v3726, 0.0
      %v4001 = vmax.f32 %v3728, 0.0
      %v4002 = vmax.f32 %v3024, 0.0
      %v4003 = vmax.f32 %v3026, 0.0
      %v4004 = vmax.f32 %v3730, 0.0
      %v4005 = vmax.f32 %v3732, 0.0
      %v4006 = vmax.f32 %v3030, 0.0
      %v4007 = vmax.f32 %v3032, 0.0
      %v4008 = vmax.f32 %v3736, 0.0
      %v4009 = vmax.f32 %v3738, 0.0
      %v4010 = vmax.f32 %v3034, 0.0
      %v4011 = vmax.f32 %v3036, 0.0
      %v4012 = vmax.f32 %v3740, 0.0
      %v4013 = vmax.f32 %v3742, 0.0
      %v4014 = vmax.f32 %v3040, 0.0
      %v4015 = vmax.f32 %v3042, 0.0
      %v4016 = vmax.f32 %v3746, 0.0
      %v4017 = vmax.f32 %v3748, 0.0
      %v4018 = vmax.f32 %v3044, 0.0
      %v4019 = vmax.f32 %v3046, 0.0
      %v4020 = vmax.f32 %v3750, 0.0
      %v4021 = vmax.f32 %v3752, 0.0
      %v4022 = vmax.f32 %v3050, 0.0
      %v4023 = vmax.f32 %v3052, 0.0
      %v4024 = vmax.f32 %v3756, 0.0
      %v4025 = vmax.f32 %v3758, 0.0
      %v4026 = vmax.f32 %v3054, 0.0
      %v4027 = vmax.f32 %v3056, 0.0
      %v4028 = vmax.f32 %v3760, 0.0
      %v4029 = vmax.f32 %v3762, 0.0
      %v4030 = vmax.f32 %v3060, 0.0
      %v4031 = vmax.f32 %v3062, 0.0
      %v4032 = vmax.f32 %v3766, 0.0
      %v4033 = vmax.f32 %v3768, 0.0
      %v4034 = vmax.f32 %v3064, 0.0
      %v4035 = vmax.f32 %v3066, 0.0
      %v4036 = vmax.f32 %v3770, 0.0
      %v4037 = vmax.f32 %v3772, 0.0
      %v4038 = vmax.f32 %v3070, 0.0
      %v4039 = vmax.f32 %v3072, 0.0
      %v4040 = vmax.f32 %v3776, 0.0
      %v4041 = vmax.f32 %v3778, 0.0
      %v4042 = vmax.f32 %v3074, 0.0
      %v4043 = vmax.f32 %v3076, 0.0
      %v4044 = vmax.f32 %v3780, 0.0
      %v4045 = vmax.f32 %v3782, 0.0
      %v4046 = vmax.f32 %v3080, 0.0
      %v4047 = vmax.f32 %v3082, 0.0
      %v4048 = vmax.f32 %v3786, 0.0
      %v4049 = vmax.f32 %v3788, 0.0
      %v4050 = vmax.f32 %v3084, 0.0
      %v4051 = vmax.f32 %v3086, 0.0
      %v4052 = vmax.f32 %v3790, 0.0
      %v4053 = vmax.f32 %v3792, 0.0
      %v4054 = vmax.f32 %v3090, 0.0
      %v4055 = vmax.f32 %v3092, 0.0
      %v4056 = vmax.f32 %v3796, 0.0
      %v4057 = vmax.f32 %v3798, 0.0
      %v4058 = vmax.f32 %v3094, 0.0
      %v4059 = vmax.f32 %v3096, 0.0
      %v4060 = vmax.f32 %v3800, 0.0
      %v4061 = vmax.f32 %v3802, 0.0
      %v4062 = vmax.f32 %v3100, 0.0
      %v4063 = vmax.f32 %v3102, 0.0
      %v4064 = vmax.f32 %v3806, 0.0
      %v4065 = vmax.f32 %v3808, 0.0
      %v4066 = vmax.f32 %v3104, 0.0
      %v4067 = vmax.f32 %v3106, 0.0
      %v4068 = vmax.f32 %v3810, 0.0
      %v4069 = vmax.f32 %v3812, 0.0
      %v4070 = vpack.c.bf16 %v3818, %v3814
      %v4071 = vpack.c.bf16 %v3819, %v3815
      %v4072 = vpack.c.bf16 %v3820, %v3816
      %v4073 = vpack.c.bf16 %v3821, %v3817
      %v4074 = vpack.c.bf16 %v3826, %v3822
      %v4075 = vpack.c.bf16 %v3827, %v3823
      %v4076 = vpack.c.bf16 %v3828, %v3824
      %v4077 = vpack.c.bf16 %v3829, %v3825
      %v4078 = vpack.c.bf16 %v3834, %v3830
      %v4079 = vpack.c.bf16 %v3835, %v3831
      %v4080 = vpack.c.bf16 %v3836, %v3832
      %v4081 = vpack.c.bf16 %v3837, %v3833
      %v4082 = vpack.c.bf16 %v3842, %v3838
      %v4083 = vpack.c.bf16 %v3843, %v3839
      %v4084 = vpack.c.bf16 %v3844, %v3840
      %v4085 = vpack.c.bf16 %v3845, %v3841
      %v4086 = vpack.c.bf16 %v3850, %v3846
      %v4087 = vpack.c.bf16 %v3851, %v3847
      %v4088 = vpack.c.bf16 %v3852, %v3848
      %v4089 = vpack.c.bf16 %v3853, %v3849
      %v4090 = vpack.c.bf16 %v3858, %v3854
      %v4091 = vpack.c.bf16 %v3859, %v3855
      %v4092 = vpack.c.bf16 %v3860, %v3856
      %v4093 = vpack.c.bf16 %v3861, %v3857
      %v4094 = vpack.c.bf16 %v3866, %v3862
      %v4095 = vpack.c.bf16 %v3867, %v3863
      %v4096 = vpack.c.bf16 %v3868, %v3864
      %v4097 = vpack.c.bf16 %v3869, %v3865
      %v4098 = vpack.c.bf16 %v3874, %v3870
      %v4099 = vpack.c.bf16 %v3875, %v3871
      %v4100 = vpack.c.bf16 %v3876, %v3872
      %v4101 = vpack.c.bf16 %v3877, %v3873
      %v4102 = vpack.c.bf16 %v3882, %v3878
      %v4103 = vpack.c.bf16 %v3883, %v3879
      %v4104 = vpack.c.bf16 %v3884, %v3880
      %v4105 = vpack.c.bf16 %v3885, %v3881
      %v4106 = vpack.c.bf16 %v3890, %v3886
      %v4107 = vpack.c.bf16 %v3891, %v3887
      %v4108 = vpack.c.bf16 %v3892, %v3888
      %v4109 = vpack.c.bf16 %v3893, %v3889
      %v4110 = vpack.c.bf16 %v3898, %v3894
      %v4111 = vpack.c.bf16 %v3899, %v3895
      %v4112 = vpack.c.bf16 %v3900, %v3896
      %v4113 = vpack.c.bf16 %v3901, %v3897
      %v4114 = vpack.c.bf16 %v3906, %v3902
      %v4115 = vpack.c.bf16 %v3907, %v3903
      %v4116 = vpack.c.bf16 %v3908, %v3904
      %v4117 = vpack.c.bf16 %v3909, %v3905
      %v4118 = vpack.c.bf16 %v3914, %v3910
      %v4119 = vpack.c.bf16 %v3915, %v3911
      %v4120 = vpack.c.bf16 %v3916, %v3912
      %v4121 = vpack.c.bf16 %v3917, %v3913
      %v4122 = vpack.c.bf16 %v3922, %v3918
      %v4123 = vpack.c.bf16 %v3923, %v3919
      %v4124 = vpack.c.bf16 %v3924, %v3920
      %v4125 = vpack.c.bf16 %v3925, %v3921
      %v4126 = vpack.c.bf16 %v3930, %v3926
      %v4127 = vpack.c.bf16 %v3931, %v3927
      %v4128 = vpack.c.bf16 %v3932, %v3928
      %v4129 = vpack.c.bf16 %v3933, %v3929
      %v4130 = vpack.c.bf16 %v3938, %v3934
      %v4131 = vpack.c.bf16 %v3939, %v3935
      %v4132 = vpack.c.bf16 %v3940, %v3936
      %v4133 = vpack.c.bf16 %v3941, %v3937
      %v4134 = vpack.c.bf16 %v3946, %v3942
      %v4135 = vpack.c.bf16 %v3947, %v3943
      %v4136 = vpack.c.bf16 %v3948, %v3944
      %v4137 = vpack.c.bf16 %v3949, %v3945
      %v4138 = vpack.c.bf16 %v3954, %v3950
      %v4139 = vpack.c.bf16 %v3955, %v3951
      %v4140 = vpack.c.bf16 %v3956, %v3952
      %v4141 = vpack.c.bf16 %v3957, %v3953
      %v4142 = vpack.c.bf16 %v3962, %v3958
      %v4143 = vpack.c.bf16 %v3963, %v3959
      %v4144 = vpack.c.bf16 %v3964, %v3960
      %v4145 = vpack.c.bf16 %v3965, %v3961
      %v4146 = vpack.c.bf16 %v3970, %v3966
      %v4147 = vpack.c.bf16 %v3971, %v3967
      %v4148 = vpack.c.bf16 %v3972, %v3968
      %v4149 = vpack.c.bf16 %v3973, %v3969
      %v4150 = vpack.c.bf16 %v3978, %v3974
      %v4151 = vpack.c.bf16 %v3979, %v3975
      %v4152 = vpack.c.bf16 %v3980, %v3976
      %v4153 = vpack.c.bf16 %v3981, %v3977
      %v4154 = vpack.c.bf16 %v3986, %v3982
      %v4155 = vpack.c.bf16 %v3987, %v3983
      %v4156 = vpack.c.bf16 %v3988, %v3984
      %v4157 = vpack.c.bf16 %v3989, %v3985
      %v4158 = vpack.c.bf16 %v3994, %v3990
      %v4159 = vpack.c.bf16 %v3995, %v3991
      %v4160 = vpack.c.bf16 %v3996, %v3992
      %v4161 = vpack.c.bf16 %v3997, %v3993
      %v4162 = vpack.c.bf16 %v4002, %v3998
      %v4163 = vpack.c.bf16 %v4003, %v3999
      %v4164 = vpack.c.bf16 %v4004, %v4000
      %v4165 = vpack.c.bf16 %v4005, %v4001
      %v4166 = vpack.c.bf16 %v4010, %v4006
      %v4167 = vpack.c.bf16 %v4011, %v4007
      %v4168 = vpack.c.bf16 %v4012, %v4008
      %v4169 = vpack.c.bf16 %v4013, %v4009
      %v4170 = vpack.c.bf16 %v4018, %v4014
      %v4171 = vpack.c.bf16 %v4019, %v4015
      %v4172 = vpack.c.bf16 %v4020, %v4016
      %v4173 = vpack.c.bf16 %v4021, %v4017
      %v4174 = vpack.c.bf16 %v4026, %v4022
      %v4175 = vpack.c.bf16 %v4027, %v4023
      %v4176 = vpack.c.bf16 %v4028, %v4024
      %v4177 = vpack.c.bf16 %v4029, %v4025
      %v4178 = vpack.c.bf16 %v4034, %v4030
      %v4179 = vpack.c.bf16 %v4035, %v4031
      %v4180 = vpack.c.bf16 %v4036, %v4032
      %v4181 = vpack.c.bf16 %v4037, %v4033
      %v4182 = vpack.c.bf16 %v4042, %v4038
      %v4183 = vpack.c.bf16 %v4043, %v4039
      %v4184 = vpack.c.bf16 %v4044, %v4040
      %v4185 = vpack.c.bf16 %v4045, %v4041
      %v4186 = vpack.c.bf16 %v4050, %v4046
      %v4187 = vpack.c.bf16 %v4051, %v4047
      %v4188 = vpack.c.bf16 %v4052, %v4048
      %v4189 = vpack.c.bf16 %v4053, %v4049
      %v4190 = vpack.c.bf16 %v4058, %v4054
      %v4191 = vpack.c.bf16 %v4059, %v4055
      %v4192 = vpack.c.bf16 %v4060, %v4056
      %v4193 = vpack.c.bf16 %v4061, %v4057
      %v4194 = vpack.c.bf16 %v4066, %v4062
      %v4195 = vpack.c.bf16 %v4067, %v4063
      %v4196 = vpack.c.bf16 %v4068, %v4064
      %v4197 = vpack.c.bf16 %v4069, %v4065
      %v4198 = vld [vmem:[%s5] sm:$0xf]
      %v4199 = vld [vmem:[%s5 + $0x4] sm:$0xf]
      %v4200 = vld [vmem:[%s5 + $0x8] sm:$0xf]
      %v4201 = vld [vmem:[%s5 + $0xc] sm:$0xf]
      %v4202 = vld [vmem:[%s5 + $0x10] sm:$0xf]
      %v4203 = vld [vmem:[%s5 + $0x14] sm:$0xf]
      %v4204 = vld [vmem:[%s5 + $0x18] sm:$0xf]
      %v4205 = vld [vmem:[%s5 + $0x1c] sm:$0xf]
      %v4206 = vld [vmem:[%s5 + $0x20] sm:$0xf]
      %v4207 = vld [vmem:[%s5 + $0x24] sm:$0xf]
      %v4208 = vld [vmem:[%s5 + $0x28] sm:$0xf]
      %v4209 = vld [vmem:[%s5 + $0x2c] sm:$0xf]
      %v4210 = vld [vmem:[%s5 + $0x30] sm:$0xf]
      %v4211 = vld [vmem:[%s5 + $0x34] sm:$0xf]
      %v4212 = vld [vmem:[%s5 + $0x38] sm:$0xf]
      %v4213 = vld [vmem:[%s5 + $0x3c] sm:$0xf]
      %v4214 = vld [vmem:[%s5 + $0x40] sm:$0xf]
      %v4215 = vld [vmem:[%s5 + $0x44] sm:$0xf]
      %v4216 = vld [vmem:[%s5 + $0x48] sm:$0xf]
      %v4217 = vld [vmem:[%s5 + $0x4c] sm:$0xf]
      %v4218 = vld [vmem:[%s5 + $0x50] sm:$0xf]
      %v4219 = vld [vmem:[%s5 + $0x54] sm:$0xf]
      %v4220 = vld [vmem:[%s5 + $0x58] sm:$0xf]
      %v4221 = vld [vmem:[%s5 + $0x5c] sm:$0xf]
      %v4222 = vld [vmem:[%s5 + $0x60] sm:$0xf]
      %v4223 = vld [vmem:[%s5 + $0x64] sm:$0xf]
      %v4224 = vld [vmem:[%s5 + $0x68] sm:$0xf]
      %v4225 = vld [vmem:[%s5 + $0x6c] sm:$0xf]
      %v4226 = vld [vmem:[%s5 + $0x70] sm:$0xf]
      %v4227 = vld [vmem:[%s5 + $0x74] sm:$0xf]
      %v4228 = vld [vmem:[%s5 + $0x78] sm:$0xf]
      %v4229 = vld [vmem:[%s5 + $0x7c] sm:$0xf]
      %v4230 = vld [vmem:[%s5 + $0x80] sm:$0xf]
      %v4231 = vld [vmem:[%s5 + $0x84] sm:$0xf]
      %v4232 = vld [vmem:[%s5 + $0x88] sm:$0xf]
      %v4233 = vld [vmem:[%s5 + $0x8c] sm:$0xf]
      %v4234 = vld [vmem:[%s5 + $0x90] sm:$0xf]
      %v4235 = vld [vmem:[%s5 + $0x94] sm:$0xf]
      %v4236 = vld [vmem:[%s5 + $0x98] sm:$0xf]
      %v4237 = vld [vmem:[%s5 + $0x9c] sm:$0xf]
      %v4238 = vld [vmem:[%s5 + $0xa0] sm:$0xf]
      %v4239 = vld [vmem:[%s5 + $0xa4] sm:$0xf]
      %v4240 = vld [vmem:[%s5 + $0xa8] sm:$0xf]
      %v4241 = vld [vmem:[%s5 + $0xac] sm:$0xf]
      %v4242 = vld [vmem:[%s5 + $0xb0] sm:$0xf]
      %v4243 = vld [vmem:[%s5 + $0xb4] sm:$0xf]
      %v4244 = vld [vmem:[%s5 + $0xb8] sm:$0xf]
      %v4245 = vld [vmem:[%s5 + $0xbc] sm:$0xf]
      %v4246 = vld [vmem:[%s5 + $0xc0] sm:$0xf]
      %v4247 = vld [vmem:[%s5 + $0xc4] sm:$0xf]
      %v4248 = vld [vmem:[%s5 + $0xc8] sm:$0xf]
      %v4249 = vld [vmem:[%s5 + $0xcc] sm:$0xf]
      %v4250 = vld [vmem:[%s5 + $0xd0] sm:$0xf]
      %v4251 = vld [vmem:[%s5 + $0xd4] sm:$0xf]
      %v4252 = vld [vmem:[%s5 + $0xd8] sm:$0xf]
      %v4253 = vld [vmem:[%s5 + $0xdc] sm:$0xf]
      %v4254 = vld [vmem:[%s5 + $0xe0] sm:$0xf]
      %v4255 = vld [vmem:[%s5 + $0xe4] sm:$0xf]
      %v4256 = vld [vmem:[%s5 + $0xe8] sm:$0xf]
      %v4257 = vld [vmem:[%s5 + $0xec] sm:$0xf]
      %v4258 = vld [vmem:[%s5 + $0xf0] sm:$0xf]
      %v4259 = vld [vmem:[%s5 + $0xf4] sm:$0xf]
      %v4260 = vld [vmem:[%s5 + $0xf8] sm:$0xf]
      %v4261 = vld [vmem:[%s5 + $0xfc] sm:$0xf]
      %v4262 = vld [vmem:[%s6] sm:$0x1]
      %v4264 = vlaneseq
      %v4265 = vshrl.u32 %v4264, 7
      %v4266 = vsub.s32 0, %v4265
      %v4267 = vrot.slane %v4262, %v4266
      %v4333 = vunpack.c.l.b16 %v4198
      %v4334 = vunpack.c.l.b16 %v4199
      %v4335 = vunpack.c.l.b16 %v4200
      %v4336 = vunpack.c.l.b16 %v4201
      %v4337 = vunpack.c.l.b16 %v4202
      %v4338 = vunpack.c.l.b16 %v4203
      %v4339 = vunpack.c.l.b16 %v4204
      %v4340 = vunpack.c.l.b16 %v4205
      %v4341 = vunpack.c.l.b16 %v4206
      %v4342 = vunpack.c.l.b16 %v4207
      %v4343 = vunpack.c.l.b16 %v4208
      %v4344 = vunpack.c.l.b16 %v4209
      %v4345 = vunpack.c.l.b16 %v4210
      %v4346 = vunpack.c.l.b16 %v4211
      %v4347 = vunpack.c.l.b16 %v4212
      %v4348 = vunpack.c.l.b16 %v4213
      %v4349 = vunpack.c.l.b16 %v4214
      %v4350 = vunpack.c.l.b16 %v4215
      %v4351 = vunpack.c.l.b16 %v4216
      %v4352 = vunpack.c.l.b16 %v4217
      %v4353 = vunpack.c.l.b16 %v4218
      %v4354 = vunpack.c.l.b16 %v4219
      %v4355 = vunpack.c.l.b16 %v4220
      %v4356 = vunpack.c.l.b16 %v4221
      %v4357 = vunpack.c.l.b16 %v4222
      %v4358 = vunpack.c.l.b16 %v4223
      %v4359 = vunpack.c.l.b16 %v4224
      %v4360 = vunpack.c.l.b16 %v4225
      %v4361 = vunpack.c.l.b16 %v4226
      %v4362 = vunpack.c.l.b16 %v4227
      %v4363 = vunpack.c.l.b16 %v4228
      %v4364 = vunpack.c.l.b16 %v4229
      %v4365 = vunpack.c.l.b16 %v4230
      %v4366 = vunpack.c.l.b16 %v4231
      %v4367 = vunpack.c.l.b16 %v4232
      %v4368 = vunpack.c.l.b16 %v4233
      %v4369 = vunpack.c.l.b16 %v4234
      %v4370 = vunpack.c.l.b16 %v4235
      %v4371 = vunpack.c.l.b16 %v4236
      %v4372 = vunpack.c.l.b16 %v4237
      %v4373 = vunpack.c.l.b16 %v4238
      %v4374 = vunpack.c.l.b16 %v4239
      %v4375 = vunpack.c.l.b16 %v4240
      %v4376 = vunpack.c.l.b16 %v4241
      %v4377 = vunpack.c.l.b16 %v4242
      %v4378 = vunpack.c.l.b16 %v4243
      %v4379 = vunpack.c.l.b16 %v4244
      %v4380 = vunpack.c.l.b16 %v4245
      %v4381 = vunpack.c.l.b16 %v4246
      %v4382 = vunpack.c.l.b16 %v4247
      %v4383 = vunpack.c.l.b16 %v4248
      %v4384 = vunpack.c.l.b16 %v4249
      %v4385 = vunpack.c.l.b16 %v4250
      %v4386 = vunpack.c.l.b16 %v4251
      %v4387 = vunpack.c.l.b16 %v4252
      %v4388 = vunpack.c.l.b16 %v4253
      %v4389 = vunpack.c.l.b16 %v4254
      %v4390 = vunpack.c.l.b16 %v4255
      %v4391 = vunpack.c.l.b16 %v4256
      %v4392 = vunpack.c.l.b16 %v4257
      %v4393 = vunpack.c.l.b16 %v4258
      %v4394 = vunpack.c.l.b16 %v4259
      %v4395 = vunpack.c.l.b16 %v4260
      %v4396 = vunpack.c.l.b16 %v4261
      %v4397 = vpack.c.b16 %v4334, %v4333
      %v4398 = vpack.c.b16 %v4336, %v4335
      %v4399 = vpack.c.b16 %v4338, %v4337
      %v4400 = vpack.c.b16 %v4340, %v4339
      %v4401 = vpack.c.b16 %v4342, %v4341
      %v4402 = vpack.c.b16 %v4344, %v4343
      %v4403 = vpack.c.b16 %v4346, %v4345
      %v4404 = vpack.c.b16 %v4348, %v4347
      %v4405 = vpack.c.b16 %v4350, %v4349
      %v4406 = vpack.c.b16 %v4352, %v4351
      %v4407 = vpack.c.b16 %v4354, %v4353
      %v4408 = vpack.c.b16 %v4356, %v4355
      %v4409 = vpack.c.b16 %v4358, %v4357
      %v4410 = vpack.c.b16 %v4360, %v4359
      %v4411 = vpack.c.b16 %v4362, %v4361
      %v4412 = vpack.c.b16 %v4364, %v4363
      %v4413 = vpack.c.b16 %v4366, %v4365
      %v4414 = vpack.c.b16 %v4368, %v4367
      %v4415 = vpack.c.b16 %v4370, %v4369
      %v4416 = vpack.c.b16 %v4372, %v4371
      %v4417 = vpack.c.b16 %v4374, %v4373
      %v4418 = vpack.c.b16 %v4376, %v4375
      %v4419 = vpack.c.b16 %v4378, %v4377
      %v4420 = vpack.c.b16 %v4380, %v4379
      %v4421 = vpack.c.b16 %v4382, %v4381
      %v4422 = vpack.c.b16 %v4384, %v4383
      %v4423 = vpack.c.b16 %v4386, %v4385
      %v4424 = vpack.c.b16 %v4388, %v4387
      %v4425 = vpack.c.b16 %v4390, %v4389
      %v4426 = vpack.c.b16 %v4392, %v4391
      %v4427 = vpack.c.b16 %v4394, %v4393
      %v4428 = vpack.c.b16 %v4396, %v4395
      %4461 = vmatprep.subr.bf16.mxu0 0
      %4462 = vmatpush1.bf16.msra.mxu0 %v4397
      %4463 = vmatprep.subr.bf16.mxu0 0
      %4464 = vmatpush1.bf16.msra.mxu0 %v4398
      %4465 = vmatprep.subr.bf16.mxu0 0
      %4466 = vmatpush1.bf16.msra.mxu0 %v4399
      %4467 = vmatprep.subr.bf16.mxu0 0
      %4468 = vmatpush1.bf16.msra.mxu0 %v4400
      %4469 = vmatprep.subr.bf16.mxu0 0
      %4470 = vmatpush1.bf16.msra.mxu0 %v4401
      %4471 = vmatprep.subr.bf16.mxu0 0
      %4472 = vmatpush1.bf16.msra.mxu0 %v4402
      %4473 = vmatprep.subr.bf16.mxu0 0
      %4474 = vmatpush1.bf16.msra.mxu0 %v4403
      %4475 = vmatprep.subr.bf16.mxu0 0
      %4476 = vmatpush1.bf16.msra.mxu0 %v4404
      %4477 = vmatprep.subr.bf16.mxu0 0
      %4478 = vmatpush1.bf16.msra.mxu0 %v4405
      %4479 = vmatprep.subr.bf16.mxu0 0
      %4480 = vmatpush1.bf16.msra.mxu0 %v4406
      %4481 = vmatprep.subr.bf16.mxu0 0
      %4482 = vmatpush1.bf16.msra.mxu0 %v4407
      %4483 = vmatprep.subr.bf16.mxu0 0
      %4484 = vmatpush1.bf16.msra.mxu0 %v4408
      %4485 = vmatprep.subr.bf16.mxu0 0
      %4486 = vmatpush1.bf16.msra.mxu0 %v4409
      %4487 = vmatprep.subr.bf16.mxu0 0
      %4488 = vmatpush1.bf16.msra.mxu0 %v4410
      %4489 = vmatprep.subr.bf16.mxu0 0
      %4490 = vmatpush1.bf16.msra.mxu0 %v4411
      %4491 = vmatprep.subr.bf16.mxu0 0
      %4492 = vmatpush1.bf16.msra.mxu0 %v4412
      %4493 = vmatprep.mubr.bf16.mxu0 %v4071
      %4494 = vmatmul.mubr.bf16.gmra.mrb[0].mxu0 %v4070
      %v4495 = vpop.f32.mrb[0].mxu0
      %v4496 = vadd.f32 %v4267, %v4495
      %v4497 = vpop.f32.mrb[0].mxu0
      %v4498 = vpop.f32.mrb[0].mxu0
      %v4499 = vadd.f32 %v4267, %v4498
      %v4500 = vpop.f32.mrb[0].mxu0
      %4501 = vmatprep.mubr.bf16.mxu0 %v4075
      %4502 = vmatmul.mubr.bf16.gmra.mrb[0].mxu0 %v4074
      %v4503 = vpop.f32.mrb[0].mxu0
      %v4504 = vadd.f32 %v4267, %v4503
      %v4505 = vpop.f32.mrb[0].mxu0
      %v4506 = vpop.f32.mrb[0].mxu0
      %v4507 = vadd.f32 %v4267, %v4506
      %v4508 = vpop.f32.mrb[0].mxu0
      %4509 = vmatprep.mubr.bf16.mxu0 %v4079
      %4510 = vmatmul.mubr.bf16.gmra.mrb[0].mxu0 %v4078
      %v4511 = vpop.f32.mrb[0].mxu0
      %v4512 = vadd.f32 %v4267, %v4511
      %v4513 = vpop.f32.mrb[0].mxu0
      %v4514 = vpop.f32.mrb[0].mxu0
      %v4515 = vadd.f32 %v4267, %v4514
      %v4516 = vpop.f32.mrb[0].mxu0
      %4517 = vmatprep.mubr.bf16.mxu0 %v4083
      %4518 = vmatmul.mubr.bf16.gmra.mrb[0].mxu0 %v4082
      %v4519 = vpop.f32.mrb[0].mxu0
      %v4520 = vadd.f32 %v4267, %v4519
      %v4521 = vpop.f32.mrb[0].mxu0
      %v4522 = vpop.f32.mrb[0].mxu0
      %v4523 = vadd.f32 %v4267, %v4522
      %v4524 = vpop.f32.mrb[0].mxu0
      %4525 = vmatprep.mubr.bf16.mxu0 %v4087
      %4526 = vmatmul.mubr.bf16.gmra.mrb[0].mxu0 %v4086
      %v4527 = vpop.f32.mrb[0].mxu0
      %v4528 = vadd.f32 %v4267, %v4527
      %v4529 = vpop.f32.mrb[0].mxu0
      %v4530 = vpop.f32.mrb[0].mxu0
      %v4531 = vadd.f32 %v4267, %v4530
      %v4532 = vpop.f32.mrb[0].mxu0
      %4533 = vmatprep.mubr.bf16.mxu0 %v4091
      %4534 = vmatmul.mubr.bf16.gmra.mrb[0].mxu0 %v4090
      %v4535 = vpop.f32.mrb[0].mxu0
      %v4536 = vadd.f32 %v4267, %v4535
      %v4537 = vpop.f32.mrb[0].mxu0
      %v4538 = vpop.f32.mrb[0].mxu0
      %v4539 = vadd.f32 %v4267, %v4538
      %v4540 = vpop.f32.mrb[0].mxu0
      %4541 = vmatprep.mubr.bf16.mxu0 %v4095
      %4542 = vmatmul.mubr.bf16.gmra.mrb[0].mxu0 %v4094
      %v4543 = vpop.f32.mrb[0].mxu0
      %v4544 = vadd.f32 %v4267, %v4543
      %v4545 = vpop.f32.mrb[0].mxu0
      %v4546 = vpop.f32.mrb[0].mxu0
      %v4547 = vadd.f32 %v4267, %v4546
      %v4548 = vpop.f32.mrb[0].mxu0
      %4549 = vmatprep.mubr.bf16.mxu0 %v4099
      %4550 = vmatmul.mubr.bf16.gmra.mrb[0].mxu0 %v4098
      %v4551 = vpop.f32.mrb[0].mxu0
      %v4552 = vadd.f32 %v4267, %v4551
      %v4553 = vpop.f32.mrb[0].mxu0
      %v4554 = vpop.f32.mrb[0].mxu0
      %v4555 = vadd.f32 %v4267, %v4554
      %v4556 = vpop.f32.mrb[0].mxu0
      %4557 = vmatprep.mubr.bf16.mxu0 %v4103
      %4558 = vmatmul.mubr.bf16.gmra.mrb[0].mxu0 %v4102
      %v4559 = vpop.f32.mrb[0].mxu0
      %v4560 = vadd.f32 %v4267, %v4559
      %v4561 = vpop.f32.mrb[0].mxu0
      %v4562 = vpop.f32.mrb[0].mxu0
      %v4563 = vadd.f32 %v4267, %v4562
      %v4564 = vpop.f32.mrb[0].mxu0
      %4565 = vmatprep.mubr.bf16.mxu0 %v4107
      %4566 = vmatmul.mubr.bf16.gmra.mrb[0].mxu0 %v4106
      %v4567 = vpop.f32.mrb[0].mxu0
      %v4568 = vadd.f32 %v4267, %v4567
      %v4569 = vpop.f32.mrb[0].mxu0
      %v4570 = vpop.f32.mrb[0].mxu0
      %v4571 = vadd.f32 %v4267, %v4570
      %v4572 = vpop.f32.mrb[0].mxu0
      %4573 = vmatprep.mubr.bf16.mxu0 %v4111
      %4574 = vmatmul.mubr.bf16.gmra.mrb[0].mxu0 %v4110
      %v4575 = vpop.f32.mrb[0].mxu0
      %v4576 = vadd.f32 %v4267, %v4575
      %v4577 = vpop.f32.mrb[0].mxu0
      %v4578 = vpop.f32.mrb[0].mxu0
      %v4579 = vadd.f32 %v4267, %v4578
      %v4580 = vpop.f32.mrb[0].mxu0
      %4581 = vmatprep.mubr.bf16.mxu0 %v4115
      %4582 = vmatmul.mubr.bf16.gmra.mrb[0].mxu0 %v4114
      %v4583 = vpop.f32.mrb[0].mxu0
      %v4584 = vadd.f32 %v4267, %v4583
      %v4585 = vpop.f32.mrb[0].mxu0
      %v4586 = vpop.f32.mrb[0].mxu0
      %v4587 = vadd.f32 %v4267, %v4586
      %v4588 = vpop.f32.mrb[0].mxu0
      %4589 = vmatprep.mubr.bf16.mxu0 %v4119
      %4590 = vmatmul.mubr.bf16.gmra.mrb[0].mxu0 %v4118
      %v4591 = vpop.f32.mrb[0].mxu0
      %v4592 = vadd.f32 %v4267, %v4591
      %v4593 = vpop.f32.mrb[0].mxu0
      %v4594 = vpop.f32.mrb[0].mxu0
      %v4595 = vadd.f32 %v4267, %v4594
      %v4596 = vpop.f32.mrb[0].mxu0
      %4597 = vmatprep.mubr.bf16.mxu0 %v4123
      %4598 = vmatmul.mubr.bf16.gmra.mrb[0].mxu0 %v4122
      %v4599 = vpop.f32.mrb[0].mxu0
      %v4600 = vadd.f32 %v4267, %v4599
      %v4601 = vpop.f32.mrb[0].mxu0
      %v4602 = vpop.f32.mrb[0].mxu0
      %v4603 = vadd.f32 %v4267, %v4602
      %v4604 = vpop.f32.mrb[0].mxu0
      %4605 = vmatprep.mubr.bf16.mxu0 %v4127
      %4606 = vmatmul.mubr.bf16.gmra.mrb[0].mxu0 %v4126
      %v4607 = vpop.f32.mrb[0].mxu0
      %v4608 = vadd.f32 %v4267, %v4607
      %v4609 = vpop.f32.mrb[0].mxu0
      %v4610 = vpop.f32.mrb[0].mxu0
      %v4611 = vadd.f32 %v4267, %v4610
      %v4612 = vpop.f32.mrb[0].mxu0
      %4613 = vmatprep.mubr.bf16.mxu0 %v4131
      %4614 = vmatmul.mubr.bf16.gmra.mrb[0].mxu0 %v4130
      %v4615 = vpop.f32.mrb[0].mxu0
      %v4616 = vadd.f32 %v4267, %v4615
      %v4617 = vpop.f32.mrb[0].mxu0
      %v4618 = vpop.f32.mrb[0].mxu0
      %v4619 = vadd.f32 %v4267, %v4618
      %v4620 = vpop.f32.mrb[0].mxu0
      %4621 = vmatprep.mubr.bf16.mxu0 %v4135
      %4622 = vmatmul.mubr.bf16.gmra.mrb[0].mxu0 %v4134
      %v4623 = vpop.f32.mrb[0].mxu0
      %v4624 = vadd.f32 %v4267, %v4623
      %v4625 = vpop.f32.mrb[0].mxu0
      %v4626 = vpop.f32.mrb[0].mxu0
      %v4627 = vadd.f32 %v4267, %v4626
      %v4628 = vpop.f32.mrb[0].mxu0
      %4629 = vmatprep.mubr.bf16.mxu0 %v4139
      %4630 = vmatmul.mubr.bf16.gmra.mrb[0].mxu0 %v4138
      %v4631 = vpop.f32.mrb[0].mxu0
      %v4632 = vadd.f32 %v4267, %v4631
      %v4633 = vpop.f32.mrb[0].mxu0
      %v4634 = vpop.f32.mrb[0].mxu0
      %v4635 = vadd.f32 %v4267, %v4634
      %v4636 = vpop.f32.mrb[0].mxu0
      %4637 = vmatprep.mubr.bf16.mxu0 %v4143
      %4638 = vmatmul.mubr.bf16.gmra.mrb[0].mxu0 %v4142
      %v4639 = vpop.f32.mrb[0].mxu0
      %v4640 = vadd.f32 %v4267, %v4639
      %v4641 = vpop.f32.mrb[0].mxu0
      %v4642 = vpop.f32.mrb[0].mxu0
      %v4643 = vadd.f32 %v4267, %v4642
      %v4644 = vpop.f32.mrb[0].mxu0
      %4645 = vmatprep.mubr.bf16.mxu0 %v4147
      %4646 = vmatmul.mubr.bf16.gmra.mrb[0].mxu0 %v4146
      %v4647 = vpop.f32.mrb[0].mxu0
      %v4648 = vadd.f32 %v4267, %v4647
      %v4649 = vpop.f32.mrb[0].mxu0
      %v4650 = vpop.f32.mrb[0].mxu0
      %v4651 = vadd.f32 %v4267, %v4650
      %v4652 = vpop.f32.mrb[0].mxu0
      %4653 = vmatprep.mubr.bf16.mxu0 %v4151
      %4654 = vmatmul.mubr.bf16.gmra.mrb[0].mxu0 %v4150
      %v4655 = vpop.f32.mrb[0].mxu0
      %v4656 = vadd.f32 %v4267, %v4655
      %v4657 = vpop.f32.mrb[0].mxu0
      %v4658 = vpop.f32.mrb[0].mxu0
      %v4659 = vadd.f32 %v4267, %v4658
      %v4660 = vpop.f32.mrb[0].mxu0
      %4661 = vmatprep.mubr.bf16.mxu0 %v4155
      %4662 = vmatmul.mubr.bf16.gmra.mrb[0].mxu0 %v4154
      %v4663 = vpop.f32.mrb[0].mxu0
      %v4664 = vadd.f32 %v4267, %v4663
      %v4665 = vpop.f32.mrb[0].mxu0
      %v4666 = vpop.f32.mrb[0].mxu0
      %v4667 = vadd.f32 %v4267, %v4666
      %v4668 = vpop.f32.mrb[0].mxu0
      %4669 = vmatprep.mubr.bf16.mxu0 %v4159
      %4670 = vmatmul.mubr.bf16.gmra.mrb[0].mxu0 %v4158
      %v4671 = vpop.f32.mrb[0].mxu0
      %v4672 = vadd.f32 %v4267, %v4671
      %v4673 = vpop.f32.mrb[0].mxu0
      %v4674 = vpop.f32.mrb[0].mxu0
      %v4675 = vadd.f32 %v4267, %v4674
      %v4676 = vpop.f32.mrb[0].mxu0
      %4677 = vmatprep.mubr.bf16.mxu0 %v4163
      %4678 = vmatmul.mubr.bf16.gmra.mrb[0].mxu0 %v4162
      %v4679 = vpop.f32.mrb[0].mxu0
      %v4680 = vadd.f32 %v4267, %v4679
      %v4681 = vpop.f32.mrb[0].mxu0
      %v4682 = vpop.f32.mrb[0].mxu0
      %v4683 = vadd.f32 %v4267, %v4682
      %v4684 = vpop.f32.mrb[0].mxu0
      %4685 = vmatprep.mubr.bf16.mxu0 %v4167
      %4686 = vmatmul.mubr.bf16.gmra.mrb[0].mxu0 %v4166
      %v4687 = vpop.f32.mrb[0].mxu0
      %v4688 = vadd.f32 %v4267, %v4687
      %v4689 = vpop.f32.mrb[0].mxu0
      %v4690 = vpop.f32.mrb[0].mxu0
      %v4691 = vadd.f32 %v4267, %v4690
      %v4692 = vpop.f32.mrb[0].mxu0
      %4693 = vmatprep.mubr.bf16.mxu0 %v4171
      %4694 = vmatmul.mubr.bf16.gmra.mrb[0].mxu0 %v4170
      %v4695 = vpop.f32.mrb[0].mxu0
      %v4696 = vadd.f32 %v4267, %v4695
      %v4697 = vpop.f32.mrb[0].mxu0
      %v4698 = vpop.f32.mrb[0].mxu0
      %v4699 = vadd.f32 %v4267, %v4698
      %v4700 = vpop.f32.mrb[0].mxu0
      %4701 = vmatprep.mubr.bf16.mxu0 %v4175
      %4702 = vmatmul.mubr.bf16.gmra.mrb[0].mxu0 %v4174
      %v4703 = vpop.f32.mrb[0].mxu0
      %v4704 = vadd.f32 %v4267, %v4703
      %v4705 = vpop.f32.mrb[0].mxu0
      %v4706 = vpop.f32.mrb[0].mxu0
      %v4707 = vadd.f32 %v4267, %v4706
      %v4708 = vpop.f32.mrb[0].mxu0
      %4709 = vmatprep.mubr.bf16.mxu0 %v4179
      %4710 = vmatmul.mubr.bf16.gmra.mrb[0].mxu0 %v4178
      %v4711 = vpop.f32.mrb[0].mxu0
      %v4712 = vadd.f32 %v4267, %v4711
      %v4713 = vpop.f32.mrb[0].mxu0
      %v4714 = vpop.f32.mrb[0].mxu0
      %v4715 = vadd.f32 %v4267, %v4714
      %v4716 = vpop.f32.mrb[0].mxu0
      %4717 = vmatprep.mubr.bf16.mxu0 %v4183
      %4718 = vmatmul.mubr.bf16.gmra.mrb[0].mxu0 %v4182
      %v4719 = vpop.f32.mrb[0].mxu0
      %v4720 = vadd.f32 %v4267, %v4719
      %v4721 = vpop.f32.mrb[0].mxu0
      %v4722 = vpop.f32.mrb[0].mxu0
      %v4723 = vadd.f32 %v4267, %v4722
      %v4724 = vpop.f32.mrb[0].mxu0
      %4725 = vmatprep.mubr.bf16.mxu0 %v4187
      %4726 = vmatmul.mubr.bf16.gmra.mrb[0].mxu0 %v4186
      %v4727 = vpop.f32.mrb[0].mxu0
      %v4728 = vadd.f32 %v4267, %v4727
      %v4729 = vpop.f32.mrb[0].mxu0
      %v4730 = vpop.f32.mrb[0].mxu0
      %v4731 = vadd.f32 %v4267, %v4730
      %v4732 = vpop.f32.mrb[0].mxu0
      %4733 = vmatprep.mubr.bf16.mxu0 %v4191
      %4734 = vmatmul.mubr.bf16.gmra.mrb[0].mxu0 %v4190
      %v4735 = vpop.f32.mrb[0].mxu0
      %v4736 = vadd.f32 %v4267, %v4735
      %v4737 = vpop.f32.mrb[0].mxu0
      %v4738 = vpop.f32.mrb[0].mxu0
      %v4739 = vadd.f32 %v4267, %v4738
      %v4740 = vpop.f32.mrb[0].mxu0
      %4741 = vmatprep.mubr.bf16.mxu0 %v4195
      %4742 = vmatmul.mubr.bf16.gmra.mrb[0].mxu0 %v4194
      %v4743 = vpop.f32.mrb[0].mxu0
      %v4744 = vadd.f32 %v4267, %v4743
      %v4745 = vpop.f32.mrb[0].mxu0
      %v4746 = vpop.f32.mrb[0].mxu0
      %v4747 = vadd.f32 %v4267, %v4746
      %v4748 = vpop.f32.mrb[0].mxu0
      %4749 = vdwg.mxu0
      %4750 = vmatprep.subr.bf16.mxu0 0
      %4751 = vmatpush1.bf16.msra.mxu0 %v4413
      %4752 = vmatprep.subr.bf16.mxu0 0
      %4753 = vmatpush1.bf16.msra.mxu0 %v4414
      %4754 = vmatprep.subr.bf16.mxu0 0
      %4755 = vmatpush1.bf16.msra.mxu0 %v4415
      %4756 = vmatprep.subr.bf16.mxu0 0
      %4757 = vmatpush1.bf16.msra.mxu0 %v4416
      %4758 = vmatprep.subr.bf16.mxu0 0
      %4759 = vmatpush1.bf16.msra.mxu0 %v4417
      %4760 = vmatprep.subr.bf16.mxu0 0
      %4761 = vmatpush1.bf16.msra.mxu0 %v4418
      %4762 = vmatprep.subr.bf16.mxu0 0
      %4763 = vmatpush1.bf16.msra.mxu0 %v4419
      %4764 = vmatprep.subr.bf16.mxu0 0
      %4765 = vmatpush1.bf16.msra.mxu0 %v4420
      %4766 = vmatprep.subr.bf16.mxu0 0
      %4767 = vmatpush1.bf16.msra.mxu0 %v4421
      %4768 = vmatprep.subr.bf16.mxu0 0
      %4769 = vmatpush1.bf16.msra.mxu0 %v4422
      %4770 = vmatprep.subr.bf16.mxu0 0
      %4771 = vmatpush1.bf16.msra.mxu0 %v4423
      %4772 = vmatprep.subr.bf16.mxu0 0
      %4773 = vmatpush1.bf16.msra.mxu0 %v4424
      %4774 = vmatprep.subr.bf16.mxu0 0
      %4775 = vmatpush1.bf16.msra.mxu0 %v4425
      %4776 = vmatprep.subr.bf16.mxu0 0
      %4777 = vmatpush1.bf16.msra.mxu0 %v4426
      %4778 = vmatprep.subr.bf16.mxu0 0
      %4779 = vmatpush1.bf16.msra.mxu0 %v4427
      %4780 = vmatprep.subr.bf16.mxu0 0
      %4781 = vmatpush1.bf16.msra.mxu0 %v4428
      %4782 = vmatprep.mubr.bf16.mxu0 %v4073
      %4783 = vmatmul.mubr.bf16.gmra.mrb[0].mxu0 %v4072
      %v4784 = vpop.f32.mrb[0].mxu0
      %v4785 = vadd.f32 %v4496, %v4784
      %v4786 = vpop.f32.mrb[0].mxu0
      %v4787 = vpop.f32.mrb[0].mxu0
      %v4788 = vadd.f32 %v4499, %v4787
      %v4789 = vpop.f32.mrb[0].mxu0
      %4790 = vmatprep.mubr.bf16.mxu0 %v4077
      %4791 = vmatmul.mubr.bf16.gmra.mrb[0].mxu0 %v4076
      %v4792 = vpop.f32.mrb[0].mxu0
      %v4793 = vadd.f32 %v4504, %v4792
      %v4794 = vpop.f32.mrb[0].mxu0
      %v4795 = vpop.f32.mrb[0].mxu0
      %v4796 = vadd.f32 %v4507, %v4795
      %v4797 = vpop.f32.mrb[0].mxu0
      %4798 = vmatprep.mubr.bf16.mxu0 %v4081
      %4799 = vmatmul.mubr.bf16.gmra.mrb[0].mxu0 %v4080
      %v4800 = vpop.f32.mrb[0].mxu0
      %v4801 = vadd.f32 %v4512, %v4800
      %v4802 = vpop.f32.mrb[0].mxu0
      %v4803 = vpop.f32.mrb[0].mxu0
      %v4804 = vadd.f32 %v4515, %v4803
      %v4805 = vpop.f32.mrb[0].mxu0
      %4806 = vmatprep.mubr.bf16.mxu0 %v4085
      %4807 = vmatmul.mubr.bf16.gmra.mrb[0].mxu0 %v4084
      %v4808 = vpop.f32.mrb[0].mxu0
      %v4809 = vadd.f32 %v4520, %v4808
      %v4810 = vpop.f32.mrb[0].mxu0
      %v4811 = vpop.f32.mrb[0].mxu0
      %v4812 = vadd.f32 %v4523, %v4811
      %v4813 = vpop.f32.mrb[0].mxu0
      %4814 = vmatprep.mubr.bf16.mxu0 %v4089
      %4815 = vmatmul.mubr.bf16.gmra.mrb[0].mxu0 %v4088
      %v4816 = vpop.f32.mrb[0].mxu0
      %v4817 = vadd.f32 %v4528, %v4816
      %v4818 = vpop.f32.mrb[0].mxu0
      %v4819 = vpop.f32.mrb[0].mxu0
      %v4820 = vadd.f32 %v4531, %v4819
      %v4821 = vpop.f32.mrb[0].mxu0
      %4822 = vmatprep.mubr.bf16.mxu0 %v4093
      %4823 = vmatmul.mubr.bf16.gmra.mrb[0].mxu0 %v4092
      %v4824 = vpop.f32.mrb[0].mxu0
      %v4825 = vadd.f32 %v4536, %v4824
      %v4826 = vpop.f32.mrb[0].mxu0
      %v4827 = vpop.f32.mrb[0].mxu0
      %v4828 = vadd.f32 %v4539, %v4827
      %v4829 = vpop.f32.mrb[0].mxu0
      %4830 = vmatprep.mubr.bf16.mxu0 %v4097
      %4831 = vmatmul.mubr.bf16.gmra.mrb[0].mxu0 %v4096
      %v4832 = vpop.f32.mrb[0].mxu0
      %v4833 = vadd.f32 %v4544, %v4832
      %v4834 = vpop.f32.mrb[0].mxu0
      %v4835 = vpop.f32.mrb[0].mxu0
      %v4836 = vadd.f32 %v4547, %v4835
      %v4837 = vpop.f32.mrb[0].mxu0
      %4838 = vmatprep.mubr.bf16.mxu0 %v4101
      %4839 = vmatmul.mubr.bf16.gmra.mrb[0].mxu0 %v4100
      %v4840 = vpop.f32.mrb[0].mxu0
      %v4841 = vadd.f32 %v4552, %v4840
      %v4842 = vpop.f32.mrb[0].mxu0
      %v4843 = vpop.f32.mrb[0].mxu0
      %v4844 = vadd.f32 %v4555, %v4843
      %v4845 = vpop.f32.mrb[0].mxu0
      %4846 = vmatprep.mubr.bf16.mxu0 %v4105
      %4847 = vmatmul.mubr.bf16.gmra.mrb[0].mxu0 %v4104
      %v4848 = vpop.f32.mrb[0].mxu0
      %v4849 = vadd.f32 %v4560, %v4848
      %v4850 = vpop.f32.mrb[0].mxu0
      %v4851 = vpop.f32.mrb[0].mxu0
      %v4852 = vadd.f32 %v4563, %v4851
      %v4853 = vpop.f32.mrb[0].mxu0
      %4854 = vmatprep.mubr.bf16.mxu0 %v4109
      %4855 = vmatmul.mubr.bf16.gmra.mrb[0].mxu0 %v4108
      %v4856 = vpop.f32.mrb[0].mxu0
      %v4857 = vadd.f32 %v4568, %v4856
      %v4858 = vpop.f32.mrb[0].mxu0
      %v4859 = vpop.f32.mrb[0].mxu0
      %v4860 = vadd.f32 %v4571, %v4859
      %v4861 = vpop.f32.mrb[0].mxu0
      %4862 = vmatprep.mubr.bf16.mxu0 %v4113
      %4863 = vmatmul.mubr.bf16.gmra.mrb[0].mxu0 %v4112
      %v4864 = vpop.f32.mrb[0].mxu0
      %v4865 = vadd.f32 %v4576, %v4864
      %v4866 = vpop.f32.mrb[0].mxu0
      %v4867 = vpop.f32.mrb[0].mxu0
      %v4868 = vadd.f32 %v4579, %v4867
      %v4869 = vpop.f32.mrb[0].mxu0
      %4870 = vmatprep.mubr.bf16.mxu0 %v4117
      %4871 = vmatmul.mubr.bf16.gmra.mrb[0].mxu0 %v4116
      %v4872 = vpop.f32.mrb[0].mxu0
      %v4873 = vadd.f32 %v4584, %v4872
      %v4874 = vpop.f32.mrb[0].mxu0
      %v4875 = vpop.f32.mrb[0].mxu0
      %v4876 = vadd.f32 %v4587, %v4875
      %v4877 = vpop.f32.mrb[0].mxu0
      %4878 = vmatprep.mubr.bf16.mxu0 %v4121
      %4879 = vmatmul.mubr.bf16.gmra.mrb[0].mxu0 %v4120
      %v4880 = vpop.f32.mrb[0].mxu0
      %v4881 = vadd.f32 %v4592, %v4880
      %v4882 = vpop.f32.mrb[0].mxu0
      %v4883 = vpop.f32.mrb[0].mxu0
      %v4884 = vadd.f32 %v4595, %v4883
      %v4885 = vpop.f32.mrb[0].mxu0
      %4886 = vmatprep.mubr.bf16.mxu0 %v4125
      %4887 = vmatmul.mubr.bf16.gmra.mrb[0].mxu0 %v4124
      %v4888 = vpop.f32.mrb[0].mxu0
      %v4889 = vadd.f32 %v4600, %v4888
      %v4890 = vpop.f32.mrb[0].mxu0
      %v4891 = vpop.f32.mrb[0].mxu0
      %v4892 = vadd.f32 %v4603, %v4891
      %v4893 = vpop.f32.mrb[0].mxu0
      %4894 = vmatprep.mubr.bf16.mxu0 %v4129
      %4895 = vmatmul.mubr.bf16.gmra.mrb[0].mxu0 %v4128
      %v4896 = vpop.f32.mrb[0].mxu0
      %v4897 = vadd.f32 %v4608, %v4896
      %v4898 = vpop.f32.mrb[0].mxu0
      %v4899 = vpop.f32.mrb[0].mxu0
      %v4900 = vadd.f32 %v4611, %v4899
      %v4901 = vpop.f32.mrb[0].mxu0
      %4902 = vmatprep.mubr.bf16.mxu0 %v4133
      %4903 = vmatmul.mubr.bf16.gmra.mrb[0].mxu0 %v4132
      %v4904 = vpop.f32.mrb[0].mxu0
      %v4905 = vadd.f32 %v4616, %v4904
      %v4906 = vpop.f32.mrb[0].mxu0
      %v4907 = vpop.f32.mrb[0].mxu0
      %v4908 = vadd.f32 %v4619, %v4907
      %v4909 = vpop.f32.mrb[0].mxu0
      %4910 = vmatprep.mubr.bf16.mxu0 %v4137
      %4911 = vmatmul.mubr.bf16.gmra.mrb[0].mxu0 %v4136
      %v4912 = vpop.f32.mrb[0].mxu0
      %v4913 = vadd.f32 %v4624, %v4912
      %v4914 = vpop.f32.mrb[0].mxu0
      %v4915 = vpop.f32.mrb[0].mxu0
      %v4916 = vadd.f32 %v4627, %v4915
      %v4917 = vpop.f32.mrb[0].mxu0
      %4918 = vmatprep.mubr.bf16.mxu0 %v4141
      %4919 = vmatmul.mubr.bf16.gmra.mrb[0].mxu0 %v4140
      %v4920 = vpop.f32.mrb[0].mxu0
      %v4921 = vadd.f32 %v4632, %v4920
      %v4922 = vpop.f32.mrb[0].mxu0
      %v4923 = vpop.f32.mrb[0].mxu0
      %v4924 = vadd.f32 %v4635, %v4923
      %v4925 = vpop.f32.mrb[0].mxu0
      %4926 = vmatprep.mubr.bf16.mxu0 %v4145
      %4927 = vmatmul.mubr.bf16.gmra.mrb[0].mxu0 %v4144
      %v4928 = vpop.f32.mrb[0].mxu0
      %v4929 = vadd.f32 %v4640, %v4928
      %v4930 = vpop.f32.mrb[0].mxu0
      %v4931 = vpop.f32.mrb[0].mxu0
      %v4932 = vadd.f32 %v4643, %v4931
      %v4933 = vpop.f32.mrb[0].mxu0
      %4934 = vmatprep.mubr.bf16.mxu0 %v4149
      %4935 = vmatmul.mubr.bf16.gmra.mrb[0].mxu0 %v4148
      %v4936 = vpop.f32.mrb[0].mxu0
      %v4937 = vadd.f32 %v4648, %v4936
      %v4938 = vpop.f32.mrb[0].mxu0
      %v4939 = vpop.f32.mrb[0].mxu0
      %v4940 = vadd.f32 %v4651, %v4939
      %v4941 = vpop.f32.mrb[0].mxu0
      %4942 = vmatprep.mubr.bf16.mxu0 %v4153
      %4943 = vmatmul.mubr.bf16.gmra.mrb[0].mxu0 %v4152
      %v4944 = vpop.f32.mrb[0].mxu0
      %v4945 = vadd.f32 %v4656, %v4944
      %v4946 = vpop.f32.mrb[0].mxu0
      %v4947 = vpop.f32.mrb[0].mxu0
      %v4948 = vadd.f32 %v4659, %v4947
      %v4949 = vpop.f32.mrb[0].mxu0
      %4950 = vmatprep.mubr.bf16.mxu0 %v4157
      %4951 = vmatmul.mubr.bf16.gmra.mrb[0].mxu0 %v4156
      %v4952 = vpop.f32.mrb[0].mxu0
      %v4953 = vadd.f32 %v4664, %v4952
      %v4954 = vpop.f32.mrb[0].mxu0
      %v4955 = vpop.f32.mrb[0].mxu0
      %v4956 = vadd.f32 %v4667, %v4955
      %v4957 = vpop.f32.mrb[0].mxu0
      %4958 = vmatprep.mubr.bf16.mxu0 %v4161
      %4959 = vmatmul.mubr.bf16.gmra.mrb[0].mxu0 %v4160
      %v4960 = vpop.f32.mrb[0].mxu0
      %v4961 = vadd.f32 %v4672, %v4960
      %v4962 = vpop.f32.mrb[0].mxu0
      %v4963 = vpop.f32.mrb[0].mxu0
      %v4964 = vadd.f32 %v4675, %v4963
      %v4965 = vpop.f32.mrb[0].mxu0
      %4966 = vmatprep.mubr.bf16.mxu0 %v4165
      %4967 = vmatmul.mubr.bf16.gmra.mrb[0].mxu0 %v4164
      %v4968 = vpop.f32.mrb[0].mxu0
      %v4969 = vadd.f32 %v4680, %v4968
      %v4970 = vpop.f32.mrb[0].mxu0
      %v4971 = vpop.f32.mrb[0].mxu0
      %v4972 = vadd.f32 %v4683, %v4971
      %v4973 = vpop.f32.mrb[0].mxu0
      %4974 = vmatprep.mubr.bf16.mxu0 %v4169
      %4975 = vmatmul.mubr.bf16.gmra.mrb[0].mxu0 %v4168
      %v4976 = vpop.f32.mrb[0].mxu0
      %v4977 = vadd.f32 %v4688, %v4976
      %v4978 = vpop.f32.mrb[0].mxu0
      %v4979 = vpop.f32.mrb[0].mxu0
      %v4980 = vadd.f32 %v4691, %v4979
      %v4981 = vpop.f32.mrb[0].mxu0
      %4982 = vmatprep.mubr.bf16.mxu0 %v4173
      %4983 = vmatmul.mubr.bf16.gmra.mrb[0].mxu0 %v4172
      %v4984 = vpop.f32.mrb[0].mxu0
      %v4985 = vadd.f32 %v4696, %v4984
      %v4986 = vpop.f32.mrb[0].mxu0
      %v4987 = vpop.f32.mrb[0].mxu0
      %v4988 = vadd.f32 %v4699, %v4987
      %v4989 = vpop.f32.mrb[0].mxu0
      %4990 = vmatprep.mubr.bf16.mxu0 %v4177
      %4991 = vmatmul.mubr.bf16.gmra.mrb[0].mxu0 %v4176
      %v4992 = vpop.f32.mrb[0].mxu0
      %v4993 = vadd.f32 %v4704, %v4992
      %v4994 = vpop.f32.mrb[0].mxu0
      %v4995 = vpop.f32.mrb[0].mxu0
      %v4996 = vadd.f32 %v4707, %v4995
      %v4997 = vpop.f32.mrb[0].mxu0
      %4998 = vmatprep.mubr.bf16.mxu0 %v4181
      %4999 = vmatmul.mubr.bf16.gmra.mrb[0].mxu0 %v4180
      %v5000 = vpop.f32.mrb[0].mxu0
      %v5001 = vadd.f32 %v4712, %v5000
      %v5002 = vpop.f32.mrb[0].mxu0
      %v5003 = vpop.f32.mrb[0].mxu0
      %v5004 = vadd.f32 %v4715, %v5003
      %v5005 = vpop.f32.mrb[0].mxu0
      %5006 = vmatprep.mubr.bf16.mxu0 %v4185
      %5007 = vmatmul.mubr.bf16.gmra.mrb[0].mxu0 %v4184
      %v5008 = vpop.f32.mrb[0].mxu0
      %v5009 = vadd.f32 %v4720, %v5008
      %v5010 = vpop.f32.mrb[0].mxu0
      %v5011 = vpop.f32.mrb[0].mxu0
      %v5012 = vadd.f32 %v4723, %v5011
      %v5013 = vpop.f32.mrb[0].mxu0
      %5014 = vmatprep.mubr.bf16.mxu0 %v4189
      %5015 = vmatmul.mubr.bf16.gmra.mrb[0].mxu0 %v4188
      %v5016 = vpop.f32.mrb[0].mxu0
      %v5017 = vadd.f32 %v4728, %v5016
      %v5018 = vpop.f32.mrb[0].mxu0
      %v5019 = vpop.f32.mrb[0].mxu0
      %v5020 = vadd.f32 %v4731, %v5019
      %v5021 = vpop.f32.mrb[0].mxu0
      %5022 = vmatprep.mubr.bf16.mxu0 %v4193
      %5023 = vmatmul.mubr.bf16.gmra.mrb[0].mxu0 %v4192
      %v5024 = vpop.f32.mrb[0].mxu0
      %v5025 = vadd.f32 %v4736, %v5024
      %v5026 = vpop.f32.mrb[0].mxu0
      %v5027 = vpop.f32.mrb[0].mxu0
      %v5028 = vadd.f32 %v4739, %v5027
      %v5029 = vpop.f32.mrb[0].mxu0
      %5030 = vmatprep.mubr.bf16.mxu0 %v4197
      %5031 = vmatmul.mubr.bf16.gmra.mrb[0].mxu0 %v4196
      %v5032 = vpop.f32.mrb[0].mxu0
      %v5033 = vadd.f32 %v4744, %v5032
      %v5034 = vpop.f32.mrb[0].mxu0
      %v5035 = vpop.f32.mrb[0].mxu0
      %v5036 = vadd.f32 %v4747, %v5035
      %v5037 = vpop.f32.mrb[0].mxu0
      %5038 = vdwg.mxu0
      %v5039 = vpack.c.bf16 %v4788, %v4785
      %v5040 = vpack.c.bf16 %v4796, %v4793
      %v5041 = vpack.c.bf16 %v4804, %v4801
      %v5042 = vpack.c.bf16 %v4812, %v4809
      %v5043 = vpack.c.bf16 %v4820, %v4817
      %v5044 = vpack.c.bf16 %v4828, %v4825
      %v5045 = vpack.c.bf16 %v4836, %v4833
      %v5046 = vpack.c.bf16 %v4844, %v4841
      %v5047 = vpack.c.bf16 %v4852, %v4849
      %v5048 = vpack.c.bf16 %v4860, %v4857
      %v5049 = vpack.c.bf16 %v4868, %v4865
      %v5050 = vpack.c.bf16 %v4876, %v4873
      %v5051 = vpack.c.bf16 %v4884, %v4881
      %v5052 = vpack.c.bf16 %v4892, %v4889
      %v5053 = vpack.c.bf16 %v4900, %v4897
      %v5054 = vpack.c.bf16 %v4908, %v4905
      %v5055 = vpack.c.bf16 %v4916, %v4913
      %v5056 = vpack.c.bf16 %v4924, %v4921
      %v5057 = vpack.c.bf16 %v4932, %v4929
      %v5058 = vpack.c.bf16 %v4940, %v4937
      %v5059 = vpack.c.bf16 %v4948, %v4945
      %v5060 = vpack.c.bf16 %v4956, %v4953
      %v5061 = vpack.c.bf16 %v4964, %v4961
      %v5062 = vpack.c.bf16 %v4972, %v4969
      %v5063 = vpack.c.bf16 %v4980, %v4977
      %v5064 = vpack.c.bf16 %v4988, %v4985
      %v5065 = vpack.c.bf16 %v4996, %v4993
      %v5066 = vpack.c.bf16 %v5004, %v5001
      %v5067 = vpack.c.bf16 %v5012, %v5009
      %v5068 = vpack.c.bf16 %v5020, %v5017
      %v5069 = vpack.c.bf16 %v5028, %v5025
      %v5070 = vpack.c.bf16 %v5036, %v5033
      %v5103 = vunpack.c.l.b16 %v5039
      %v5104 = vunpack.c.h.b16 %v5039
      %v5105 = vunpack.c.l.b16 %v5040
      %v5106 = vunpack.c.h.b16 %v5040
      %v5107 = vunpack.c.l.b16 %v5041
      %v5108 = vunpack.c.h.b16 %v5041
      %v5109 = vunpack.c.l.b16 %v5042
      %v5110 = vunpack.c.h.b16 %v5042
      %v5111 = vunpack.c.l.b16 %v5043
      %v5112 = vunpack.c.h.b16 %v5043
      %v5113 = vunpack.c.l.b16 %v5044
      %v5114 = vunpack.c.h.b16 %v5044
      %v5115 = vunpack.c.l.b16 %v5045
      %v5116 = vunpack.c.h.b16 %v5045
      %v5117 = vunpack.c.l.b16 %v5046
      %v5118 = vunpack.c.h.b16 %v5046
      %v5119 = vunpack.c.l.b16 %v5047
      %v5120 = vunpack.c.h.b16 %v5047
      %v5121 = vunpack.c.l.b16 %v5048
      %v5122 = vunpack.c.h.b16 %v5048
      %v5123 = vunpack.c.l.b16 %v5049
      %v5124 = vunpack.c.h.b16 %v5049
      %v5125 = vunpack.c.l.b16 %v5050
      %v5126 = vunpack.c.h.b16 %v5050
      %v5127 = vunpack.c.l.b16 %v5051
      %v5128 = vunpack.c.h.b16 %v5051
      %v5129 = vunpack.c.l.b16 %v5052
      %v5130 = vunpack.c.h.b16 %v5052
      %v5131 = vunpack.c.l.b16 %v5053
      %v5132 = vunpack.c.h.b16 %v5053
      %v5133 = vunpack.c.l.b16 %v5054
      %v5134 = vunpack.c.h.b16 %v5054
      %v5135 = vunpack.c.l.b16 %v5055
      %v5136 = vunpack.c.h.b16 %v5055
      %v5137 = vunpack.c.l.b16 %v5056
      %v5138 = vunpack.c.h.b16 %v5056
      %v5139 = vunpack.c.l.b16 %v5057
      %v5140 = vunpack.c.h.b16 %v5057
      %v5141 = vunpack.c.l.b16 %v5058
      %v5142 = vunpack.c.h.b16 %v5058
      %v5143 = vunpack.c.l.b16 %v5059
      %v5144 = vunpack.c.h.b16 %v5059
      %v5145 = vunpack.c.l.b16 %v5060
      %v5146 = vunpack.c.h.b16 %v5060
      %v5147 = vunpack.c.l.b16 %v5061
      %v5148 = vunpack.c.h.b16 %v5061
      %v5149 = vunpack.c.l.b16 %v5062
      %v5150 = vunpack.c.h.b16 %v5062
      %v5151 = vunpack.c.l.b16 %v5063
      %v5152 = vunpack.c.h.b16 %v5063
      %v5153 = vunpack.c.l.b16 %v5064
      %v5154 = vunpack.c.h.b16 %v5064
      %v5155 = vunpack.c.l.b16 %v5065
      %v5156 = vunpack.c.h.b16 %v5065
      %v5157 = vunpack.c.l.b16 %v5066
      %v5158 = vunpack.c.h.b16 %v5066
      %v5159 = vunpack.c.l.b16 %v5067
      %v5160 = vunpack.c.h.b16 %v5067
      %v5161 = vunpack.c.l.b16 %v5068
      %v5162 = vunpack.c.h.b16 %v5068
      %v5163 = vunpack.c.l.b16 %v5069
      %v5164 = vunpack.c.h.b16 %v5069
      %v5165 = vunpack.c.l.b16 %v5070
      %v5166 = vunpack.c.h.b16 %v5070
      %v5167 = vpack.c.b16 %v5103, %v5103
      %v5168 = vpack.c.b16 %v5104, %v5104
      %v5169 = vpack.c.b16 %v5105, %v5105
      %v5170 = vpack.c.b16 %v5106, %v5106
      %v5171 = vpack.c.b16 %v5107, %v5107
      %v5172 = vpack.c.b16 %v5108, %v5108
      %v5173 = vpack.c.b16 %v5109, %v5109
      %v5174 = vpack.c.b16 %v5110, %v5110
      %v5175 = vpack.c.b16 %v5111, %v5111
      %v5176 = vpack.c.b16 %v5112, %v5112
      %v5177 = vpack.c.b16 %v5113, %v5113
      %v5178 = vpack.c.b16 %v5114, %v5114
      %v5179 = vpack.c.b16 %v5115, %v5115
      %v5180 = vpack.c.b16 %v5116, %v5116
      %v5181 = vpack.c.b16 %v5117, %v5117
      %v5182 = vpack.c.b16 %v5118, %v5118
      %v5183 = vpack.c.b16 %v5119, %v5119
      %v5184 = vpack.c.b16 %v5120, %v5120
      %v5185 = vpack.c.b16 %v5121, %v5121
      %v5186 = vpack.c.b16 %v5122, %v5122
      %v5187 = vpack.c.b16 %v5123, %v5123
      %v5188 = vpack.c.b16 %v5124, %v5124
      %v5189 = vpack.c.b16 %v5125, %v5125
      %v5190 = vpack.c.b16 %v5126, %v5126
      %v5191 = vpack.c.b16 %v5127, %v5127
      %v5192 = vpack.c.b16 %v5128, %v5128
      %v5193 = vpack.c.b16 %v5129, %v5129
      %v5194 = vpack.c.b16 %v5130, %v5130
      %v5195 = vpack.c.b16 %v5131, %v5131
      %v5196 = vpack.c.b16 %v5132, %v5132
      %v5197 = vpack.c.b16 %v5133, %v5133
      %v5198 = vpack.c.b16 %v5134, %v5134
      %v5199 = vpack.c.b16 %v5135, %v5135
      %v5200 = vpack.c.b16 %v5136, %v5136
      %v5201 = vpack.c.b16 %v5137, %v5137
      %v5202 = vpack.c.b16 %v5138, %v5138
      %v5203 = vpack.c.b16 %v5139, %v5139
      %v5204 = vpack.c.b16 %v5140, %v5140
      %v5205 = vpack.c.b16 %v5141, %v5141
      %v5206 = vpack.c.b16 %v5142, %v5142
      %v5207 = vpack.c.b16 %v5143, %v5143
      %v5208 = vpack.c.b16 %v5144, %v5144
      %v5209 = vpack.c.b16 %v5145, %v5145
      %v5210 = vpack.c.b16 %v5146, %v5146
      %v5211 = vpack.c.b16 %v5147, %v5147
      %v5212 = vpack.c.b16 %v5148, %v5148
      %v5213 = vpack.c.b16 %v5149, %v5149
      %v5214 = vpack.c.b16 %v5150, %v5150
      %v5215 = vpack.c.b16 %v5151, %v5151
      %v5216 = vpack.c.b16 %v5152, %v5152
      %v5217 = vpack.c.b16 %v5153, %v5153
      %v5218 = vpack.c.b16 %v5154, %v5154
      %v5219 = vpack.c.b16 %v5155, %v5155
      %v5220 = vpack.c.b16 %v5156, %v5156
      %v5221 = vpack.c.b16 %v5157, %v5157
      %v5222 = vpack.c.b16 %v5158, %v5158
      %v5223 = vpack.c.b16 %v5159, %v5159
      %v5224 = vpack.c.b16 %v5160, %v5160
      %v5225 = vpack.c.b16 %v5161, %v5161
      %v5226 = vpack.c.b16 %v5162, %v5162
      %v5227 = vpack.c.b16 %v5163, %v5163
      %v5228 = vpack.c.b16 %v5164, %v5164
      %v5229 = vpack.c.b16 %v5165, %v5165
      %v5230 = vpack.c.b16 %v5166, %v5166
      %5295 = vst [vmem:[%s280] sm:$0xf] %v5167
      %5296 = vst [vmem:[%s280 + $0x4] sm:$0xf] %v5168
      %5297 = vst [vmem:[%s280 + $0x8] sm:$0xf] %v5169
      %5298 = vst [vmem:[%s280 + $0xc] sm:$0xf] %v5170
      %5299 = vst [vmem:[%s280 + $0x10] sm:$0xf] %v5171
      %5300 = vst [vmem:[%s280 + $0x14] sm:$0xf] %v5172
      %5301 = vst [vmem:[%s280 + $0x18] sm:$0xf] %v5173
      %5302 = vst [vmem:[%s280 + $0x1c] sm:$0xf] %v5174
      %5303 = vst [vmem:[%s280 + $0x20] sm:$0xf] %v5175
      %5304 = vst [vmem:[%s280 + $0x24] sm:$0xf] %v5176
      %5305 = vst [vmem:[%s280 + $0x28] sm:$0xf] %v5177
      %5306 = vst [vmem:[%s280 + $0x2c] sm:$0xf] %v5178
      %5307 = vst [vmem:[%s280 + $0x30] sm:$0xf] %v5179
      %5308 = vst [vmem:[%s280 + $0x34] sm:$0xf] %v5180
      %5309 = vst [vmem:[%s280 + $0x38] sm:$0xf] %v5181
      %5310 = vst [vmem:[%s280 + $0x3c] sm:$0xf] %v5182
      %5311 = vst [vmem:[%s280 + $0x40] sm:$0xf] %v5183
      %5312 = vst [vmem:[%s280 + $0x44] sm:$0xf] %v5184
      %5313 = vst [vmem:[%s280 + $0x48] sm:$0xf] %v5185
      %5314 = vst [vmem:[%s280 + $0x4c] sm:$0xf] %v5186
      %5315 = vst [vmem:[%s280 + $0x50] sm:$0xf] %v5187
      %5316 = vst [vmem:[%s280 + $0x54] sm:$0xf] %v5188
      %5317 = vst [vmem:[%s280 + $0x58] sm:$0xf] %v5189
      %5318 = vst [vmem:[%s280 + $0x5c] sm:$0xf] %v5190
      %5319 = vst [vmem:[%s280 + $0x60] sm:$0xf] %v5191
      %5320 = vst [vmem:[%s280 + $0x64] sm:$0xf] %v5192
      %5321 = vst [vmem:[%s280 + $0x68] sm:$0xf] %v5193
      %5322 = vst [vmem:[%s280 + $0x6c] sm:$0xf] %v5194
      %5323 = vst [vmem:[%s280 + $0x70] sm:$0xf] %v5195
      %5324 = vst [vmem:[%s280 + $0x74] sm:$0xf] %v5196
      %5325 = vst [vmem:[%s280 + $0x78] sm:$0xf] %v5197
      %5326 = vst [vmem:[%s280 + $0x7c] sm:$0xf] %v5198
      %5327 = vst [vmem:[%s280 + $0x80] sm:$0xf] %v5199
      %5328 = vst [vmem:[%s280 + $0x84] sm:$0xf] %v5200
      %5329 = vst [vmem:[%s280 + $0x88] sm:$0xf] %v5201
      %5330 = vst [vmem:[%s280 + $0x8c] sm:$0xf] %v5202
      %5331 = vst [vmem:[%s280 + $0x90] sm:$0xf] %v5203
      %5332 = vst [vmem:[%s280 + $0x94] sm:$0xf] %v5204
      %5333 = vst [vmem:[%s280 + $0x98] sm:$0xf] %v5205
      %5334 = vst [vmem:[%s280 + $0x9c] sm:$0xf] %v5206
      %5335 = vst [vmem:[%s280 + $0xa0] sm:$0xf] %v5207
      %5336 = vst [vmem:[%s280 + $0xa4] sm:$0xf] %v5208
      %5337 = vst [vmem:[%s280 + $0xa8] sm:$0xf] %v5209
      %5338 = vst [vmem:[%s280 + $0xac] sm:$0xf] %v5210
      %5339 = vst [vmem:[%s280 + $0xb0] sm:$0xf] %v5211
      %5340 = vst [vmem:[%s280 + $0xb4] sm:$0xf] %v5212
      %5341 = vst [vmem:[%s280 + $0xb8] sm:$0xf] %v5213
      %5342 = vst [vmem:[%s280 + $0xbc] sm:$0xf] %v5214
      %5343 = vst [vmem:[%s280 + $0xc0] sm:$0xf] %v5215
      %5344 = vst [vmem:[%s280 + $0xc4] sm:$0xf] %v5216
      %5345 = vst [vmem:[%s280 + $0xc8] sm:$0xf] %v5217
      %5346 = vst [vmem:[%s280 + $0xcc] sm:$0xf] %v5218
      %5347 = vst [vmem:[%s280 + $0xd0] sm:$0xf] %v5219
      %5348 = vst [vmem:[%s280 + $0xd4] sm:$0xf] %v5220
      %5349 = vst [vmem:[%s280 + $0xd8] sm:$0xf] %v5221
      %5350 = vst [vmem:[%s280 + $0xdc] sm:$0xf] %v5222
      %5351 = vst [vmem:[%s280 + $0xe0] sm:$0xf] %v5223
      %5352 = vst [vmem:[%s280 + $0xe4] sm:$0xf] %v5224
      %5353 = vst [vmem:[%s280 + $0xe8] sm:$0xf] %v5225
      %5354 = vst [vmem:[%s280 + $0xec] sm:$0xf] %v5226
      %5355 = vst [vmem:[%s280 + $0xf0] sm:$0xf] %v5227
      %5356 = vst [vmem:[%s280 + $0xf4] sm:$0xf] %v5228
      %5357 = vst [vmem:[%s280 + $0xf8] sm:$0xf] %v5229
      %5358 = vst [vmem:[%s280 + $0xfc] sm:$0xf] %v5230
      %s5359 = smul.u32 64, %s18
      %p5360 = scmp.lt.s32.totalorder %s5359, 127
      %s5361 = scalar_select %p5360, %s5359, 127
      %s5362 = smul.addr %s5361, 4
      %s5363 = scalar_lea.vmem %s7, %s5362
      // Predicated region
      $region49: #{qnetwork_forward.1} parent=47 // pred_check
        %p5364 = pneg %p188
      $region50: #{qnetwork_forward.1} parent=47 // pred_check_branch
        %5366 = sbr.rel (%p5364) target = $region52
      $region51: #{qnetwork_forward.1} parent=47 // pred_region
        %s5367 = smul.u32 64, %s18
      $region52: #{qnetwork_forward.1} parent=47 // pred_fallthru
        _
    $region48: #{qnetwork_forward.1} parent=5 // pred_fallthru
      _
    %p5368 = scmp.le.s32.totalorder 2, %s13
    // Predicated region
    $region53: #{qnetwork_forward.1} parent=5 // pred_check
      %p5369 = pneg %p5368
    $region54: #{qnetwork_forward.1} parent=5 // pred_check_branch
      %5371 = sbr.rel (%p5369) target = $region56
    $region55: #{qnetwork_forward.1} parent=5 // pred_region
      %s5372 = ssub.s32 %s13, 2
      // Predicated region
      $region57: #{qnetwork_forward.1} parent=55 // pred_check
        %p5373 = pneg %p194
      $region58: #{qnetwork_forward.1} parent=55 // pred_check_branch
        %5375 = sbr.rel (%p5373) target = $region60
      $region59: #{qnetwork_forward.1} parent=55 // pred_region
        %s5376 = smul.u32 64, %s19
        %p5377 = scmp.lt.s32.totalorder %s5376, 127
        %s5378 = scalar_select %p5377, %s5376, 127
        %s5379 = smul.addr %s5378, 4
        %s5380 = scalar_lea.vmem %s7, %s5379
      $region60: #{qnetwork_forward.1} parent=55 // pred_fallthru
        _
    $region56: #{qnetwork_forward.1} parent=5 // pred_fallthru
      _
  $region6: #{qnetwork_forward.1} parent=0 // loop_footer
    %s17 = sadd.s32 1, %s13
  $region7: #{qnetwork_forward.1} parent=0 // loop_footer_branch
    %12 = sbr.rel target = $region3
  $region8: #{qnetwork_forward.1} parent=0 // loop_exit
    _

</llo_original>
